<compile_context>
chip_gen: v7x
topology: tpu7x:2x2x1
jax: 0.10.0
libtpu: 0.0.40
codegen_flags: <defaults>
</compile_context>

<pallas_src>
import functools

import jax
import jax.numpy as jnp
from jax.experimental import pallas as pl
from jax.experimental.pallas import tpu as pltpu


def _round_up(x, m):
    return -(-x // m) * m


def _chip_flags():
    """(activation dtype for the elementwise chain, whether chip has 2 TCs)."""
    kind = jax.devices()[0].device_kind.lower()
    bf16_vpu = ("v6" in kind) or ("v7" in kind)     # v5e has no bf16 VPU
    dual_tc = "v7" in kind                          # v7x: 2 TensorCores/chip
    return (jnp.bfloat16 if bf16_vpu else jnp.float32), dual_tc


def generator_kernel(x_ref,
                     w1_ref, b1_ref,
                     w2_ref, b2_ref,
                     w3_ref, b3_ref,
                     w4_ref, b4_ref,
                     o_ref, *, act_dtype):
    # x tile arrives in bf16 (MXU-native); each layer is one MXU dot with f32
    # accumulation. Bias add in f32, then a single cast to `act_dtype` for the
    # LeakyReLU (bf16 on v6e/v7x halves VALU slot pressure; f32 on v5e).
    slope = jnp.asarray(0.2, act_dtype)
    h = x_ref[...]
    for w_ref, b_ref in ((w1_ref, b1_ref), (w2_ref, b2_ref), (w3_ref, b3_ref)):
        z = jnp.dot(h, w_ref[...], preferred_element_type=jnp.float32)
        z = (z + b_ref[...]).astype(act_dtype)
        h = jnp.maximum(z, slope * z)            # LeakyReLU(0.2) as a single max
        h = h.astype(jnp.bfloat16)               # no-op when act_dtype is bf16
    z = jnp.dot(h, w4_ref[...], preferred_element_type=jnp.float32)
    o_ref[...] = jnp.tanh(z + b4_ref[...]).astype(o_ref.dtype)


def generator_forward(x, params, *, batch_tile=None):
    """x: (B, input_dim). params: w{1..4} (in,out) [bf16 ok], b{1..4} (1,out)."""
    B, d_in = x.shape
    d_out = params["w4"].shape[1]
    out_dtype = jnp.float32

    act_dtype, dual_tc = _chip_flags()

    # ---- batch tiling (chip-aware) ------------------------------------------
    B8 = _round_up(B, 8)
    if batch_tile is None:
        if dual_tc:
            # Even, >=2-step grid so "parallel" shards across both TCs;
            # each step <= 256 rows (MXU M-dim aligned).
            n_pairs = pl.cdiv(B8, 512)
            grid_b = 2 * n_pairs
            batch_tile = _round_up(pl.cdiv(B8, grid_b), 8)
        else:
            # Single TC: fewer, larger steps amortize per-step overhead.
            batch_tile = min(512, B8)
            grid_b = pl.cdiv(B8, batch_tile)
    else:
        assert batch_tile % 8 == 0, "batch_tile must be a multiple of 8"
        grid_b = pl.cdiv(B, batch_tile)
        if dual_tc and grid_b > 1 and grid_b % 2:
            grid_b += 1                       # keep TC split balanced on v7x
    assert batch_tile % 8 == 0
    B_pad = grid_b * batch_tile

    # ---- operand prep (casts are no-ops if params are already bf16/f32) -----
    x_bf = x.astype(jnp.bfloat16)             # halves input-tile DMA
    if B_pad != B:
        x_bf = jnp.pad(x_bf, ((0, B_pad - B), (0, 0)))

    w = [jnp.asarray(params[f"w{i}"], jnp.bfloat16) for i in range(1, 5)]
    b = [jnp.asarray(params[f"b{i}"], jnp.float32) for i in range(1, 5)]

    # Lane-dense output: pad feature dim to a multiple of 128 (unmasked vst).
    d_out_pad = _round_up(d_out, 128)
    if d_out_pad != d_out:
        w[3] = jnp.pad(w[3], ((0, 0), (0, d_out_pad - d_out)))
        b[3] = jnp.pad(b[3], ((0, 0), (0, d_out_pad - d_out)))

    # ---- block specs ---------------------------------------------------------
    def full_spec(arr):
        # Grid-invariant, VMEM-resident; single-buffered (constant index_map).
        return pl.BlockSpec(arr.shape, lambda i: (0, 0),
                            pipeline_mode=pl.Buffered(1))

    in_specs = [pl.BlockSpec((batch_tile, d_in), lambda i: (i, 0))]
    for wi, bi in zip(w, b):
        in_specs.append(full_spec(wi))
        in_specs.append(full_spec(bi))
    out_spec = pl.BlockSpec((batch_tile, d_out_pad), lambda i: (i, 0))

    # ---- scoped VMEM budget (computed, with 2x headroom; v7x only has 64MiB) -
    weight_bytes = sum(int(a.size) * a.dtype.itemsize for a in w) \
                 + sum(int(a.size) * 4 for a in b)
    io_bytes = 2 * batch_tile * (d_in * 2 + d_out_pad * 4)      # dbl-buffered x/out
    act_bytes = 4 * batch_tile * (256 + 512 + 1024) * 4         # generous temporaries
    vmem_limit = int(max(16 << 20,
                         min(64 << 20, 2 * (weight_bytes + io_bytes + act_bytes))))

    out = pl.pallas_call(
        functools.partial(generator_kernel, act_dtype=act_dtype),
        out_shape=jax.ShapeDtypeStruct((B_pad, d_out_pad), out_dtype),
        grid=(grid_b,),
        in_specs=in_specs,
        out_specs=out_spec,
        compiler_params=pltpu.CompilerParams(
            dimension_semantics=("parallel",),   # batch steps shard across TCs
            vmem_limit_bytes=vmem_limit,
        ),
    )(x_bf, w[0], b[0], w[1], b[1], w[2], b[2], w[3], b[3])

    if B_pad != B or d_out_pad != d_out:
        out = out[:B, :d_out]
    return out


def init_generator_params(key, input_dim, output_dim):
    """Deterministic synthetic params. Weights stored as (in, out) in bf16
    (cast once at init, not per call); biases stay f32."""
    dims = [input_dim, 256, 512, 1024, output_dim]
    params = {}
    keys = jax.random.split(key, 2 * (len(dims) - 1))
    for li in range(len(dims) - 1):
        fan_in, fan_out = dims[li], dims[li + 1]
        bound = 1.0 / jnp.sqrt(fan_in)
        wf = jax.random.uniform(keys[2 * li], (fan_in, fan_out),
                                minval=-bound, maxval=bound, dtype=jnp.float32)
        bf = jax.random.uniform(keys[2 * li + 1], (1, fan_out),
                                minval=-bound, maxval=bound, dtype=jnp.float32)
        params[f"w{li + 1}"] = wf.astype(jnp.bfloat16)
        params[f"b{li + 1}"] = bf
    return params


def reference_forward(x, params, act_dtype):
    """Pure-JAX reference emulating the kernel numerics (bf16 MXU operands,
    f32 accumulation + bias, activation chain in act_dtype)."""
    slope = jnp.asarray(0.2, act_dtype)
    h = x.astype(jnp.bfloat16)
    for li in range(1, 4):
        z = jnp.dot(h, params[f"w{li}"].astype(jnp.bfloat16),
                    preferred_element_type=jnp.float32)
        z = (z + params[f"b{li}"].astype(jnp.float32)).astype(act_dtype)
        h = jnp.maximum(z, slope * z).astype(jnp.bfloat16)
    z = jnp.dot(h, params["w4"].astype(jnp.bfloat16),
                preferred_element_type=jnp.float32)
    return jnp.tanh(z + params["b4"].astype(jnp.float32))


if __name__ == "__main__":
    key = jax.random.PRNGKey(0)
    k_param, k_x = jax.random.split(key)

    batch, input_dim, output_dim = 256, 64, 128
    params = init_generator_params(k_param, input_dim, output_dim)
    x = jax.random.normal(k_x, (batch, input_dim), dtype=jnp.float32)

    out = generator_forward(x, params)
    out = jax.block_until_ready(out)
    assert out.shape == (batch, output_dim)

    act_dtype, _ = _chip_flags()
    ref = reference_forward(x, params, act_dtype)
    max_err = jnp.max(jnp.abs(out - ref))
    assert jnp.allclose(out, ref, atol=1e-2, rtol=1e-2), \
        f"mismatch vs reference, max err={max_err}"

    print("KERNEL_OK")
</pallas_src>

<mosaic_0001>
module attributes {stable_mosaic.version = 11 : i64} {
  func.func @generator_kernel(%arg0: i32, %arg1: memref<256x64xbf16, #tpu.memory_space<vmem>>, %arg2: memref<64x256xbf16, #tpu.memory_space<vmem>>, %arg3: memref<1x256xf32, #tpu.memory_space<vmem>>, %arg4: memref<256x512xbf16, #tpu.memory_space<vmem>>, %arg5: memref<1x512xf32, #tpu.memory_space<vmem>>, %arg6: memref<512x1024xbf16, #tpu.memory_space<vmem>>, %arg7: memref<1x1024xf32, #tpu.memory_space<vmem>>, %arg8: memref<1024x128xbf16, #tpu.memory_space<vmem>>, %arg9: memref<1x128xf32, #tpu.memory_space<vmem>>, %arg10: memref<256x128xf32, #tpu.memory_space<vmem>>) attributes {dimension_semantics = [#tpu.dimension_semantics<parallel>], iteration_bounds = array<i64: 1>, scalar_prefetch = 0 : i64, scratch_operands = 0 : i64, tpu.core_type = #tpu.core_type<tc>, window_params = [{transform_indices = @transform_0, window_bounds = array<i64: 256, 64>}, {pipeline_mode = #tpu.pipeline_mode<synchronous>, transform_indices = @transform_1, window_bounds = array<i64: 64, 256>}, {pipeline_mode = #tpu.pipeline_mode<synchronous>, transform_indices = @transform_2, window_bounds = array<i64: 1, 256>}, {pipeline_mode = #tpu.pipeline_mode<synchronous>, transform_indices = @transform_3, window_bounds = array<i64: 256, 512>}, {pipeline_mode = #tpu.pipeline_mode<synchronous>, transform_indices = @transform_4, window_bounds = array<i64: 1, 512>}, {pipeline_mode = #tpu.pipeline_mode<synchronous>, transform_indices = @transform_5, window_bounds = array<i64: 512, 1024>}, {pipeline_mode = #tpu.pipeline_mode<synchronous>, transform_indices = @transform_6, window_bounds = array<i64: 1, 1024>}, {pipeline_mode = #tpu.pipeline_mode<synchronous>, transform_indices = @transform_7, window_bounds = array<i64: 1024, 128>}, {pipeline_mode = #tpu.pipeline_mode<synchronous>, transform_indices = @transform_8, window_bounds = array<i64: 1, 128>}, {transform_indices = @transform_9, window_bounds = array<i64: 256, 128>}]} {
    %c0 = arith.constant 0 : index
    %c0_0 = arith.constant 0 : index
    %0 = vector.load %arg1[%c0, %c0_0] : memref<256x64xbf16, #tpu.memory_space<vmem>>, vector<256x64xbf16>
    %c0_1 = arith.constant 0 : index
    %c0_2 = arith.constant 0 : index
    %1 = vector.load %arg2[%c0_1, %c0_2] : memref<64x256xbf16, #tpu.memory_space<vmem>>, vector<64x256xbf16>
    %cst = arith.constant dense<0.000000e+00> : vector<256x256xf32>
    %2 = tpu.matmul %0, %1, %cst {dimension_numbers = #tpu.dot_dimension_numbers<[1], [0], [0], [1], [0, 0, 1, 1], [], []>} : vector<256x64xbf16>, vector<64x256xbf16>, vector<256x256xf32> -> vector<256x256xf32>
    %c0_3 = arith.constant 0 : index
    %c0_4 = arith.constant 0 : index
    %3 = vector.load %arg3[%c0_3, %c0_4] : memref<1x256xf32, #tpu.memory_space<vmem>>, vector<1x256xf32>
    %4 = vector.broadcast %3 : vector<1x256xf32> to vector<256x256xf32>
    %5 = arith.addf %2, %4 : vector<256x256xf32>
    %cst_5 = arith.constant 2.000000e-01 : f32
    %6 = vector.broadcast %cst_5 : f32 to vector<256x256xf32>
    %7 = arith.mulf %6, %5 : vector<256x256xf32>
    %8 = arith.maximumf %5, %7 : vector<256x256xf32>
    %9 = arith.truncf %8 : vector<256x256xf32> to vector<256x256xbf16>
    %c0_6 = arith.constant 0 : index
    %c0_7 = arith.constant 0 : index
    %10 = vector.load %arg4[%c0_6, %c0_7] : memref<256x512xbf16, #tpu.memory_space<vmem>>, vector<256x512xbf16>
    %cst_8 = arith.constant dense<0.000000e+00> : vector<256x512xf32>
    %11 = tpu.matmul %9, %10, %cst_8 {dimension_numbers = #tpu.dot_dimension_numbers<[1], [0], [0], [1], [0, 0, 1, 1], [], []>} : vector<256x256xbf16>, vector<256x512xbf16>, vector<256x512xf32> -> vector<256x512xf32>
    %c0_9 = arith.constant 0 : index
    %c0_10 = arith.constant 0 : index
    %12 = vector.load %arg5[%c0_9, %c0_10] : memref<1x512xf32, #tpu.memory_space<vmem>>, vector<1x512xf32>
    %13 = vector.broadcast %12 : vector<1x512xf32> to vector<256x512xf32>
    %14 = arith.addf %11, %13 : vector<256x512xf32>
    %cst_11 = arith.constant 2.000000e-01 : f32
    %15 = vector.broadcast %cst_11 : f32 to vector<256x512xf32>
    %16 = arith.mulf %15, %14 : vector<256x512xf32>
    %17 = arith.maximumf %14, %16 : vector<256x512xf32>
    %18 = arith.truncf %17 : vector<256x512xf32> to vector<256x512xbf16>
    %c0_12 = arith.constant 0 : index
    %c0_13 = arith.constant 0 : index
    %19 = vector.load %arg6[%c0_12, %c0_13] : memref<512x1024xbf16, #tpu.memory_space<vmem>>, vector<512x1024xbf16>
    %cst_14 = arith.constant dense<0.000000e+00> : vector<256x1024xf32>
    %20 = tpu.matmul %18, %19, %cst_14 {dimension_numbers = #tpu.dot_dimension_numbers<[1], [0], [0], [1], [0, 0, 1, 1], [], []>} : vector<256x512xbf16>, vector<512x1024xbf16>, vector<256x1024xf32> -> vector<256x1024xf32>
    %c0_15 = arith.constant 0 : index
    %c0_16 = arith.constant 0 : index
    %21 = vector.load %arg7[%c0_15, %c0_16] : memref<1x1024xf32, #tpu.memory_space<vmem>>, vector<1x1024xf32>
    %22 = vector.broadcast %21 : vector<1x1024xf32> to vector<256x1024xf32>
    %23 = arith.addf %20, %22 : vector<256x1024xf32>
    %cst_17 = arith.constant 2.000000e-01 : f32
    %24 = vector.broadcast %cst_17 : f32 to vector<256x1024xf32>
    %25 = arith.mulf %24, %23 : vector<256x1024xf32>
    %26 = arith.maximumf %23, %25 : vector<256x1024xf32>
    %27 = arith.truncf %26 : vector<256x1024xf32> to vector<256x1024xbf16>
    %c0_18 = arith.constant 0 : index
    %c0_19 = arith.constant 0 : index
    %28 = vector.load %arg8[%c0_18, %c0_19] : memref<1024x128xbf16, #tpu.memory_space<vmem>>, vector<1024x128xbf16>
    %cst_20 = arith.constant dense<0.000000e+00> : vector<256x128xf32>
    %29 = tpu.matmul %27, %28, %cst_20 {dimension_numbers = #tpu.dot_dimension_numbers<[1], [0], [0], [1], [0, 0, 1, 1], [], []>} : vector<256x1024xbf16>, vector<1024x128xbf16>, vector<256x128xf32> -> vector<256x128xf32>
    %c0_21 = arith.constant 0 : index
    %c0_22 = arith.constant 0 : index
    %30 = vector.load %arg9[%c0_21, %c0_22] : memref<1x128xf32, #tpu.memory_space<vmem>>, vector<1x128xf32>
    %31 = vector.broadcast %30 : vector<1x128xf32> to vector<256x128xf32>
    %32 = arith.addf %29, %31 : vector<256x128xf32>
    %33 = math.tanh %32 : vector<256x128xf32>
    %c0_23 = arith.constant 0 : index
    %c0_24 = arith.constant 0 : index
    %34 = vector.load %arg10[%c0_23, %c0_24] : memref<256x128xf32, #tpu.memory_space<vmem>>, vector<256x128xf32>
    tpu.vector_store %arg10[%c0_23, %c0_24], %33 {strides = array<i32>} : memref<256x128xf32, #tpu.memory_space<vmem>>, vector<256x128xf32>,
    return
  }
  func.func @transform_0(%arg0: i32) -> (i32, i32) {
    %c0_i32 = arith.constant 0 : i32
    %c0_i32_0 = arith.constant 0 : i32
    return %arg0, %c0_i32 : i32, i32
  }
  func.func @transform_1(%arg0: i32) -> (i32, i32) {
    %c0_i32 = arith.constant 0 : i32
    %c0_i32_0 = arith.constant 0 : i32
    %c0_i32_1 = arith.constant 0 : i32
    return %c0_i32, %c0_i32_0 : i32, i32
  }
  func.func @transform_2(%arg0: i32) -> (i32, i32) {
    %c0_i32 = arith.constant 0 : i32
    %c0_i32_0 = arith.constant 0 : i32
    %c0_i32_1 = arith.constant 0 : i32
    return %c0_i32, %c0_i32_0 : i32, i32
  }
  func.func @transform_3(%arg0: i32) -> (i32, i32) {
    %c0_i32 = arith.constant 0 : i32
    %c0_i32_0 = arith.constant 0 : i32
    %c0_i32_1 = arith.constant 0 : i32
    return %c0_i32, %c0_i32_0 : i32, i32
  }
  func.func @transform_4(%arg0: i32) -> (i32, i32) {
    %c0_i32 = arith.constant 0 : i32
    %c0_i32_0 = arith.constant 0 : i32
    %c0_i32_1 = arith.constant 0 : i32
    return %c0_i32, %c0_i32_0 : i32, i32
  }
  func.func @transform_5(%arg0: i32) -> (i32, i32) {
    %c0_i32 = arith.constant 0 : i32
    %c0_i32_0 = arith.constant 0 : i32
    %c0_i32_1 = arith.constant 0 : i32
    return %c0_i32, %c0_i32_0 : i32, i32
  }
  func.func @transform_6(%arg0: i32) -> (i32, i32) {
    %c0_i32 = arith.constant 0 : i32
    %c0_i32_0 = arith.constant 0 : i32
    %c0_i32_1 = arith.constant 0 : i32
    return %c0_i32, %c0_i32_0 : i32, i32
  }
  func.func @transform_7(%arg0: i32) -> (i32, i32) {
    %c0_i32 = arith.constant 0 : i32
    %c0_i32_0 = arith.constant 0 : i32
    %c0_i32_1 = arith.constant 0 : i32
    return %c0_i32, %c0_i32_0 : i32, i32
  }
  func.func @transform_8(%arg0: i32) -> (i32, i32) {
    %c0_i32 = arith.constant 0 : i32
    %c0_i32_0 = arith.constant 0 : i32
    %c0_i32_1 = arith.constant 0 : i32
    return %c0_i32, %c0_i32_0 : i32, i32
  }
  func.func @transform_9(%arg0: i32) -> (i32, i32) {
    %c0_i32 = arith.constant 0 : i32
    %c0_i32_0 = arith.constant 0 : i32
    return %arg0, %c0_i32 : i32, i32
  }
}

</mosaic_0001>

<llo_original>
// kernel: tpu_custom_call.1
$region0: #{tpu_custom_call.1}
  #allocation0 [shape = 'u32[]', space=smem, size = 0x4, offset = 0x4, fixed_abs, tag = 'smem constant byte address 0x4 - core index']
  #allocation1 [shape = 'u32[144,128]{1,0:T(1,128)}', space=vmem, size = 0x12000, scoped, tag = 'internal scratch']
  %s0 = inlined_call_operand.vmem [shape: bf16[256,64], index: 0, kind: input, shape index: {}]
  %s1 = inlined_call_operand.vmem [shape: bf16[64,256], index: 1, kind: input, shape index: {}]
  %s2 = inlined_call_operand.vmem [shape: f32[1,256], index: 2, kind: input, shape index: {}]
  %s3 = inlined_call_operand.hbm [shape: bf16[256,512], index: 3, kind: input, shape index: {}]
  %s4 = inlined_call_operand.vmem [shape: f32[1,512], index: 4, kind: input, shape index: {}]
  %s5 = inlined_call_operand.hbm [shape: bf16[512,1024], index: 5, kind: input, shape index: {}]
  %s6 = inlined_call_operand.vmem [shape: f32[1,1024], index: 6, kind: input, shape index: {}]
  %s7 = inlined_call_operand.hbm [shape: bf16[1024,128], index: 7, kind: input, shape index: {}]
  %s8 = inlined_call_operand.vmem [shape: f32[1,128], index: 8, kind: input, shape index: {}]
  %s9 = inlined_call_operand.hbm [shape: f32[256,128], index: 9, kind: output, shape index: {}]
  %s10 = sld [smem:[#allocation0]]
  $region58: #{tpu_custom_call.1} parent=0
    _
  %s12 = ssub.s32 1, %s10
  %s13 = scalar_select 0, %s12, %s10
  $region1: #{tpu_custom_call.1} parent=0
    #allocation2 [shape = 'u8[262144]{0}', space=vmem, size = 0x40000, scoped, tag = 'input window, operand 3, single buffered']
    #allocation3 [shape = 's32[1]{0}', space=sflag, size = 0x4, scoped, tag = 'scoped memory for tpu_custom_call.1']
    #allocation4 [shape = 's32[1]{0}', space=sflag, size = 0x4, scoped, tag = 'scoped memory for tpu_custom_call.1']
    #allocation5 [shape = 'u8[1048576]{0}', space=vmem, size = 0x100000, scoped, tag = 'input window, operand 5, single buffered']
    #allocation6 [shape = 's32[1]{0}', space=sflag, size = 0x4, scoped, tag = 'scoped memory for tpu_custom_call.1']
    #allocation7 [shape = 'u8[262144]{0}', space=vmem, size = 0x40000, scoped, tag = 'input window, operand 7, single buffered']
    #allocation8 [shape = 'u8[131072]{0}', space=vmem, size = 0x20000, scoped, tag = 'output window, operand 0, single buffered']
    %14 = vsyncpa [#allocation3], 0
    %15 = vsyncpa [#allocation6], 0
    %16 = vsyncpa [#allocation4], 0
    // Predicated region
    $region2: #{tpu_custom_call.1} parent=1 // pred_check
      _
    $region3: #{tpu_custom_call.1} parent=1 // pred_check_branch
      %18 = sbr.rel (0) target = $region5
    $region4: #{tpu_custom_call.1} parent=1 // pred_region
      _
    $region5: #{tpu_custom_call.1} parent=1 // pred_fallthru
      _
    // Predicated region
    $region6: #{tpu_custom_call.1} parent=1 // pred_check
      _
    $region7: #{tpu_custom_call.1} parent=1 // pred_check_branch
      %20 = sbr.rel (0) target = $region9
    $region8: #{tpu_custom_call.1} parent=1 // pred_region
      _
    $region9: #{tpu_custom_call.1} parent=1 // pred_fallthru
      _
    // Predicated region
    $region10: #{tpu_custom_call.1} parent=1 // pred_check
      _
    $region11: #{tpu_custom_call.1} parent=1 // pred_check_branch
      %22 = sbr.rel (0) target = $region13
    $region12: #{tpu_custom_call.1} parent=1 // pred_region
      _
    $region13: #{tpu_custom_call.1} parent=1 // pred_fallthru
      _
    // Predicated region
    $region14: #{tpu_custom_call.1} parent=1 // pred_check
      _
    $region15: #{tpu_custom_call.1} parent=1 // pred_check_branch
      %24 = sbr.rel (0) target = $region17
    $region16: #{tpu_custom_call.1} parent=1 // pred_region
      %s26 = ssub.s32 8192, 8192
      %27 = vsyncadd [#allocation3], %s26
      %s28 = sshll.u32 [#allocation2], 4
      %s29 = int_to_ptr.vmem [resolvable:$true] %s28
      %34 = dma.hbm_to_vmem [thread:$0]  %s3, 8192, %s29, [#allocation3], 256, 256, 16
    $region17: #{tpu_custom_call.1} parent=1 // pred_fallthru
      _
    // Predicated region
    $region18: #{tpu_custom_call.1} parent=1 // pred_check
      _
    $region19: #{tpu_custom_call.1} parent=1 // pred_check_branch
      %36 = sbr.rel (0) target = $region21
    $region20: #{tpu_custom_call.1} parent=1 // pred_region
      _
    $region21: #{tpu_custom_call.1} parent=1 // pred_fallthru
      _
    // Predicated region
    $region22: #{tpu_custom_call.1} parent=1 // pred_check
      _
    $region23: #{tpu_custom_call.1} parent=1 // pred_check_branch
      %38 = sbr.rel (0) target = $region25
    $region24: #{tpu_custom_call.1} parent=1 // pred_region
      %s40 = ssub.s32 32768, 32768
      %41 = vsyncadd [#allocation6], %s40
      %s42 = sshll.u32 [#allocation5], 4
      %s43 = int_to_ptr.vmem [resolvable:$true] %s42
      %48 = dma.hbm_to_vmem [thread:$0]  %s5, 32768, %s43, [#allocation6], 512, 512, 32
    $region25: #{tpu_custom_call.1} parent=1 // pred_fallthru
      _
    // Predicated region
    $region26: #{tpu_custom_call.1} parent=1 // pred_check
      _
    $region27: #{tpu_custom_call.1} parent=1 // pred_check_branch
      %50 = sbr.rel (0) target = $region29
    $region28: #{tpu_custom_call.1} parent=1 // pred_region
      _
    $region29: #{tpu_custom_call.1} parent=1 // pred_fallthru
      _
    // Predicated region
    $region30: #{tpu_custom_call.1} parent=1 // pred_check
      _
    $region31: #{tpu_custom_call.1} parent=1 // pred_check_branch
      %52 = sbr.rel (0) target = $region33
    $region32: #{tpu_custom_call.1} parent=1 // pred_region
      %s54 = ssub.s32 8192, 8192
      %55 = vsyncadd [#allocation6], %s54
      %s56 = sshll.u32 [#allocation7], 4
      %s57 = int_to_ptr.vmem [resolvable:$true] %s56
      %62 = dma.hbm_to_vmem [thread:$0]  %s7, 8192, %s57, [#allocation6], 64, 64, 4
    $region33: #{tpu_custom_call.1} parent=1 // pred_fallthru
      _
    // Predicated region
    $region34: #{tpu_custom_call.1} parent=1 // pred_check
      _
    $region35: #{tpu_custom_call.1} parent=1 // pred_check_branch
      %64 = sbr.rel (0) target = $region37
    $region36: #{tpu_custom_call.1} parent=1 // pred_region
      _
    $region37: #{tpu_custom_call.1} parent=1 // pred_fallthru
      _
    // Predicated region
    $region38: #{tpu_custom_call.1} parent=1 // pred_check
      _
    $region39: #{tpu_custom_call.1} parent=1 // pred_check_branch
      %66 = sbr.rel (0) target = $region41
    $region40: #{tpu_custom_call.1} parent=1 // pred_region
      %67 = dma.done [#allocation3], 8192
    $region41: #{tpu_custom_call.1} parent=1 // pred_fallthru
      _
    // Predicated region
    $region42: #{tpu_custom_call.1} parent=1 // pred_check
      _
    $region43: #{tpu_custom_call.1} parent=1 // pred_check_branch
      %69 = sbr.rel (0) target = $region45
    $region44: #{tpu_custom_call.1} parent=1 // pred_region
      %70 = dma.done [#allocation6], 32768
    $region45: #{tpu_custom_call.1} parent=1 // pred_fallthru
      _
    // Predicated region
    $region46: #{tpu_custom_call.1} parent=1 // pred_check
      _
    $region47: #{tpu_custom_call.1} parent=1 // pred_check_branch
      %72 = sbr.rel (0) target = $region49
    $region48: #{tpu_custom_call.1} parent=1 // pred_region
      %73 = dma.done [#allocation6], 8192
    $region49: #{tpu_custom_call.1} parent=1 // pred_fallthru
      _
    %v75 = vld [vmem:[%s0] sm:$0xf]
    %v76 = vld [vmem:[%s0 + $0x4] sm:$0xf]
    %v77 = vld [vmem:[%s0 + $0x8] sm:$0xf]
    %v78 = vld [vmem:[%s0 + $0xc] sm:$0xf]
    %v79 = vld [vmem:[%s0 + $0x10] sm:$0xf]
    %v80 = vld [vmem:[%s0 + $0x14] sm:$0xf]
    %v81 = vld [vmem:[%s0 + $0x18] sm:$0xf]
    %v82 = vld [vmem:[%s0 + $0x1c] sm:$0xf]
    %v83 = vld [vmem:[%s0 + $0x20] sm:$0xf]
    %v84 = vld [vmem:[%s0 + $0x24] sm:$0xf]
    %v85 = vld [vmem:[%s0 + $0x28] sm:$0xf]
    %v86 = vld [vmem:[%s0 + $0x2c] sm:$0xf]
    %v87 = vld [vmem:[%s0 + $0x30] sm:$0xf]
    %v88 = vld [vmem:[%s0 + $0x34] sm:$0xf]
    %v89 = vld [vmem:[%s0 + $0x38] sm:$0xf]
    %v90 = vld [vmem:[%s0 + $0x3c] sm:$0xf]
    %v91 = vld [vmem:[%s0 + $0x40] sm:$0xf]
    %v92 = vld [vmem:[%s0 + $0x44] sm:$0xf]
    %v93 = vld [vmem:[%s0 + $0x48] sm:$0xf]
    %v94 = vld [vmem:[%s0 + $0x4c] sm:$0xf]
    %v95 = vld [vmem:[%s0 + $0x50] sm:$0xf]
    %v96 = vld [vmem:[%s0 + $0x54] sm:$0xf]
    %v97 = vld [vmem:[%s0 + $0x58] sm:$0xf]
    %v98 = vld [vmem:[%s0 + $0x5c] sm:$0xf]
    %v99 = vld [vmem:[%s0 + $0x60] sm:$0xf]
    %v100 = vld [vmem:[%s0 + $0x64] sm:$0xf]
    %v101 = vld [vmem:[%s0 + $0x68] sm:$0xf]
    %v102 = vld [vmem:[%s0 + $0x6c] sm:$0xf]
    %v103 = vld [vmem:[%s0 + $0x70] sm:$0xf]
    %v104 = vld [vmem:[%s0 + $0x74] sm:$0xf]
    %v105 = vld [vmem:[%s0 + $0x78] sm:$0xf]
    %v106 = vld [vmem:[%s0 + $0x7c] sm:$0xf]
    %v107 = vld [vmem:[%s1] sm:$0xff]
    %v108 = vld [vmem:[%s1 + $0x8] sm:$0xff]
    %v109 = vld [vmem:[%s1 + $0x10] sm:$0xff]
    %v110 = vld [vmem:[%s1 + $0x18] sm:$0xff]
    %v111 = vld [vmem:[%s1 + $0x20] sm:$0xff]
    %v112 = vld [vmem:[%s1 + $0x28] sm:$0xff]
    %v113 = vld [vmem:[%s1 + $0x30] sm:$0xff]
    %v114 = vld [vmem:[%s1 + $0x38] sm:$0xff]
    %v115 = vld [vmem:[%s2] sm:$0x3]
    %v117 = vlaneseq
    %v118 = vshrl.u32 %v117, 7
    %v119 = vsub.s32 0, %v118
    %v120 = vrot.slane %v115, %v119
    %v121 = vlaneseq
    %v122 = vshrl.u32 %v121, 7
    %v123 = vsub.s32 1, %v122
    %v124 = vrot.slane %v115, %v123
    %v159 = vunpack.c.l.b16 %v75
    %v160 = vunpack.c.l.b16 %v76
    %v161 = vunpack.c.l.b16 %v77
    %v162 = vunpack.c.l.b16 %v78
    %v163 = vunpack.c.l.b16 %v79
    %v164 = vunpack.c.l.b16 %v80
    %v165 = vunpack.c.l.b16 %v81
    %v166 = vunpack.c.l.b16 %v82
    %v167 = vunpack.c.l.b16 %v83
    %v168 = vunpack.c.l.b16 %v84
    %v169 = vunpack.c.l.b16 %v85
    %v170 = vunpack.c.l.b16 %v86
    %v171 = vunpack.c.l.b16 %v87
    %v172 = vunpack.c.l.b16 %v88
    %v173 = vunpack.c.l.b16 %v89
    %v174 = vunpack.c.l.b16 %v90
    %v175 = vunpack.c.l.b16 %v91
    %v176 = vunpack.c.l.b16 %v92
    %v177 = vunpack.c.l.b16 %v93
    %v178 = vunpack.c.l.b16 %v94
    %v179 = vunpack.c.l.b16 %v95
    %v180 = vunpack.c.l.b16 %v96
    %v181 = vunpack.c.l.b16 %v97
    %v182 = vunpack.c.l.b16 %v98
    %v183 = vunpack.c.l.b16 %v99
    %v184 = vunpack.c.l.b16 %v100
    %v185 = vunpack.c.l.b16 %v101
    %v186 = vunpack.c.l.b16 %v102
    %v187 = vunpack.c.l.b16 %v103
    %v188 = vunpack.c.l.b16 %v104
    %v189 = vunpack.c.l.b16 %v105
    %v190 = vunpack.c.l.b16 %v106
    %v191 = vpack.c.b16 %v160, %v159
    %v192 = vpack.c.b16 %v162, %v161
    %v193 = vpack.c.b16 %v164, %v163
    %v194 = vpack.c.b16 %v166, %v165
    %v195 = vpack.c.b16 %v168, %v167
    %v196 = vpack.c.b16 %v170, %v169
    %v197 = vpack.c.b16 %v172, %v171
    %v198 = vpack.c.b16 %v174, %v173
    %v199 = vpack.c.b16 %v176, %v175
    %v200 = vpack.c.b16 %v178, %v177
    %v201 = vpack.c.b16 %v180, %v179
    %v202 = vpack.c.b16 %v182, %v181
    %v203 = vpack.c.b16 %v184, %v183
    %v204 = vpack.c.b16 %v186, %v185
    %v205 = vpack.c.b16 %v188, %v187
    %v206 = vpack.c.b16 %v190, %v189
    %v215 = vunpack.c.l.b16 %v107
    %v216 = vunpack.c.h.b16 %v107
    %v217 = vunpack.c.l.b16 %v108
    %v218 = vunpack.c.h.b16 %v108
    %v219 = vunpack.c.l.b16 %v109
    %v220 = vunpack.c.h.b16 %v109
    %v221 = vunpack.c.l.b16 %v110
    %v222 = vunpack.c.h.b16 %v110
    %v223 = vunpack.c.l.b16 %v111
    %v224 = vunpack.c.h.b16 %v111
    %v225 = vunpack.c.l.b16 %v112
    %v226 = vunpack.c.h.b16 %v112
    %v227 = vunpack.c.l.b16 %v113
    %v228 = vunpack.c.h.b16 %v113
    %v229 = vunpack.c.l.b16 %v114
    %v230 = vunpack.c.h.b16 %v114
    %v231 = vpack.c.b16 %v217, %v215
    %v232 = vpack.c.b16 %v218, %v216
    %v233 = vpack.c.b16 %v221, %v219
    %v234 = vpack.c.b16 %v222, %v220
    %v235 = vpack.c.b16 %v225, %v223
    %v236 = vpack.c.b16 %v226, %v224
    %v237 = vpack.c.b16 %v229, %v227
    %v238 = vpack.c.b16 %v230, %v228
    %vm247 = vcmask 523264
    %v249 = vsel %vm247, %v191, 0
    %v252 = vsel %vm247, %v192, 0
    %v255 = vsel %vm247, %v193, 0
    %v258 = vsel %vm247, %v194, 0
    %v261 = vsel %vm247, %v195, 0
    %v264 = vsel %vm247, %v196, 0
    %v267 = vsel %vm247, %v197, 0
    %v270 = vsel %vm247, %v198, 0
    %v273 = vsel %vm247, %v199, 0
    %v276 = vsel %vm247, %v200, 0
    %v279 = vsel %vm247, %v201, 0
    %v282 = vsel %vm247, %v202, 0
    %v285 = vsel %vm247, %v203, 0
    %v288 = vsel %vm247, %v204, 0
    %v291 = vsel %vm247, %v205, 0
    %v294 = vsel %vm247, %v206, 0
    %296 = vmatprep.subr.bf16.mxu0 %v232
    %297 = vmatpush1.bf16.msra.mxu0 %v231
    %298 = vmatprep.subr.bf16.mxu0 %v234
    %299 = vmatpush1.bf16.msra.mxu0 %v233
    %300 = vmatprep.subr.bf16.mxu0 %v236
    %301 = vmatpush1.bf16.msra.mxu0 %v235
    %302 = vmatprep.subr.bf16.mxu0 %v238
    %303 = vmatpush1.bf16.msra.mxu0 %v237
    %304 = vmatprep.subr.bf16.mxu0 0
    %305 = vmatpush1.bf16.msra.mxu0 0
    %306 = vmatprep.subr.bf16.mxu0 0
    %307 = vmatpush1.bf16.msra.mxu0 0
    %308 = vmatprep.subr.bf16.mxu0 0
    %309 = vmatpush1.bf16.msra.mxu0 0
    %310 = vmatprep.subr.bf16.mxu0 0
    %311 = vmatpush1.bf16.msra.mxu0 0
    %312 = vmatprep.subr.bf16.mxu0 0
    %313 = vmatpush1.bf16.msra.mxu0 0
    %314 = vmatprep.subr.bf16.mxu0 0
    %315 = vmatpush1.bf16.msra.mxu0 0
    %316 = vmatprep.subr.bf16.mxu0 0
    %317 = vmatpush1.bf16.msra.mxu0 0
    %318 = vmatprep.subr.bf16.mxu0 0
    %319 = vmatpush1.bf16.msra.mxu0 0
    %320 = vmatprep.subr.bf16.mxu0 0
    %321 = vmatpush1.bf16.msra.mxu0 0
    %322 = vmatprep.subr.bf16.mxu0 0
    %323 = vmatpush1.bf16.msra.mxu0 0
    %324 = vmatprep.subr.bf16.mxu0 0
    %325 = vmatpush1.bf16.msra.mxu0 0
    %326 = vmatprep.subr.bf16.mxu0 0
    %327 = vmatpush1.bf16.msra.mxu0 0
    %328 = vmatprep.mubr.bf16.mxu0 0
    %329 = vmatmul.mubr.bf16.gmra.mrb[0].mxu0 %v249
    %v330 = vpop.f32.mrb[0].mxu0
    %v331 = vadd.f32 %v120, %v330
    %v332 = vpop.f32.mrb[0].mxu0
    %v333 = vadd.f32 %v124, %v332
    %v334 = vpop.f32.mrb[0].mxu0
    %v335 = vadd.f32 %v120, %v334
    %v336 = vpop.f32.mrb[0].mxu0
    %v337 = vadd.f32 %v124, %v336
    %338 = vmatprep.mubr.bf16.mxu0 0
    %339 = vmatmul.mubr.bf16.gmra.mrb[0].mxu0 %v252
    %v340 = vpop.f32.mrb[0].mxu0
    %v341 = vadd.f32 %v120, %v340
    %v342 = vpop.f32.mrb[0].mxu0
    %v343 = vadd.f32 %v124, %v342
    %v344 = vpop.f32.mrb[0].mxu0
    %v345 = vadd.f32 %v120, %v344
    %v346 = vpop.f32.mrb[0].mxu0
    %v347 = vadd.f32 %v124, %v346
    %348 = vmatprep.mubr.bf16.mxu0 0
    %349 = vmatmul.mubr.bf16.gmra.mrb[0].mxu0 %v255
    %v350 = vpop.f32.mrb[0].mxu0
    %v351 = vadd.f32 %v120, %v350
    %v352 = vpop.f32.mrb[0].mxu0
    %v353 = vadd.f32 %v124, %v352
    %v354 = vpop.f32.mrb[0].mxu0
    %v355 = vadd.f32 %v120, %v354
    %v356 = vpop.f32.mrb[0].mxu0
    %v357 = vadd.f32 %v124, %v356
    %358 = vmatprep.mubr.bf16.mxu0 0
    %359 = vmatmul.mubr.bf16.gmra.mrb[0].mxu0 %v258
    %v360 = vpop.f32.mrb[0].mxu0
    %v361 = vadd.f32 %v120, %v360
    %v362 = vpop.f32.mrb[0].mxu0
    %v363 = vadd.f32 %v124, %v362
    %v364 = vpop.f32.mrb[0].mxu0
    %v365 = vadd.f32 %v120, %v364
    %v366 = vpop.f32.mrb[0].mxu0
    %v367 = vadd.f32 %v124, %v366
    %368 = vmatprep.mubr.bf16.mxu0 0
    %369 = vmatmul.mubr.bf16.gmra.mrb[0].mxu0 %v261
    %v370 = vpop.f32.mrb[0].mxu0
    %v371 = vadd.f32 %v120, %v370
    %v372 = vpop.f32.mrb[0].mxu0
    %v373 = vadd.f32 %v124, %v372
    %v374 = vpop.f32.mrb[0].mxu0
    %v375 = vadd.f32 %v120, %v374
    %v376 = vpop.f32.mrb[0].mxu0
    %v377 = vadd.f32 %v124, %v376
    %378 = vmatprep.mubr.bf16.mxu0 0
    %379 = vmatmul.mubr.bf16.gmra.mrb[0].mxu0 %v264
    %v380 = vpop.f32.mrb[0].mxu0
    %v381 = vadd.f32 %v120, %v380
    %v382 = vpop.f32.mrb[0].mxu0
    %v383 = vadd.f32 %v124, %v382
    %v384 = vpop.f32.mrb[0].mxu0
    %v385 = vadd.f32 %v120, %v384
    %v386 = vpop.f32.mrb[0].mxu0
    %v387 = vadd.f32 %v124, %v386
    %388 = vmatprep.mubr.bf16.mxu0 0
    %389 = vmatmul.mubr.bf16.gmra.mrb[0].mxu0 %v267
    %v390 = vpop.f32.mrb[0].mxu0
    %v391 = vadd.f32 %v120, %v390
    %v392 = vpop.f32.mrb[0].mxu0
    %v393 = vadd.f32 %v124, %v392
    %v394 = vpop.f32.mrb[0].mxu0
    %v395 = vadd.f32 %v120, %v394
    %v396 = vpop.f32.mrb[0].mxu0
    %v397 = vadd.f32 %v124, %v396
    %398 = vmatprep.mubr.bf16.mxu0 0
    %399 = vmatmul.mubr.bf16.gmra.mrb[0].mxu0 %v270
    %v400 = vpop.f32.mrb[0].mxu0
    %v401 = vadd.f32 %v120, %v400
    %v402 = vpop.f32.mrb[0].mxu0
    %v403 = vadd.f32 %v124, %v402
    %v404 = vpop.f32.mrb[0].mxu0
    %v405 = vadd.f32 %v120, %v404
    %v406 = vpop.f32.mrb[0].mxu0
    %v407 = vadd.f32 %v124, %v406
    %408 = vmatprep.mubr.bf16.mxu0 0
    %409 = vmatmul.mubr.bf16.gmra.mrb[0].mxu0 %v273
    %v410 = vpop.f32.mrb[0].mxu0
    %v411 = vadd.f32 %v120, %v410
    %v412 = vpop.f32.mrb[0].mxu0
    %v413 = vadd.f32 %v124, %v412
    %v414 = vpop.f32.mrb[0].mxu0
    %v415 = vadd.f32 %v120, %v414
    %v416 = vpop.f32.mrb[0].mxu0
    %v417 = vadd.f32 %v124, %v416
    %418 = vmatprep.mubr.bf16.mxu0 0
    %419 = vmatmul.mubr.bf16.gmra.mrb[0].mxu0 %v276
    %v420 = vpop.f32.mrb[0].mxu0
    %v421 = vadd.f32 %v120, %v420
    %v422 = vpop.f32.mrb[0].mxu0
    %v423 = vadd.f32 %v124, %v422
    %v424 = vpop.f32.mrb[0].mxu0
    %v425 = vadd.f32 %v120, %v424
    %v426 = vpop.f32.mrb[0].mxu0
    %v427 = vadd.f32 %v124, %v426
    %428 = vmatprep.mubr.bf16.mxu0 0
    %429 = vmatmul.mubr.bf16.gmra.mrb[0].mxu0 %v279
    %v430 = vpop.f32.mrb[0].mxu0
    %v431 = vadd.f32 %v120, %v430
    %v432 = vpop.f32.mrb[0].mxu0
    %v433 = vadd.f32 %v124, %v432
    %v434 = vpop.f32.mrb[0].mxu0
    %v435 = vadd.f32 %v120, %v434
    %v436 = vpop.f32.mrb[0].mxu0
    %v437 = vadd.f32 %v124, %v436
    %438 = vmatprep.mubr.bf16.mxu0 0
    %439 = vmatmul.mubr.bf16.gmra.mrb[0].mxu0 %v282
    %v440 = vpop.f32.mrb[0].mxu0
    %v441 = vadd.f32 %v120, %v440
    %v442 = vpop.f32.mrb[0].mxu0
    %v443 = vadd.f32 %v124, %v442
    %v444 = vpop.f32.mrb[0].mxu0
    %v445 = vadd.f32 %v120, %v444
    %v446 = vpop.f32.mrb[0].mxu0
    %v447 = vadd.f32 %v124, %v446
    %448 = vmatprep.mubr.bf16.mxu0 0
    %449 = vmatmul.mubr.bf16.gmra.mrb[0].mxu0 %v285
    %v450 = vpop.f32.mrb[0].mxu0
    %v451 = vadd.f32 %v120, %v450
    %v452 = vpop.f32.mrb[0].mxu0
    %v453 = vadd.f32 %v124, %v452
    %v454 = vpop.f32.mrb[0].mxu0
    %v455 = vadd.f32 %v120, %v454
    %v456 = vpop.f32.mrb[0].mxu0
    %v457 = vadd.f32 %v124, %v456
    %458 = vmatprep.mubr.bf16.mxu0 0
    %459 = vmatmul.mubr.bf16.gmra.mrb[0].mxu0 %v288
    %v460 = vpop.f32.mrb[0].mxu0
    %v461 = vadd.f32 %v120, %v460
    %v462 = vpop.f32.mrb[0].mxu0
    %v463 = vadd.f32 %v124, %v462
    %v464 = vpop.f32.mrb[0].mxu0
    %v465 = vadd.f32 %v120, %v464
    %v466 = vpop.f32.mrb[0].mxu0
    %v467 = vadd.f32 %v124, %v466
    %468 = vmatprep.mubr.bf16.mxu0 0
    %469 = vmatmul.mubr.bf16.gmra.mrb[0].mxu0 %v291
    %v470 = vpop.f32.mrb[0].mxu0
    %v471 = vadd.f32 %v120, %v470
    %v472 = vpop.f32.mrb[0].mxu0
    %v473 = vadd.f32 %v124, %v472
    %v474 = vpop.f32.mrb[0].mxu0
    %v475 = vadd.f32 %v120, %v474
    %v476 = vpop.f32.mrb[0].mxu0
    %v477 = vadd.f32 %v124, %v476
    %478 = vmatprep.mubr.bf16.mxu0 0
    %479 = vmatmul.mubr.bf16.gmra.mrb[0].mxu0 %v294
    %v480 = vpop.f32.mrb[0].mxu0
    %v481 = vadd.f32 %v120, %v480
    %v482 = vpop.f32.mrb[0].mxu0
    %v483 = vadd.f32 %v124, %v482
    %v484 = vpop.f32.mrb[0].mxu0
    %v485 = vadd.f32 %v120, %v484
    %v486 = vpop.f32.mrb[0].mxu0
    %v487 = vadd.f32 %v124, %v486
    %488 = vdwg.mxu0
    %v489 = vmul.f32 %v331, 0.2
    %v490 = vmul.f32 %v333, 0.2
    %v491 = vmul.f32 %v335, 0.2
    %v492 = vmul.f32 %v337, 0.2
    %v493 = vmul.f32 %v341, 0.2
    %v494 = vmul.f32 %v343, 0.2
    %v495 = vmul.f32 %v345, 0.2
    %v496 = vmul.f32 %v347, 0.2
    %v497 = vmul.f32 %v351, 0.2
    %v498 = vmul.f32 %v353, 0.2
    %v499 = vmul.f32 %v355, 0.2
    %v500 = vmul.f32 %v357, 0.2
    %v501 = vmul.f32 %v361, 0.2
    %v502 = vmul.f32 %v363, 0.2
    %v503 = vmul.f32 %v365, 0.2
    %v504 = vmul.f32 %v367, 0.2
    %v505 = vmul.f32 %v371, 0.2
    %v506 = vmul.f32 %v373, 0.2
    %v507 = vmul.f32 %v375, 0.2
    %v508 = vmul.f32 %v377, 0.2
    %v509 = vmul.f32 %v381, 0.2
    %v510 = vmul.f32 %v383, 0.2
    %v511 = vmul.f32 %v385, 0.2
    %v512 = vmul.f32 %v387, 0.2
    %v513 = vmul.f32 %v391, 0.2
    %v514 = vmul.f32 %v393, 0.2
    %v515 = vmul.f32 %v395, 0.2
    %v516 = vmul.f32 %v397, 0.2
    %v517 = vmul.f32 %v401, 0.2
    %v518 = vmul.f32 %v403, 0.2
    %v519 = vmul.f32 %v405, 0.2
    %v520 = vmul.f32 %v407, 0.2
    %v521 = vmul.f32 %v411, 0.2
    %v522 = vmul.f32 %v413, 0.2
    %v523 = vmul.f32 %v415, 0.2
    %v524 = vmul.f32 %v417, 0.2
    %v525 = vmul.f32 %v421, 0.2
    %v526 = vmul.f32 %v423, 0.2
    %v527 = vmul.f32 %v425, 0.2
    %v528 = vmul.f32 %v427, 0.2
    %v529 = vmul.f32 %v431, 0.2
    %v530 = vmul.f32 %v433, 0.2
    %v531 = vmul.f32 %v435, 0.2
    %v532 = vmul.f32 %v437, 0.2
    %v533 = vmul.f32 %v441, 0.2
    %v534 = vmul.f32 %v443, 0.2
    %v535 = vmul.f32 %v445, 0.2
    %v536 = vmul.f32 %v447, 0.2
    %v537 = vmul.f32 %v451, 0.2
    %v538 = vmul.f32 %v453, 0.2
    %v539 = vmul.f32 %v455, 0.2
    %v540 = vmul.f32 %v457, 0.2
    %v541 = vmul.f32 %v461, 0.2
    %v542 = vmul.f32 %v463, 0.2
    %v543 = vmul.f32 %v465, 0.2
    %v544 = vmul.f32 %v467, 0.2
    %v545 = vmul.f32 %v471, 0.2
    %v546 = vmul.f32 %v473, 0.2
    %v547 = vmul.f32 %v475, 0.2
    %v548 = vmul.f32 %v477, 0.2
    %v549 = vmul.f32 %v481, 0.2
    %v550 = vmul.f32 %v483, 0.2
    %v551 = vmul.f32 %v485, 0.2
    %v552 = vmul.f32 %v487, 0.2
    %v553 = vmax.f32 %v331, %v489
    %v554 = vmax.f32 %v333, %v490
    %v555 = vmax.f32 %v335, %v491
    %v556 = vmax.f32 %v337, %v492
    %v557 = vmax.f32 %v341, %v493
    %v558 = vmax.f32 %v343, %v494
    %v559 = vmax.f32 %v345, %v495
    %v560 = vmax.f32 %v347, %v496
    %v561 = vmax.f32 %v351, %v497
    %v562 = vmax.f32 %v353, %v498
    %v563 = vmax.f32 %v355, %v499
    %v564 = vmax.f32 %v357, %v500
    %v565 = vmax.f32 %v361, %v501
    %v566 = vmax.f32 %v363, %v502
    %v567 = vmax.f32 %v365, %v503
    %v568 = vmax.f32 %v367, %v504
    %v569 = vmax.f32 %v371, %v505
    %v570 = vmax.f32 %v373, %v506
    %v571 = vmax.f32 %v375, %v507
    %v572 = vmax.f32 %v377, %v508
    %v573 = vmax.f32 %v381, %v509
    %v574 = vmax.f32 %v383, %v510
    %v575 = vmax.f32 %v385, %v511
    %v576 = vmax.f32 %v387, %v512
    %v577 = vmax.f32 %v391, %v513
    %v578 = vmax.f32 %v393, %v514
    %v579 = vmax.f32 %v395, %v515
    %v580 = vmax.f32 %v397, %v516
    %v581 = vmax.f32 %v401, %v517
    %v582 = vmax.f32 %v403, %v518
    %v583 = vmax.f32 %v405, %v519
    %v584 = vmax.f32 %v407, %v520
    %v585 = vmax.f32 %v411, %v521
    %v586 = vmax.f32 %v413, %v522
    %v587 = vmax.f32 %v415, %v523
    %v588 = vmax.f32 %v417, %v524
    %v589 = vmax.f32 %v421, %v525
    %v590 = vmax.f32 %v423, %v526
    %v591 = vmax.f32 %v425, %v527
    %v592 = vmax.f32 %v427, %v528
    %v593 = vmax.f32 %v431, %v529
    %v594 = vmax.f32 %v433, %v530
    %v595 = vmax.f32 %v435, %v531
    %v596 = vmax.f32 %v437, %v532
    %v597 = vmax.f32 %v441, %v533
    %v598 = vmax.f32 %v443, %v534
    %v599 = vmax.f32 %v445, %v535
    %v600 = vmax.f32 %v447, %v536
    %v601 = vmax.f32 %v451, %v537
    %v602 = vmax.f32 %v453, %v538
    %v603 = vmax.f32 %v455, %v539
    %v604 = vmax.f32 %v457, %v540
    %v605 = vmax.f32 %v461, %v541
    %v606 = vmax.f32 %v463, %v542
    %v607 = vmax.f32 %v465, %v543
    %v608 = vmax.f32 %v467, %v544
    %v609 = vmax.f32 %v471, %v545
    %v610 = vmax.f32 %v473, %v546
    %v611 = vmax.f32 %v475, %v547
    %v612 = vmax.f32 %v477, %v548
    %v613 = vmax.f32 %v481, %v549
    %v614 = vmax.f32 %v483, %v550
    %v615 = vmax.f32 %v485, %v551
    %v616 = vmax.f32 %v487, %v552
    %v617 = vpack.c.bf16 %v555, %v553
    %v618 = vpack.c.bf16 %v556, %v554
    %v619 = vpack.c.bf16 %v559, %v557
    %v620 = vpack.c.bf16 %v560, %v558
    %v621 = vpack.c.bf16 %v563, %v561
    %v622 = vpack.c.bf16 %v564, %v562
    %v623 = vpack.c.bf16 %v567, %v565
    %v624 = vpack.c.bf16 %v568, %v566
    %v625 = vpack.c.bf16 %v571, %v569
    %v626 = vpack.c.bf16 %v572, %v570
    %v627 = vpack.c.bf16 %v575, %v573
    %v628 = vpack.c.bf16 %v576, %v574
    %v629 = vpack.c.bf16 %v579, %v577
    %v630 = vpack.c.bf16 %v580, %v578
    %v631 = vpack.c.bf16 %v583, %v581
    %v632 = vpack.c.bf16 %v584, %v582
    %v633 = vpack.c.bf16 %v587, %v585
    %v634 = vpack.c.bf16 %v588, %v586
    %v635 = vpack.c.bf16 %v591, %v589
    %v636 = vpack.c.bf16 %v592, %v590
    %v637 = vpack.c.bf16 %v595, %v593
    %v638 = vpack.c.bf16 %v596, %v594
    %v639 = vpack.c.bf16 %v599, %v597
    %v640 = vpack.c.bf16 %v600, %v598
    %v641 = vpack.c.bf16 %v603, %v601
    %v642 = vpack.c.bf16 %v604, %v602
    %v643 = vpack.c.bf16 %v607, %v605
    %v644 = vpack.c.bf16 %v608, %v606
    %v645 = vpack.c.bf16 %v611, %v609
    %v646 = vpack.c.bf16 %v612, %v610
    %v647 = vpack.c.bf16 %v615, %v613
    %v648 = vpack.c.bf16 %v616, %v614
    %v649 = vld [vmem:[#allocation2] sm:$0xff]
    %v650 = vld [vmem:[#allocation2 + $0x8] sm:$0xff]
    %v651 = vld [vmem:[#allocation2 + $0x10] sm:$0xff]
    %v652 = vld [vmem:[#allocation2 + $0x18] sm:$0xff]
    %v653 = vld [vmem:[#allocation2 + $0x20] sm:$0xff]
    %v654 = vld [vmem:[#allocation2 + $0x28] sm:$0xff]
    %v655 = vld [vmem:[#allocation2 + $0x30] sm:$0xff]
    %v656 = vld [vmem:[#allocation2 + $0x38] sm:$0xff]
    %v657 = vld [vmem:[#allocation2 + $0x40] sm:$0xff]
    %v658 = vld [vmem:[#allocation2 + $0x48] sm:$0xff]
    %v659 = vld [vmem:[#allocation2 + $0x50] sm:$0xff]
    %v660 = vld [vmem:[#allocation2 + $0x58] sm:$0xff]
    %v661 = vld [vmem:[#allocation2 + $0x60] sm:$0xff]
    %v662 = vld [vmem:[#allocation2 + $0x68] sm:$0xff]
    %v663 = vld [vmem:[#allocation2 + $0x70] sm:$0xff]
    %v664 = vld [vmem:[#allocation2 + $0x78] sm:$0xff]
    %v665 = vld [vmem:[#allocation2 + $0x80] sm:$0xff]
    %v666 = vld [vmem:[#allocation2 + $0x88] sm:$0xff]
    %v667 = vld [vmem:[#allocation2 + $0x90] sm:$0xff]
    %v668 = vld [vmem:[#allocation2 + $0x98] sm:$0xff]
    %v669 = vld [vmem:[#allocation2 + $0xa0] sm:$0xff]
    %v670 = vld [vmem:[#allocation2 + $0xa8] sm:$0xff]
    %v671 = vld [vmem:[#allocation2 + $0xb0] sm:$0xff]
    %v672 = vld [vmem:[#allocation2 + $0xb8] sm:$0xff]
    %v673 = vld [vmem:[#allocation2 + $0xc0] sm:$0xff]
    %v674 = vld [vmem:[#allocation2 + $0xc8] sm:$0xff]
    %v675 = vld [vmem:[#allocation2 + $0xd0] sm:$0xff]
    %v676 = vld [vmem:[#allocation2 + $0xd8] sm:$0xff]
    %v677 = vld [vmem:[#allocation2 + $0xe0] sm:$0xff]
    %v678 = vld [vmem:[#allocation2 + $0xe8] sm:$0xff]
    %v679 = vld [vmem:[#allocation2 + $0xf0] sm:$0xff]
    %v680 = vld [vmem:[#allocation2 + $0xf8] sm:$0xff]
    %v681 = vld [vmem:[#allocation2 + $0x100] sm:$0xff]
    %v682 = vld [vmem:[#allocation2 + $0x108] sm:$0xff]
    %v683 = vld [vmem:[#allocation2 + $0x110] sm:$0xff]
    %v684 = vld [vmem:[#allocation2 + $0x118] sm:$0xff]
    %v685 = vld [vmem:[#allocation2 + $0x120] sm:$0xff]
    %v686 = vld [vmem:[#allocation2 + $0x128] sm:$0xff]
    %v687 = vld [vmem:[#allocation2 + $0x130] sm:$0xff]
    %v688 = vld [vmem:[#allocation2 + $0x138] sm:$0xff]
    %v689 = vld [vmem:[#allocation2 + $0x140] sm:$0xff]
    %v690 = vld [vmem:[#allocation2 + $0x148] sm:$0xff]
    %v691 = vld [vmem:[#allocation2 + $0x150] sm:$0xff]
    %v692 = vld [vmem:[#allocation2 + $0x158] sm:$0xff]
    %v693 = vld [vmem:[#allocation2 + $0x160] sm:$0xff]
    %v694 = vld [vmem:[#allocation2 + $0x168] sm:$0xff]
    %v695 = vld [vmem:[#allocation2 + $0x170] sm:$0xff]
    %v696 = vld [vmem:[#allocation2 + $0x178] sm:$0xff]
    %v697 = vld [vmem:[#allocation2 + $0x180] sm:$0xff]
    %v698 = vld [vmem:[#allocation2 + $0x188] sm:$0xff]
    %v699 = vld [vmem:[#allocation2 + $0x190] sm:$0xff]
    %v700 = vld [vmem:[#allocation2 + $0x198] sm:$0xff]
    %v701 = vld [vmem:[#allocation2 + $0x1a0] sm:$0xff]
    %v702 = vld [vmem:[#allocation2 + $0x1a8] sm:$0xff]
    %v703 = vld [vmem:[#allocation2 + $0x1b0] sm:$0xff]
    %v704 = vld [vmem:[#allocation2 + $0x1b8] sm:$0xff]
    %v705 = vld [vmem:[#allocation2 + $0x1c0] sm:$0xff]
    %v706 = vld [vmem:[#allocation2 + $0x1c8] sm:$0xff]
    %v707 = vld [vmem:[#allocation2 + $0x1d0] sm:$0xff]
    %v708 = vld [vmem:[#allocation2 + $0x1d8] sm:$0xff]
    %v709 = vld [vmem:[#allocation2 + $0x1e0] sm:$0xff]
    %v710 = vld [vmem:[#allocation2 + $0x1e8] sm:$0xff]
    %v711 = vld [vmem:[#allocation2 + $0x1f0] sm:$0xff]
    %v712 = vld [vmem:[#allocation2 + $0x1f8] sm:$0xff]
    %v713 = vld [vmem:[%s4] sm:$0xf]
    %v715 = vlaneseq
    %v716 = vshrl.u32 %v715, 7
    %v717 = vsub.s32 0, %v716
    %v718 = vrot.slane %v713, %v717
    %v719 = vlaneseq
    %v720 = vshrl.u32 %v719, 7
    %v721 = vsub.s32 1, %v720
    %v722 = vrot.slane %v713, %v721
    %v723 = vlaneseq
    %v724 = vshrl.u32 %v723, 7
    %v725 = vsub.s32 2, %v724
    %v726 = vrot.slane %v713, %v725
    %v727 = vlaneseq
    %v728 = vshrl.u32 %v727, 7
    %v729 = vsub.s32 3, %v728
    %v730 = vrot.slane %v713, %v729
    %v799 = vunpack.c.l.b16 %v649
    %v800 = vunpack.c.h.b16 %v649
    %v801 = vunpack.c.l.b16 %v650
    %v802 = vunpack.c.h.b16 %v650
    %v803 = vunpack.c.l.b16 %v651
    %v804 = vunpack.c.h.b16 %v651
    %v805 = vunpack.c.l.b16 %v652
    %v806 = vunpack.c.h.b16 %v652
    %v807 = vunpack.c.l.b16 %v653
    %v808 = vunpack.c.h.b16 %v653
    %v809 = vunpack.c.l.b16 %v654
    %v810 = vunpack.c.h.b16 %v654
    %v811 = vunpack.c.l.b16 %v655
    %v812 = vunpack.c.h.b16 %v655
    %v813 = vunpack.c.l.b16 %v656
    %v814 = vunpack.c.h.b16 %v656
    %v815 = vunpack.c.l.b16 %v657
    %v816 = vunpack.c.h.b16 %v657
    %v817 = vunpack.c.l.b16 %v658
    %v818 = vunpack.c.h.b16 %v658
    %v819 = vunpack.c.l.b16 %v659
    %v820 = vunpack.c.h.b16 %v659
    %v821 = vunpack.c.l.b16 %v660
    %v822 = vunpack.c.h.b16 %v660
    %v823 = vunpack.c.l.b16 %v661
    %v824 = vunpack.c.h.b16 %v661
    %v825 = vunpack.c.l.b16 %v662
    %v826 = vunpack.c.h.b16 %v662
    %v827 = vunpack.c.l.b16 %v663
    %v828 = vunpack.c.h.b16 %v663
    %v829 = vunpack.c.l.b16 %v664
    %v830 = vunpack.c.h.b16 %v664
    %v831 = vunpack.c.l.b16 %v665
    %v832 = vunpack.c.h.b16 %v665
    %v833 = vunpack.c.l.b16 %v666
    %v834 = vunpack.c.h.b16 %v666
    %v835 = vunpack.c.l.b16 %v667
    %v836 = vunpack.c.h.b16 %v667
    %v837 = vunpack.c.l.b16 %v668
    %v838 = vunpack.c.h.b16 %v668
    %v839 = vunpack.c.l.b16 %v669
    %v840 = vunpack.c.h.b16 %v669
    %v841 = vunpack.c.l.b16 %v670
    %v842 = vunpack.c.h.b16 %v670
    %v843 = vunpack.c.l.b16 %v671
    %v844 = vunpack.c.h.b16 %v671
    %v845 = vunpack.c.l.b16 %v672
    %v846 = vunpack.c.h.b16 %v672
    %v847 = vunpack.c.l.b16 %v673
    %v848 = vunpack.c.h.b16 %v673
    %v849 = vunpack.c.l.b16 %v674
    %v850 = vunpack.c.h.b16 %v674
    %v851 = vunpack.c.l.b16 %v675
    %v852 = vunpack.c.h.b16 %v675
    %v853 = vunpack.c.l.b16 %v676
    %v854 = vunpack.c.h.b16 %v676
    %v855 = vunpack.c.l.b16 %v677
    %v856 = vunpack.c.h.b16 %v677
    %v857 = vunpack.c.l.b16 %v678
    %v858 = vunpack.c.h.b16 %v678
    %v859 = vunpack.c.l.b16 %v679
    %v860 = vunpack.c.h.b16 %v679
    %v861 = vunpack.c.l.b16 %v680
    %v862 = vunpack.c.h.b16 %v680
    %v863 = vunpack.c.l.b16 %v681
    %v864 = vunpack.c.h.b16 %v681
    %v865 = vunpack.c.l.b16 %v682
    %v866 = vunpack.c.h.b16 %v682
    %v867 = vunpack.c.l.b16 %v683
    %v868 = vunpack.c.h.b16 %v683
    %v869 = vunpack.c.l.b16 %v684
    %v870 = vunpack.c.h.b16 %v684
    %v871 = vunpack.c.l.b16 %v685
    %v872 = vunpack.c.h.b16 %v685
    %v873 = vunpack.c.l.b16 %v686
    %v874 = vunpack.c.h.b16 %v686
    %v875 = vunpack.c.l.b16 %v687
    %v876 = vunpack.c.h.b16 %v687
    %v877 = vunpack.c.l.b16 %v688
    %v878 = vunpack.c.h.b16 %v688
    %v879 = vunpack.c.l.b16 %v689
    %v880 = vunpack.c.h.b16 %v689
    %v881 = vunpack.c.l.b16 %v690
    %v882 = vunpack.c.h.b16 %v690
    %v883 = vunpack.c.l.b16 %v691
    %v884 = vunpack.c.h.b16 %v691
    %v885 = vunpack.c.l.b16 %v692
    %v886 = vunpack.c.h.b16 %v692
    %v887 = vunpack.c.l.b16 %v693
    %v888 = vunpack.c.h.b16 %v693
    %v889 = vunpack.c.l.b16 %v694
    %v890 = vunpack.c.h.b16 %v694
    %v891 = vunpack.c.l.b16 %v695
    %v892 = vunpack.c.h.b16 %v695
    %v893 = vunpack.c.l.b16 %v696
    %v894 = vunpack.c.h.b16 %v696
    %v895 = vunpack.c.l.b16 %v697
    %v896 = vunpack.c.h.b16 %v697
    %v897 = vunpack.c.l.b16 %v698
    %v898 = vunpack.c.h.b16 %v698
    %v899 = vunpack.c.l.b16 %v699
    %v900 = vunpack.c.h.b16 %v699
    %v901 = vunpack.c.l.b16 %v700
    %v902 = vunpack.c.h.b16 %v700
    %v903 = vunpack.c.l.b16 %v701
    %v904 = vunpack.c.h.b16 %v701
    %v905 = vunpack.c.l.b16 %v702
    %v906 = vunpack.c.h.b16 %v702
    %v907 = vunpack.c.l.b16 %v703
    %v908 = vunpack.c.h.b16 %v703
    %v909 = vunpack.c.l.b16 %v704
    %v910 = vunpack.c.h.b16 %v704
    %v911 = vunpack.c.l.b16 %v705
    %v912 = vunpack.c.h.b16 %v705
    %v913 = vunpack.c.l.b16 %v706
    %v914 = vunpack.c.h.b16 %v706
    %v915 = vunpack.c.l.b16 %v707
    %v916 = vunpack.c.h.b16 %v707
    %v917 = vunpack.c.l.b16 %v708
    %v918 = vunpack.c.h.b16 %v708
    %v919 = vunpack.c.l.b16 %v709
    %v920 = vunpack.c.h.b16 %v709
    %v921 = vunpack.c.l.b16 %v710
    %v922 = vunpack.c.h.b16 %v710
    %v923 = vunpack.c.l.b16 %v711
    %v924 = vunpack.c.h.b16 %v711
    %v925 = vunpack.c.l.b16 %v712
    %v926 = vunpack.c.h.b16 %v712
    %v927 = vpack.c.b16 %v803, %v799
    %v928 = vpack.c.b16 %v804, %v800
    %v929 = vpack.c.b16 %v805, %v801
    %v930 = vpack.c.b16 %v806, %v802
    %v931 = vpack.c.b16 %v811, %v807
    %v932 = vpack.c.b16 %v812, %v808
    %v933 = vpack.c.b16 %v813, %v809
    %v934 = vpack.c.b16 %v814, %v810
    %v935 = vpack.c.b16 %v819, %v815
    %v936 = vpack.c.b16 %v820, %v816
    %v937 = vpack.c.b16 %v821, %v817
    %v938 = vpack.c.b16 %v822, %v818
    %v939 = vpack.c.b16 %v827, %v823
    %v940 = vpack.c.b16 %v828, %v824
    %v941 = vpack.c.b16 %v829, %v825
    %v942 = vpack.c.b16 %v830, %v826
    %v943 = vpack.c.b16 %v835, %v831
    %v944 = vpack.c.b16 %v836, %v832
    %v945 = vpack.c.b16 %v837, %v833
    %v946 = vpack.c.b16 %v838, %v834
    %v947 = vpack.c.b16 %v843, %v839
    %v948 = vpack.c.b16 %v844, %v840
    %v949 = vpack.c.b16 %v845, %v841
    %v950 = vpack.c.b16 %v846, %v842
    %v951 = vpack.c.b16 %v851, %v847
    %v952 = vpack.c.b16 %v852, %v848
    %v953 = vpack.c.b16 %v853, %v849
    %v954 = vpack.c.b16 %v854, %v850
    %v955 = vpack.c.b16 %v859, %v855
    %v956 = vpack.c.b16 %v860, %v856
    %v957 = vpack.c.b16 %v861, %v857
    %v958 = vpack.c.b16 %v862, %v858
    %v959 = vpack.c.b16 %v867, %v863
    %v960 = vpack.c.b16 %v868, %v864
    %v961 = vpack.c.b16 %v869, %v865
    %v962 = vpack.c.b16 %v870, %v866
    %v963 = vpack.c.b16 %v875, %v871
    %v964 = vpack.c.b16 %v876, %v872
    %v965 = vpack.c.b16 %v877, %v873
    %v966 = vpack.c.b16 %v878, %v874
    %v967 = vpack.c.b16 %v883, %v879
    %v968 = vpack.c.b16 %v884, %v880
    %v969 = vpack.c.b16 %v885, %v881
    %v970 = vpack.c.b16 %v886, %v882
    %v971 = vpack.c.b16 %v891, %v887
    %v972 = vpack.c.b16 %v892, %v888
    %v973 = vpack.c.b16 %v893, %v889
    %v974 = vpack.c.b16 %v894, %v890
    %v975 = vpack.c.b16 %v899, %v895
    %v976 = vpack.c.b16 %v900, %v896
    %v977 = vpack.c.b16 %v901, %v897
    %v978 = vpack.c.b16 %v902, %v898
    %v979 = vpack.c.b16 %v907, %v903
    %v980 = vpack.c.b16 %v908, %v904
    %v981 = vpack.c.b16 %v909, %v905
    %v982 = vpack.c.b16 %v910, %v906
    %v983 = vpack.c.b16 %v915, %v911
    %v984 = vpack.c.b16 %v916, %v912
    %v985 = vpack.c.b16 %v917, %v913
    %v986 = vpack.c.b16 %v918, %v914
    %v987 = vpack.c.b16 %v923, %v919
    %v988 = vpack.c.b16 %v924, %v920
    %v989 = vpack.c.b16 %v925, %v921
    %v990 = vpack.c.b16 %v926, %v922
    %1055 = vmatprep.subr.bf16.mxu0 %v928
    %1056 = vmatpush1.bf16.msra.mxu0 %v927
    %1057 = vmatprep.subr.bf16.mxu0 %v932
    %1058 = vmatpush1.bf16.msra.mxu0 %v931
    %1059 = vmatprep.subr.bf16.mxu0 %v936
    %1060 = vmatpush1.bf16.msra.mxu0 %v935
    %1061 = vmatprep.subr.bf16.mxu0 %v940
    %1062 = vmatpush1.bf16.msra.mxu0 %v939
    %1063 = vmatprep.subr.bf16.mxu0 %v944
    %1064 = vmatpush1.bf16.msra.mxu0 %v943
    %1065 = vmatprep.subr.bf16.mxu0 %v948
    %1066 = vmatpush1.bf16.msra.mxu0 %v947
    %1067 = vmatprep.subr.bf16.mxu0 %v952
    %1068 = vmatpush1.bf16.msra.mxu0 %v951
    %1069 = vmatprep.subr.bf16.mxu0 %v956
    %1070 = vmatpush1.bf16.msra.mxu0 %v955
    %1071 = vmatprep.subr.bf16.mxu0 %v960
    %1072 = vmatpush1.bf16.msra.mxu0 %v959
    %1073 = vmatprep.subr.bf16.mxu0 %v964
    %1074 = vmatpush1.bf16.msra.mxu0 %v963
    %1075 = vmatprep.subr.bf16.mxu0 %v968
    %1076 = vmatpush1.bf16.msra.mxu0 %v967
    %1077 = vmatprep.subr.bf16.mxu0 %v972
    %1078 = vmatpush1.bf16.msra.mxu0 %v971
    %1079 = vmatprep.subr.bf16.mxu0 %v976
    %1080 = vmatpush1.bf16.msra.mxu0 %v975
    %1081 = vmatprep.subr.bf16.mxu0 %v980
    %1082 = vmatpush1.bf16.msra.mxu0 %v979
    %1083 = vmatprep.subr.bf16.mxu0 %v984
    %1084 = vmatpush1.bf16.msra.mxu0 %v983
    %1085 = vmatprep.subr.bf16.mxu0 %v988
    %1086 = vmatpush1.bf16.msra.mxu0 %v987
    %1087 = vmatprep.mubr.bf16.mxu0 %v618
    %1088 = vmatmul.mubr.bf16.gmra.mrb[0].mxu0 %v617
    %v1089 = vpop.f32.mrb[0].mxu0
    %v1090 = vadd.f32 %v718, %v1089
    %v1091 = vpop.f32.mrb[0].mxu0
    %v1092 = vadd.f32 %v722, %v1091
    %v1093 = vpop.f32.mrb[0].mxu0
    %v1094 = vadd.f32 %v718, %v1093
    %v1095 = vpop.f32.mrb[0].mxu0
    %v1096 = vadd.f32 %v722, %v1095
    %1097 = vmatprep.mubr.bf16.mxu0 %v620
    %1098 = vmatmul.mubr.bf16.gmra.mrb[0].mxu0 %v619
    %v1099 = vpop.f32.mrb[0].mxu0
    %v1100 = vadd.f32 %v718, %v1099
    %v1101 = vpop.f32.mrb[0].mxu0
    %v1102 = vadd.f32 %v722, %v1101
    %v1103 = vpop.f32.mrb[0].mxu0
    %v1104 = vadd.f32 %v718, %v1103
    %v1105 = vpop.f32.mrb[0].mxu0
    %v1106 = vadd.f32 %v722, %v1105
    %1107 = vmatprep.mubr.bf16.mxu0 %v622
    %1108 = vmatmul.mubr.bf16.gmra.mrb[0].mxu0 %v621
    %v1109 = vpop.f32.mrb[0].mxu0
    %v1110 = vadd.f32 %v718, %v1109
    %v1111 = vpop.f32.mrb[0].mxu0
    %v1112 = vadd.f32 %v722, %v1111
    %v1113 = vpop.f32.mrb[0].mxu0
    %v1114 = vadd.f32 %v718, %v1113
    %v1115 = vpop.f32.mrb[0].mxu0
    %v1116 = vadd.f32 %v722, %v1115
    %1117 = vmatprep.mubr.bf16.mxu0 %v624
    %1118 = vmatmul.mubr.bf16.gmra.mrb[0].mxu0 %v623
    %v1119 = vpop.f32.mrb[0].mxu0
    %v1120 = vadd.f32 %v718, %v1119
    %v1121 = vpop.f32.mrb[0].mxu0
    %v1122 = vadd.f32 %v722, %v1121
    %v1123 = vpop.f32.mrb[0].mxu0
    %v1124 = vadd.f32 %v718, %v1123
    %v1125 = vpop.f32.mrb[0].mxu0
    %v1126 = vadd.f32 %v722, %v1125
    %1127 = vmatprep.mubr.bf16.mxu0 %v626
    %1128 = vmatmul.mubr.bf16.gmra.mrb[0].mxu0 %v625
    %v1129 = vpop.f32.mrb[0].mxu0
    %v1130 = vadd.f32 %v718, %v1129
    %v1131 = vpop.f32.mrb[0].mxu0
    %v1132 = vadd.f32 %v722, %v1131
    %v1133 = vpop.f32.mrb[0].mxu0
    %v1134 = vadd.f32 %v718, %v1133
    %v1135 = vpop.f32.mrb[0].mxu0
    %v1136 = vadd.f32 %v722, %v1135
    %1137 = vmatprep.mubr.bf16.mxu0 %v628
    %1138 = vmatmul.mubr.bf16.gmra.mrb[0].mxu0 %v627
    %v1139 = vpop.f32.mrb[0].mxu0
    %v1140 = vadd.f32 %v718, %v1139
    %v1141 = vpop.f32.mrb[0].mxu0
    %v1142 = vadd.f32 %v722, %v1141
    %v1143 = vpop.f32.mrb[0].mxu0
    %v1144 = vadd.f32 %v718, %v1143
    %v1145 = vpop.f32.mrb[0].mxu0
    %v1146 = vadd.f32 %v722, %v1145
    %1147 = vmatprep.mubr.bf16.mxu0 %v630
    %1148 = vmatmul.mubr.bf16.gmra.mrb[0].mxu0 %v629
    %v1149 = vpop.f32.mrb[0].mxu0
    %v1150 = vadd.f32 %v718, %v1149
    %v1151 = vpop.f32.mrb[0].mxu0
    %v1152 = vadd.f32 %v722, %v1151
    %v1153 = vpop.f32.mrb[0].mxu0
    %v1154 = vadd.f32 %v718, %v1153
    %v1155 = vpop.f32.mrb[0].mxu0
    %v1156 = vadd.f32 %v722, %v1155
    %1157 = vmatprep.mubr.bf16.mxu0 %v632
    %1158 = vmatmul.mubr.bf16.gmra.mrb[0].mxu0 %v631
    %v1159 = vpop.f32.mrb[0].mxu0
    %v1160 = vadd.f32 %v718, %v1159
    %v1161 = vpop.f32.mrb[0].mxu0
    %v1162 = vadd.f32 %v722, %v1161
    %v1163 = vpop.f32.mrb[0].mxu0
    %v1164 = vadd.f32 %v718, %v1163
    %v1165 = vpop.f32.mrb[0].mxu0
    %v1166 = vadd.f32 %v722, %v1165
    %1167 = vmatprep.mubr.bf16.mxu0 %v634
    %1168 = vmatmul.mubr.bf16.gmra.mrb[0].mxu0 %v633
    %v1169 = vpop.f32.mrb[0].mxu0
    %v1170 = vadd.f32 %v718, %v1169
    %v1171 = vpop.f32.mrb[0].mxu0
    %v1172 = vadd.f32 %v722, %v1171
    %v1173 = vpop.f32.mrb[0].mxu0
    %v1174 = vadd.f32 %v718, %v1173
    %v1175 = vpop.f32.mrb[0].mxu0
    %v1176 = vadd.f32 %v722, %v1175
    %1177 = vmatprep.mubr.bf16.mxu0 %v636
    %1178 = vmatmul.mubr.bf16.gmra.mrb[0].mxu0 %v635
    %v1179 = vpop.f32.mrb[0].mxu0
    %v1180 = vadd.f32 %v718, %v1179
    %v1181 = vpop.f32.mrb[0].mxu0
    %v1182 = vadd.f32 %v722, %v1181
    %v1183 = vpop.f32.mrb[0].mxu0
    %v1184 = vadd.f32 %v718, %v1183
    %v1185 = vpop.f32.mrb[0].mxu0
    %v1186 = vadd.f32 %v722, %v1185
    %1187 = vmatprep.mubr.bf16.mxu0 %v638
    %1188 = vmatmul.mubr.bf16.gmra.mrb[0].mxu0 %v637
    %v1189 = vpop.f32.mrb[0].mxu0
    %v1190 = vadd.f32 %v718, %v1189
    %v1191 = vpop.f32.mrb[0].mxu0
    %v1192 = vadd.f32 %v722, %v1191
    %v1193 = vpop.f32.mrb[0].mxu0
    %v1194 = vadd.f32 %v718, %v1193
    %v1195 = vpop.f32.mrb[0].mxu0
    %v1196 = vadd.f32 %v722, %v1195
    %1197 = vmatprep.mubr.bf16.mxu0 %v640
    %1198 = vmatmul.mubr.bf16.gmra.mrb[0].mxu0 %v639
    %v1199 = vpop.f32.mrb[0].mxu0
    %v1200 = vadd.f32 %v718, %v1199
    %v1201 = vpop.f32.mrb[0].mxu0
    %v1202 = vadd.f32 %v722, %v1201
    %v1203 = vpop.f32.mrb[0].mxu0
    %v1204 = vadd.f32 %v718, %v1203
    %v1205 = vpop.f32.mrb[0].mxu0
    %v1206 = vadd.f32 %v722, %v1205
    %1207 = vmatprep.mubr.bf16.mxu0 %v642
    %1208 = vmatmul.mubr.bf16.gmra.mrb[0].mxu0 %v641
    %v1209 = vpop.f32.mrb[0].mxu0
    %v1210 = vadd.f32 %v718, %v1209
    %v1211 = vpop.f32.mrb[0].mxu0
    %v1212 = vadd.f32 %v722, %v1211
    %v1213 = vpop.f32.mrb[0].mxu0
    %v1214 = vadd.f32 %v718, %v1213
    %v1215 = vpop.f32.mrb[0].mxu0
    %v1216 = vadd.f32 %v722, %v1215
    %1217 = vmatprep.mubr.bf16.mxu0 %v644
    %1218 = vmatmul.mubr.bf16.gmra.mrb[0].mxu0 %v643
    %v1219 = vpop.f32.mrb[0].mxu0
    %v1220 = vadd.f32 %v718, %v1219
    %v1221 = vpop.f32.mrb[0].mxu0
    %v1222 = vadd.f32 %v722, %v1221
    %v1223 = vpop.f32.mrb[0].mxu0
    %v1224 = vadd.f32 %v718, %v1223
    %v1225 = vpop.f32.mrb[0].mxu0
    %v1226 = vadd.f32 %v722, %v1225
    %1227 = vmatprep.mubr.bf16.mxu0 %v646
    %1228 = vmatmul.mubr.bf16.gmra.mrb[0].mxu0 %v645
    %v1229 = vpop.f32.mrb[0].mxu0
    %v1230 = vadd.f32 %v718, %v1229
    %v1231 = vpop.f32.mrb[0].mxu0
    %v1232 = vadd.f32 %v722, %v1231
    %v1233 = vpop.f32.mrb[0].mxu0
    %v1234 = vadd.f32 %v718, %v1233
    %v1235 = vpop.f32.mrb[0].mxu0
    %v1236 = vadd.f32 %v722, %v1235
    %1237 = vmatprep.mubr.bf16.mxu0 %v648
    %1238 = vmatmul.mubr.bf16.gmra.mrb[0].mxu0 %v647
    %v1239 = vpop.f32.mrb[0].mxu0
    %v1240 = vadd.f32 %v718, %v1239
    %v1241 = vpop.f32.mrb[0].mxu0
    %v1242 = vadd.f32 %v722, %v1241
    %v1243 = vpop.f32.mrb[0].mxu0
    %v1244 = vadd.f32 %v718, %v1243
    %v1245 = vpop.f32.mrb[0].mxu0
    %v1246 = vadd.f32 %v722, %v1245
    %1247 = vdwg.mxu0
    %1248 = vmatprep.subr.bf16.mxu0 %v930
    %1249 = vmatpush1.bf16.msra.mxu0 %v929
    %1250 = vmatprep.subr.bf16.mxu0 %v934
    %1251 = vmatpush1.bf16.msra.mxu0 %v933
    %1252 = vmatprep.subr.bf16.mxu0 %v938
    %1253 = vmatpush1.bf16.msra.mxu0 %v937
    %1254 = vmatprep.subr.bf16.mxu0 %v942
    %1255 = vmatpush1.bf16.msra.mxu0 %v941
    %1256 = vmatprep.subr.bf16.mxu0 %v946
    %1257 = vmatpush1.bf16.msra.mxu0 %v945
    %1258 = vmatprep.subr.bf16.mxu0 %v950
    %1259 = vmatpush1.bf16.msra.mxu0 %v949
    %1260 = vmatprep.subr.bf16.mxu0 %v954
    %1261 = vmatpush1.bf16.msra.mxu0 %v953
    %1262 = vmatprep.subr.bf16.mxu0 %v958
    %1263 = vmatpush1.bf16.msra.mxu0 %v957
    %1264 = vmatprep.subr.bf16.mxu0 %v962
    %1265 = vmatpush1.bf16.msra.mxu0 %v961
    %1266 = vmatprep.subr.bf16.mxu0 %v966
    %1267 = vmatpush1.bf16.msra.mxu0 %v965
    %1268 = vmatprep.subr.bf16.mxu0 %v970
    %1269 = vmatpush1.bf16.msra.mxu0 %v969
    %1270 = vmatprep.subr.bf16.mxu0 %v974
    %1271 = vmatpush1.bf16.msra.mxu0 %v973
    %1272 = vmatprep.subr.bf16.mxu0 %v978
    %1273 = vmatpush1.bf16.msra.mxu0 %v977
    %1274 = vmatprep.subr.bf16.mxu0 %v982
    %1275 = vmatpush1.bf16.msra.mxu0 %v981
    %1276 = vmatprep.subr.bf16.mxu0 %v986
    %1277 = vmatpush1.bf16.msra.mxu0 %v985
    %1278 = vmatprep.subr.bf16.mxu0 %v990
    %1279 = vmatpush1.bf16.msra.mxu0 %v989
    %1280 = vmatprep.mubr.bf16.mxu0 %v618
    %1281 = vmatmul.mubr.bf16.gmra.mrb[0].mxu0 %v617
    %v1282 = vpop.f32.mrb[0].mxu0
    %v1283 = vadd.f32 %v726, %v1282
    %v1284 = vpop.f32.mrb[0].mxu0
    %v1285 = vadd.f32 %v730, %v1284
    %v1286 = vpop.f32.mrb[0].mxu0
    %v1287 = vadd.f32 %v726, %v1286
    %v1288 = vpop.f32.mrb[0].mxu0
    %v1289 = vadd.f32 %v730, %v1288
    %1290 = vmatprep.mubr.bf16.mxu0 %v620
    %1291 = vmatmul.mubr.bf16.gmra.mrb[0].mxu0 %v619
    %v1292 = vpop.f32.mrb[0].mxu0
    %v1293 = vadd.f32 %v726, %v1292
    %v1294 = vpop.f32.mrb[0].mxu0
    %v1295 = vadd.f32 %v730, %v1294
    %v1296 = vpop.f32.mrb[0].mxu0
    %v1297 = vadd.f32 %v726, %v1296
    %v1298 = vpop.f32.mrb[0].mxu0
    %v1299 = vadd.f32 %v730, %v1298
    %1300 = vmatprep.mubr.bf16.mxu0 %v622
    %1301 = vmatmul.mubr.bf16.gmra.mrb[0].mxu0 %v621
    %v1302 = vpop.f32.mrb[0].mxu0
    %v1303 = vadd.f32 %v726, %v1302
    %v1304 = vpop.f32.mrb[0].mxu0
    %v1305 = vadd.f32 %v730, %v1304
    %v1306 = vpop.f32.mrb[0].mxu0
    %v1307 = vadd.f32 %v726, %v1306
    %v1308 = vpop.f32.mrb[0].mxu0
    %v1309 = vadd.f32 %v730, %v1308
    %1310 = vmatprep.mubr.bf16.mxu0 %v624
    %1311 = vmatmul.mubr.bf16.gmra.mrb[0].mxu0 %v623
    %v1312 = vpop.f32.mrb[0].mxu0
    %v1313 = vadd.f32 %v726, %v1312
    %v1314 = vpop.f32.mrb[0].mxu0
    %v1315 = vadd.f32 %v730, %v1314
    %v1316 = vpop.f32.mrb[0].mxu0
    %v1317 = vadd.f32 %v726, %v1316
    %v1318 = vpop.f32.mrb[0].mxu0
    %v1319 = vadd.f32 %v730, %v1318
    %1320 = vmatprep.mubr.bf16.mxu0 %v626
    %1321 = vmatmul.mubr.bf16.gmra.mrb[0].mxu0 %v625
    %v1322 = vpop.f32.mrb[0].mxu0
    %v1323 = vadd.f32 %v726, %v1322
    %v1324 = vpop.f32.mrb[0].mxu0
    %v1325 = vadd.f32 %v730, %v1324
    %v1326 = vpop.f32.mrb[0].mxu0
    %v1327 = vadd.f32 %v726, %v1326
    %v1328 = vpop.f32.mrb[0].mxu0
    %v1329 = vadd.f32 %v730, %v1328
    %1330 = vmatprep.mubr.bf16.mxu0 %v628
    %1331 = vmatmul.mubr.bf16.gmra.mrb[0].mxu0 %v627
    %v1332 = vpop.f32.mrb[0].mxu0
    %v1333 = vadd.f32 %v726, %v1332
    %v1334 = vpop.f32.mrb[0].mxu0
    %v1335 = vadd.f32 %v730, %v1334
    %v1336 = vpop.f32.mrb[0].mxu0
    %v1337 = vadd.f32 %v726, %v1336
    %v1338 = vpop.f32.mrb[0].mxu0
    %v1339 = vadd.f32 %v730, %v1338
    %1340 = vmatprep.mubr.bf16.mxu0 %v630
    %1341 = vmatmul.mubr.bf16.gmra.mrb[0].mxu0 %v629
    %v1342 = vpop.f32.mrb[0].mxu0
    %v1343 = vadd.f32 %v726, %v1342
    %v1344 = vpop.f32.mrb[0].mxu0
    %v1345 = vadd.f32 %v730, %v1344
    %v1346 = vpop.f32.mrb[0].mxu0
    %v1347 = vadd.f32 %v726, %v1346
    %v1348 = vpop.f32.mrb[0].mxu0
    %v1349 = vadd.f32 %v730, %v1348
    %1350 = vmatprep.mubr.bf16.mxu0 %v632
    %1351 = vmatmul.mubr.bf16.gmra.mrb[0].mxu0 %v631
    %v1352 = vpop.f32.mrb[0].mxu0
    %v1353 = vadd.f32 %v726, %v1352
    %v1354 = vpop.f32.mrb[0].mxu0
    %v1355 = vadd.f32 %v730, %v1354
    %v1356 = vpop.f32.mrb[0].mxu0
    %v1357 = vadd.f32 %v726, %v1356
    %v1358 = vpop.f32.mrb[0].mxu0
    %v1359 = vadd.f32 %v730, %v1358
    %1360 = vmatprep.mubr.bf16.mxu0 %v634
    %1361 = vmatmul.mubr.bf16.gmra.mrb[0].mxu0 %v633
    %v1362 = vpop.f32.mrb[0].mxu0
    %v1363 = vadd.f32 %v726, %v1362
    %v1364 = vpop.f32.mrb[0].mxu0
    %v1365 = vadd.f32 %v730, %v1364
    %v1366 = vpop.f32.mrb[0].mxu0
    %v1367 = vadd.f32 %v726, %v1366
    %v1368 = vpop.f32.mrb[0].mxu0
    %v1369 = vadd.f32 %v730, %v1368
    %1370 = vmatprep.mubr.bf16.mxu0 %v636
    %1371 = vmatmul.mubr.bf16.gmra.mrb[0].mxu0 %v635
    %v1372 = vpop.f32.mrb[0].mxu0
    %v1373 = vadd.f32 %v726, %v1372
    %v1374 = vpop.f32.mrb[0].mxu0
    %v1375 = vadd.f32 %v730, %v1374
    %v1376 = vpop.f32.mrb[0].mxu0
    %v1377 = vadd.f32 %v726, %v1376
    %v1378 = vpop.f32.mrb[0].mxu0
    %v1379 = vadd.f32 %v730, %v1378
    %1380 = vmatprep.mubr.bf16.mxu0 %v638
    %1381 = vmatmul.mubr.bf16.gmra.mrb[0].mxu0 %v637
    %v1382 = vpop.f32.mrb[0].mxu0
    %v1383 = vadd.f32 %v726, %v1382
    %v1384 = vpop.f32.mrb[0].mxu0
    %v1385 = vadd.f32 %v730, %v1384
    %v1386 = vpop.f32.mrb[0].mxu0
    %v1387 = vadd.f32 %v726, %v1386
    %v1388 = vpop.f32.mrb[0].mxu0
    %v1389 = vadd.f32 %v730, %v1388
    %1390 = vmatprep.mubr.bf16.mxu0 %v640
    %1391 = vmatmul.mubr.bf16.gmra.mrb[0].mxu0 %v639
    %v1392 = vpop.f32.mrb[0].mxu0
    %v1393 = vadd.f32 %v726, %v1392
    %v1394 = vpop.f32.mrb[0].mxu0
    %v1395 = vadd.f32 %v730, %v1394
    %v1396 = vpop.f32.mrb[0].mxu0
    %v1397 = vadd.f32 %v726, %v1396
    %v1398 = vpop.f32.mrb[0].mxu0
    %v1399 = vadd.f32 %v730, %v1398
    %1400 = vmatprep.mubr.bf16.mxu0 %v642
    %1401 = vmatmul.mubr.bf16.gmra.mrb[0].mxu0 %v641
    %v1402 = vpop.f32.mrb[0].mxu0
    %v1403 = vadd.f32 %v726, %v1402
    %v1404 = vpop.f32.mrb[0].mxu0
    %v1405 = vadd.f32 %v730, %v1404
    %v1406 = vpop.f32.mrb[0].mxu0
    %v1407 = vadd.f32 %v726, %v1406
    %v1408 = vpop.f32.mrb[0].mxu0
    %v1409 = vadd.f32 %v730, %v1408
    %1410 = vmatprep.mubr.bf16.mxu0 %v644
    %1411 = vmatmul.mubr.bf16.gmra.mrb[0].mxu0 %v643
    %v1412 = vpop.f32.mrb[0].mxu0
    %v1413 = vadd.f32 %v726, %v1412
    %v1414 = vpop.f32.mrb[0].mxu0
    %v1415 = vadd.f32 %v730, %v1414
    %v1416 = vpop.f32.mrb[0].mxu0
    %v1417 = vadd.f32 %v726, %v1416
    %v1418 = vpop.f32.mrb[0].mxu0
    %v1419 = vadd.f32 %v730, %v1418
    %1420 = vmatprep.mubr.bf16.mxu0 %v646
    %1421 = vmatmul.mubr.bf16.gmra.mrb[0].mxu0 %v645
    %v1422 = vpop.f32.mrb[0].mxu0
    %v1423 = vadd.f32 %v726, %v1422
    %v1424 = vpop.f32.mrb[0].mxu0
    %v1425 = vadd.f32 %v730, %v1424
    %v1426 = vpop.f32.mrb[0].mxu0
    %v1427 = vadd.f32 %v726, %v1426
    %v1428 = vpop.f32.mrb[0].mxu0
    %v1429 = vadd.f32 %v730, %v1428
    %1430 = vmatprep.mubr.bf16.mxu0 %v648
    %1431 = vmatmul.mubr.bf16.gmra.mrb[0].mxu0 %v647
    %v1432 = vpop.f32.mrb[0].mxu0
    %v1433 = vadd.f32 %v726, %v1432
    %v1434 = vpop.f32.mrb[0].mxu0
    %v1435 = vadd.f32 %v730, %v1434
    %v1436 = vpop.f32.mrb[0].mxu0
    %v1437 = vadd.f32 %v726, %v1436
    %v1438 = vpop.f32.mrb[0].mxu0
    %v1439 = vadd.f32 %v730, %v1438
    %1440 = vdwg.mxu0
    %v1441 = vmul.f32 %v1090, 0.2
    %v1442 = vmul.f32 %v1092, 0.2
    %v1443 = vmul.f32 %v1283, 0.2
    %v1444 = vmul.f32 %v1285, 0.2
    %v1445 = vmul.f32 %v1094, 0.2
    %v1446 = vmul.f32 %v1096, 0.2
    %v1447 = vmul.f32 %v1287, 0.2
    %v1448 = vmul.f32 %v1289, 0.2
    %v1449 = vmul.f32 %v1100, 0.2
    %v1450 = vmul.f32 %v1102, 0.2
    %v1451 = vmul.f32 %v1293, 0.2
    %v1452 = vmul.f32 %v1295, 0.2
    %v1453 = vmul.f32 %v1104, 0.2
    %v1454 = vmul.f32 %v1106, 0.2
    %v1455 = vmul.f32 %v1297, 0.2
    %v1456 = vmul.f32 %v1299, 0.2
    %v1457 = vmul.f32 %v1110, 0.2
    %v1458 = vmul.f32 %v1112, 0.2
    %v1459 = vmul.f32 %v1303, 0.2
    %v1460 = vmul.f32 %v1305, 0.2
    %v1461 = vmul.f32 %v1114, 0.2
    %v1462 = vmul.f32 %v1116, 0.2
    %v1463 = vmul.f32 %v1307, 0.2
    %v1464 = vmul.f32 %v1309, 0.2
    %v1465 = vmul.f32 %v1120, 0.2
    %v1466 = vmul.f32 %v1122, 0.2
    %v1467 = vmul.f32 %v1313, 0.2
    %v1468 = vmul.f32 %v1315, 0.2
    %v1469 = vmul.f32 %v1124, 0.2
    %v1470 = vmul.f32 %v1126, 0.2
    %v1471 = vmul.f32 %v1317, 0.2
    %v1472 = vmul.f32 %v1319, 0.2
    %v1473 = vmul.f32 %v1130, 0.2
    %v1474 = vmul.f32 %v1132, 0.2
    %v1475 = vmul.f32 %v1323, 0.2
    %v1476 = vmul.f32 %v1325, 0.2
    %v1477 = vmul.f32 %v1134, 0.2
    %v1478 = vmul.f32 %v1136, 0.2
    %v1479 = vmul.f32 %v1327, 0.2
    %v1480 = vmul.f32 %v1329, 0.2
    %v1481 = vmul.f32 %v1140, 0.2
    %v1482 = vmul.f32 %v1142, 0.2
    %v1483 = vmul.f32 %v1333, 0.2
    %v1484 = vmul.f32 %v1335, 0.2
    %v1485 = vmul.f32 %v1144, 0.2
    %v1486 = vmul.f32 %v1146, 0.2
    %v1487 = vmul.f32 %v1337, 0.2
    %v1488 = vmul.f32 %v1339, 0.2
    %v1489 = vmul.f32 %v1150, 0.2
    %v1490 = vmul.f32 %v1152, 0.2
    %v1491 = vmul.f32 %v1343, 0.2
    %v1492 = vmul.f32 %v1345, 0.2
    %v1493 = vmul.f32 %v1154, 0.2
    %v1494 = vmul.f32 %v1156, 0.2
    %v1495 = vmul.f32 %v1347, 0.2
    %v1496 = vmul.f32 %v1349, 0.2
    %v1497 = vmul.f32 %v1160, 0.2
    %v1498 = vmul.f32 %v1162, 0.2
    %v1499 = vmul.f32 %v1353, 0.2
    %v1500 = vmul.f32 %v1355, 0.2
    %v1501 = vmul.f32 %v1164, 0.2
    %v1502 = vmul.f32 %v1166, 0.2
    %v1503 = vmul.f32 %v1357, 0.2
    %v1504 = vmul.f32 %v1359, 0.2
    %v1505 = vmul.f32 %v1170, 0.2
    %v1506 = vmul.f32 %v1172, 0.2
    %v1507 = vmul.f32 %v1363, 0.2
    %v1508 = vmul.f32 %v1365, 0.2
    %v1509 = vmul.f32 %v1174, 0.2
    %v1510 = vmul.f32 %v1176, 0.2
    %v1511 = vmul.f32 %v1367, 0.2
    %v1512 = vmul.f32 %v1369, 0.2
    %v1513 = vmul.f32 %v1180, 0.2
    %v1514 = vmul.f32 %v1182, 0.2
    %v1515 = vmul.f32 %v1373, 0.2
    %v1516 = vmul.f32 %v1375, 0.2
    %v1517 = vmul.f32 %v1184, 0.2
    %v1518 = vmul.f32 %v1186, 0.2
    %v1519 = vmul.f32 %v1377, 0.2
    %v1520 = vmul.f32 %v1379, 0.2
    %v1521 = vmul.f32 %v1190, 0.2
    %v1522 = vmul.f32 %v1192, 0.2
    %v1523 = vmul.f32 %v1383, 0.2
    %v1524 = vmul.f32 %v1385, 0.2
    %v1525 = vmul.f32 %v1194, 0.2
    %v1526 = vmul.f32 %v1196, 0.2
    %v1527 = vmul.f32 %v1387, 0.2
    %v1528 = vmul.f32 %v1389, 0.2
    %v1529 = vmul.f32 %v1200, 0.2
    %v1530 = vmul.f32 %v1202, 0.2
    %v1531 = vmul.f32 %v1393, 0.2
    %v1532 = vmul.f32 %v1395, 0.2
    %v1533 = vmul.f32 %v1204, 0.2
    %v1534 = vmul.f32 %v1206, 0.2
    %v1535 = vmul.f32 %v1397, 0.2
    %v1536 = vmul.f32 %v1399, 0.2
    %v1537 = vmul.f32 %v1210, 0.2
    %v1538 = vmul.f32 %v1212, 0.2
    %v1539 = vmul.f32 %v1403, 0.2
    %v1540 = vmul.f32 %v1405, 0.2
    %v1541 = vmul.f32 %v1214, 0.2
    %v1542 = vmul.f32 %v1216, 0.2
    %v1543 = vmul.f32 %v1407, 0.2
    %v1544 = vmul.f32 %v1409, 0.2
    %v1545 = vmul.f32 %v1220, 0.2
    %v1546 = vmul.f32 %v1222, 0.2
    %v1547 = vmul.f32 %v1413, 0.2
    %v1548 = vmul.f32 %v1415, 0.2
    %v1549 = vmul.f32 %v1224, 0.2
    %v1550 = vmul.f32 %v1226, 0.2
    %v1551 = vmul.f32 %v1417, 0.2
    %v1552 = vmul.f32 %v1419, 0.2
    %v1553 = vmul.f32 %v1230, 0.2
    %v1554 = vmul.f32 %v1232, 0.2
    %v1555 = vmul.f32 %v1423, 0.2
    %v1556 = vmul.f32 %v1425, 0.2
    %v1557 = vmul.f32 %v1234, 0.2
    %v1558 = vmul.f32 %v1236, 0.2
    %v1559 = vmul.f32 %v1427, 0.2
    %v1560 = vmul.f32 %v1429, 0.2
    %v1561 = vmul.f32 %v1240, 0.2
    %v1562 = vmul.f32 %v1242, 0.2
    %v1563 = vmul.f32 %v1433, 0.2
    %v1564 = vmul.f32 %v1435, 0.2
    %v1565 = vmul.f32 %v1244, 0.2
    %v1566 = vmul.f32 %v1246, 0.2
    %v1567 = vmul.f32 %v1437, 0.2
    %v1568 = vmul.f32 %v1439, 0.2
    %v1569 = vmax.f32 %v1090, %v1441
    %v1570 = vmax.f32 %v1092, %v1442
    %v1571 = vmax.f32 %v1283, %v1443
    %v1572 = vmax.f32 %v1285, %v1444
    %v1573 = vmax.f32 %v1094, %v1445
    %v1574 = vmax.f32 %v1096, %v1446
    %v1575 = vmax.f32 %v1287, %v1447
    %v1576 = vmax.f32 %v1289, %v1448
    %v1577 = vmax.f32 %v1100, %v1449
    %v1578 = vmax.f32 %v1102, %v1450
    %v1579 = vmax.f32 %v1293, %v1451
    %v1580 = vmax.f32 %v1295, %v1452
    %v1581 = vmax.f32 %v1104, %v1453
    %v1582 = vmax.f32 %v1106, %v1454
    %v1583 = vmax.f32 %v1297, %v1455
    %v1584 = vmax.f32 %v1299, %v1456
    %v1585 = vmax.f32 %v1110, %v1457
    %v1586 = vmax.f32 %v1112, %v1458
    %v1587 = vmax.f32 %v1303, %v1459
    %v1588 = vmax.f32 %v1305, %v1460
    %v1589 = vmax.f32 %v1114, %v1461
    %v1590 = vmax.f32 %v1116, %v1462
    %v1591 = vmax.f32 %v1307, %v1463
    %v1592 = vmax.f32 %v1309, %v1464
    %v1593 = vmax.f32 %v1120, %v1465
    %v1594 = vmax.f32 %v1122, %v1466
    %v1595 = vmax.f32 %v1313, %v1467
    %v1596 = vmax.f32 %v1315, %v1468
    %v1597 = vmax.f32 %v1124, %v1469
    %v1598 = vmax.f32 %v1126, %v1470
    %v1599 = vmax.f32 %v1317, %v1471
    %v1600 = vmax.f32 %v1319, %v1472
    %v1601 = vmax.f32 %v1130, %v1473
    %v1602 = vmax.f32 %v1132, %v1474
    %v1603 = vmax.f32 %v1323, %v1475
    %v1604 = vmax.f32 %v1325, %v1476
    %v1605 = vmax.f32 %v1134, %v1477
    %v1606 = vmax.f32 %v1136, %v1478
    %v1607 = vmax.f32 %v1327, %v1479
    %v1608 = vmax.f32 %v1329, %v1480
    %v1609 = vmax.f32 %v1140, %v1481
    %v1610 = vmax.f32 %v1142, %v1482
    %v1611 = vmax.f32 %v1333, %v1483
    %v1612 = vmax.f32 %v1335, %v1484
    %v1613 = vmax.f32 %v1144, %v1485
    %v1614 = vmax.f32 %v1146, %v1486
    %v1615 = vmax.f32 %v1337, %v1487
    %v1616 = vmax.f32 %v1339, %v1488
    %v1617 = vmax.f32 %v1150, %v1489
    %v1618 = vmax.f32 %v1152, %v1490
    %v1619 = vmax.f32 %v1343, %v1491
    %v1620 = vmax.f32 %v1345, %v1492
    %v1621 = vmax.f32 %v1154, %v1493
    %v1622 = vmax.f32 %v1156, %v1494
    %v1623 = vmax.f32 %v1347, %v1495
    %v1624 = vmax.f32 %v1349, %v1496
    %v1625 = vmax.f32 %v1160, %v1497
    %v1626 = vmax.f32 %v1162, %v1498
    %v1627 = vmax.f32 %v1353, %v1499
    %v1628 = vmax.f32 %v1355, %v1500
    %v1629 = vmax.f32 %v1164, %v1501
    %v1630 = vmax.f32 %v1166, %v1502
    %v1631 = vmax.f32 %v1357, %v1503
    %v1632 = vmax.f32 %v1359, %v1504
    %v1633 = vmax.f32 %v1170, %v1505
    %v1634 = vmax.f32 %v1172, %v1506
    %v1635 = vmax.f32 %v1363, %v1507
    %v1636 = vmax.f32 %v1365, %v1508
    %v1637 = vmax.f32 %v1174, %v1509
    %v1638 = vmax.f32 %v1176, %v1510
    %v1639 = vmax.f32 %v1367, %v1511
    %v1640 = vmax.f32 %v1369, %v1512
    %v1641 = vmax.f32 %v1180, %v1513
    %v1642 = vmax.f32 %v1182, %v1514
    %v1643 = vmax.f32 %v1373, %v1515
    %v1644 = vmax.f32 %v1375, %v1516
    %v1645 = vmax.f32 %v1184, %v1517
    %v1646 = vmax.f32 %v1186, %v1518
    %v1647 = vmax.f32 %v1377, %v1519
    %v1648 = vmax.f32 %v1379, %v1520
    %v1649 = vmax.f32 %v1190, %v1521
    %v1650 = vmax.f32 %v1192, %v1522
    %v1651 = vmax.f32 %v1383, %v1523
    %v1652 = vmax.f32 %v1385, %v1524
    %v1653 = vmax.f32 %v1194, %v1525
    %v1654 = vmax.f32 %v1196, %v1526
    %v1655 = vmax.f32 %v1387, %v1527
    %v1656 = vmax.f32 %v1389, %v1528
    %v1657 = vmax.f32 %v1200, %v1529
    %v1658 = vmax.f32 %v1202, %v1530
    %v1659 = vmax.f32 %v1393, %v1531
    %v1660 = vmax.f32 %v1395, %v1532
    %v1661 = vmax.f32 %v1204, %v1533
    %v1662 = vmax.f32 %v1206, %v1534
    %v1663 = vmax.f32 %v1397, %v1535
    %v1664 = vmax.f32 %v1399, %v1536
    %v1665 = vmax.f32 %v1210, %v1537
    %v1666 = vmax.f32 %v1212, %v1538
    %v1667 = vmax.f32 %v1403, %v1539
    %v1668 = vmax.f32 %v1405, %v1540
    %v1669 = vmax.f32 %v1214, %v1541
    %v1670 = vmax.f32 %v1216, %v1542
    %v1671 = vmax.f32 %v1407, %v1543
    %v1672 = vmax.f32 %v1409, %v1544
    %v1673 = vmax.f32 %v1220, %v1545
    %v1674 = vmax.f32 %v1222, %v1546
    %v1675 = vmax.f32 %v1413, %v1547
    %v1676 = vmax.f32 %v1415, %v1548
    %v1677 = vmax.f32 %v1224, %v1549
    %v1678 = vmax.f32 %v1226, %v1550
    %v1679 = vmax.f32 %v1417, %v1551
    %v1680 = vmax.f32 %v1419, %v1552
    %v1681 = vmax.f32 %v1230, %v1553
    %v1682 = vmax.f32 %v1232, %v1554
    %v1683 = vmax.f32 %v1423, %v1555
    %v1684 = vmax.f32 %v1425, %v1556
    %v1685 = vmax.f32 %v1234, %v1557
    %v1686 = vmax.f32 %v1236, %v1558
    %v1687 = vmax.f32 %v1427, %v1559
    %v1688 = vmax.f32 %v1429, %v1560
    %v1689 = vmax.f32 %v1240, %v1561
    %v1690 = vmax.f32 %v1242, %v1562
    %v1691 = vmax.f32 %v1433, %v1563
    %v1692 = vmax.f32 %v1435, %v1564
    %v1693 = vmax.f32 %v1244, %v1565
    %v1694 = vmax.f32 %v1246, %v1566
    %v1695 = vmax.f32 %v1437, %v1567
    %v1696 = vmax.f32 %v1439, %v1568
    %v1697 = vpack.c.bf16 %v1573, %v1569
    %v1698 = vpack.c.bf16 %v1574, %v1570
    %v1699 = vpack.c.bf16 %v1575, %v1571
    %v1700 = vpack.c.bf16 %v1576, %v1572
    %v1701 = vpack.c.bf16 %v1581, %v1577
    %v1702 = vpack.c.bf16 %v1582, %v1578
    %v1703 = vpack.c.bf16 %v1583, %v1579
    %v1704 = vpack.c.bf16 %v1584, %v1580
    %v1705 = vpack.c.bf16 %v1589, %v1585
    %v1706 = vpack.c.bf16 %v1590, %v1586
    %v1707 = vpack.c.bf16 %v1591, %v1587
    %v1708 = vpack.c.bf16 %v1592, %v1588
    %v1709 = vpack.c.bf16 %v1597, %v1593
    %v1710 = vpack.c.bf16 %v1598, %v1594
    %v1711 = vpack.c.bf16 %v1599, %v1595
    %v1712 = vpack.c.bf16 %v1600, %v1596
    %v1713 = vpack.c.bf16 %v1605, %v1601
    %v1714 = vpack.c.bf16 %v1606, %v1602
    %v1715 = vpack.c.bf16 %v1607, %v1603
    %v1716 = vpack.c.bf16 %v1608, %v1604
    %v1717 = vpack.c.bf16 %v1613, %v1609
    %v1718 = vpack.c.bf16 %v1614, %v1610
    %v1719 = vpack.c.bf16 %v1615, %v1611
    %v1720 = vpack.c.bf16 %v1616, %v1612
    %v1721 = vpack.c.bf16 %v1621, %v1617
    %v1722 = vpack.c.bf16 %v1622, %v1618
    %v1723 = vpack.c.bf16 %v1623, %v1619
    %v1724 = vpack.c.bf16 %v1624, %v1620
    %v1725 = vpack.c.bf16 %v1629, %v1625
    %v1726 = vpack.c.bf16 %v1630, %v1626
    %v1727 = vpack.c.bf16 %v1631, %v1627
    %v1728 = vpack.c.bf16 %v1632, %v1628
    %v1729 = vpack.c.bf16 %v1637, %v1633
    %v1730 = vpack.c.bf16 %v1638, %v1634
    %v1731 = vpack.c.bf16 %v1639, %v1635
    %v1732 = vpack.c.bf16 %v1640, %v1636
    %v1733 = vpack.c.bf16 %v1645, %v1641
    %v1734 = vpack.c.bf16 %v1646, %v1642
    %v1735 = vpack.c.bf16 %v1647, %v1643
    %v1736 = vpack.c.bf16 %v1648, %v1644
    %v1737 = vpack.c.bf16 %v1653, %v1649
    %v1738 = vpack.c.bf16 %v1654, %v1650
    %v1739 = vpack.c.bf16 %v1655, %v1651
    %v1740 = vpack.c.bf16 %v1656, %v1652
    %v1741 = vpack.c.bf16 %v1661, %v1657
    %v1742 = vpack.c.bf16 %v1662, %v1658
    %v1743 = vpack.c.bf16 %v1663, %v1659
    %v1744 = vpack.c.bf16 %v1664, %v1660
    %v1745 = vpack.c.bf16 %v1669, %v1665
    %v1746 = vpack.c.bf16 %v1670, %v1666
    %v1747 = vpack.c.bf16 %v1671, %v1667
    %v1748 = vpack.c.bf16 %v1672, %v1668
    %v1749 = vpack.c.bf16 %v1677, %v1673
    %v1750 = vpack.c.bf16 %v1678, %v1674
    %v1751 = vpack.c.bf16 %v1679, %v1675
    %v1752 = vpack.c.bf16 %v1680, %v1676
    %v1753 = vpack.c.bf16 %v1685, %v1681
    %v1754 = vpack.c.bf16 %v1686, %v1682
    %v1755 = vpack.c.bf16 %v1687, %v1683
    %v1756 = vpack.c.bf16 %v1688, %v1684
    %v1757 = vpack.c.bf16 %v1693, %v1689
    %v1758 = vpack.c.bf16 %v1694, %v1690
    %v1759 = vpack.c.bf16 %v1695, %v1691
    %v1760 = vpack.c.bf16 %v1696, %v1692
    %v1761 = vld [vmem:[#allocation5] sm:$0xff]
    %v1762 = vld [vmem:[#allocation5 + $0x8] sm:$0xff]
    %v1763 = vld [vmem:[#allocation5 + $0x10] sm:$0xff]
    %v1764 = vld [vmem:[#allocation5 + $0x18] sm:$0xff]
    %v1765 = vld [vmem:[#allocation5 + $0x20] sm:$0xff]
    %v1766 = vld [vmem:[#allocation5 + $0x28] sm:$0xff]
    %v1767 = vld [vmem:[#allocation5 + $0x30] sm:$0xff]
    %v1768 = vld [vmem:[#allocation5 + $0x38] sm:$0xff]
    %v1769 = vld [vmem:[#allocation5 + $0x40] sm:$0xff]
    %v1770 = vld [vmem:[#allocation5 + $0x48] sm:$0xff]
    %v1771 = vld [vmem:[#allocation5 + $0x50] sm:$0xff]
    %v1772 = vld [vmem:[#allocation5 + $0x58] sm:$0xff]
    %v1773 = vld [vmem:[#allocation5 + $0x60] sm:$0xff]
    %v1774 = vld [vmem:[#allocation5 + $0x68] sm:$0xff]
    %v1775 = vld [vmem:[#allocation5 + $0x70] sm:$0xff]
    %v1776 = vld [vmem:[#allocation5 + $0x78] sm:$0xff]
    %v1777 = vld [vmem:[#allocation5 + $0x80] sm:$0xff]
    %v1778 = vld [vmem:[#allocation5 + $0x88] sm:$0xff]
    %v1779 = vld [vmem:[#allocation5 + $0x90] sm:$0xff]
    %v1780 = vld [vmem:[#allocation5 + $0x98] sm:$0xff]
    %v1781 = vld [vmem:[#allocation5 + $0xa0] sm:$0xff]
    %v1782 = vld [vmem:[#allocation5 + $0xa8] sm:$0xff]
    %v1783 = vld [vmem:[#allocation5 + $0xb0] sm:$0xff]
    %v1784 = vld [vmem:[#allocation5 + $0xb8] sm:$0xff]
    %v1785 = vld [vmem:[#allocation5 + $0xc0] sm:$0xff]
    %v1786 = vld [vmem:[#allocation5 + $0xc8] sm:$0xff]
    %v1787 = vld [vmem:[#allocation5 + $0xd0] sm:$0xff]
    %v1788 = vld [vmem:[#allocation5 + $0xd8] sm:$0xff]
    %v1789 = vld [vmem:[#allocation5 + $0xe0] sm:$0xff]
    %v1790 = vld [vmem:[#allocation5 + $0xe8] sm:$0xff]
    %v1791 = vld [vmem:[#allocation5 + $0xf0] sm:$0xff]
    %v1792 = vld [vmem:[#allocation5 + $0xf8] sm:$0xff]
    %v1793 = vld [vmem:[#allocation5 + $0x100] sm:$0xff]
    %v1794 = vld [vmem:[#allocation5 + $0x108] sm:$0xff]
    %v1795 = vld [vmem:[#allocation5 + $0x110] sm:$0xff]
    %v1796 = vld [vmem:[#allocation5 + $0x118] sm:$0xff]
    %v1797 = vld [vmem:[#allocation5 + $0x120] sm:$0xff]
    %v1798 = vld [vmem:[#allocation5 + $0x128] sm:$0xff]
    %v1799 = vld [vmem:[#allocation5 + $0x130] sm:$0xff]
    %v1800 = vld [vmem:[#allocation5 + $0x138] sm:$0xff]
    %v1801 = vld [vmem:[#allocation5 + $0x140] sm:$0xff]
    %v1802 = vld [vmem:[#allocation5 + $0x148] sm:$0xff]
    %v1803 = vld [vmem:[#allocation5 + $0x150] sm:$0xff]
    %v1804 = vld [vmem:[#allocation5 + $0x158] sm:$0xff]
    %v1805 = vld [vmem:[#allocation5 + $0x160] sm:$0xff]
    %v1806 = vld [vmem:[#allocation5 + $0x168] sm:$0xff]
    %v1807 = vld [vmem:[#allocation5 + $0x170] sm:$0xff]
    %v1808 = vld [vmem:[#allocation5 + $0x178] sm:$0xff]
    %v1809 = vld [vmem:[#allocation5 + $0x180] sm:$0xff]
    %v1810 = vld [vmem:[#allocation5 + $0x188] sm:$0xff]
    %v1811 = vld [vmem:[#allocation5 + $0x190] sm:$0xff]
    %v1812 = vld [vmem:[#allocation5 + $0x198] sm:$0xff]
    %v1813 = vld [vmem:[#allocation5 + $0x1a0] sm:$0xff]
    %v1814 = vld [vmem:[#allocation5 + $0x1a8] sm:$0xff]
    %v1815 = vld [vmem:[#allocation5 + $0x1b0] sm:$0xff]
    %v1816 = vld [vmem:[#allocation5 + $0x1b8] sm:$0xff]
    %v1817 = vld [vmem:[#allocation5 + $0x1c0] sm:$0xff]
    %v1818 = vld [vmem:[#allocation5 + $0x1c8] sm:$0xff]
    %v1819 = vld [vmem:[#allocation5 + $0x1d0] sm:$0xff]
    %v1820 = vld [vmem:[#allocation5 + $0x1d8] sm:$0xff]
    %v1821 = vld [vmem:[#allocation5 + $0x1e0] sm:$0xff]
    %v1822 = vld [vmem:[#allocation5 + $0x1e8] sm:$0xff]
    %v1823 = vld [vmem:[#allocation5 + $0x1f0] sm:$0xff]
    %v1824 = vld [vmem:[#allocation5 + $0x1f8] sm:$0xff]
    %v1825 = vld [vmem:[#allocation5 + $0x200] sm:$0xff]
    %v1826 = vld [vmem:[#allocation5 + $0x208] sm:$0xff]
    %v1827 = vld [vmem:[#allocation5 + $0x210] sm:$0xff]
    %v1828 = vld [vmem:[#allocation5 + $0x218] sm:$0xff]
    %v1829 = vld [vmem:[#allocation5 + $0x220] sm:$0xff]
    %v1830 = vld [vmem:[#allocation5 + $0x228] sm:$0xff]
    %v1831 = vld [vmem:[#allocation5 + $0x230] sm:$0xff]
    %v1832 = vld [vmem:[#allocation5 + $0x238] sm:$0xff]
    %v1833 = vld [vmem:[#allocation5 + $0x240] sm:$0xff]
    %v1834 = vld [vmem:[#allocation5 + $0x248] sm:$0xff]
    %v1835 = vld [vmem:[#allocation5 + $0x250] sm:$0xff]
    %v1836 = vld [vmem:[#allocation5 + $0x258] sm:$0xff]
    %v1837 = vld [vmem:[#allocation5 + $0x260] sm:$0xff]
    %v1838 = vld [vmem:[#allocation5 + $0x268] sm:$0xff]
    %v1839 = vld [vmem:[#allocation5 + $0x270] sm:$0xff]
    %v1840 = vld [vmem:[#allocation5 + $0x278] sm:$0xff]
    %v1841 = vld [vmem:[#allocation5 + $0x280] sm:$0xff]
    %v1842 = vld [vmem:[#allocation5 + $0x288] sm:$0xff]
    %v1843 = vld [vmem:[#allocation5 + $0x290] sm:$0xff]
    %v1844 = vld [vmem:[#allocation5 + $0x298] sm:$0xff]
    %v1845 = vld [vmem:[#allocation5 + $0x2a0] sm:$0xff]
    %v1846 = vld [vmem:[#allocation5 + $0x2a8] sm:$0xff]
    %v1847 = vld [vmem:[#allocation5 + $0x2b0] sm:$0xff]
    %v1848 = vld [vmem:[#allocation5 + $0x2b8] sm:$0xff]
    %v1849 = vld [vmem:[#allocation5 + $0x2c0] sm:$0xff]
    %v1850 = vld [vmem:[#allocation5 + $0x2c8] sm:$0xff]
    %v1851 = vld [vmem:[#allocation5 + $0x2d0] sm:$0xff]
    %v1852 = vld [vmem:[#allocation5 + $0x2d8] sm:$0xff]
    %v1853 = vld [vmem:[#allocation5 + $0x2e0] sm:$0xff]
    %v1854 = vld [vmem:[#allocation5 + $0x2e8] sm:$0xff]
    %v1855 = vld [vmem:[#allocation5 + $0x2f0] sm:$0xff]
    %v1856 = vld [vmem:[#allocation5 + $0x2f8] sm:$0xff]
    %v1857 = vld [vmem:[#allocation5 + $0x300] sm:$0xff]
    %v1858 = vld [vmem:[#allocation5 + $0x308] sm:$0xff]
    %v1859 = vld [vmem:[#allocation5 + $0x310] sm:$0xff]
    %v1860 = vld [vmem:[#allocation5 + $0x318] sm:$0xff]
    %v1861 = vld [vmem:[#allocation5 + $0x320] sm:$0xff]
    %v1862 = vld [vmem:[#allocation5 + $0x328] sm:$0xff]
    %v1863 = vld [vmem:[#allocation5 + $0x330] sm:$0xff]
    %v1864 = vld [vmem:[#allocation5 + $0x338] sm:$0xff]
    %v1865 = vld [vmem:[#allocation5 + $0x340] sm:$0xff]
    %v1866 = vld [vmem:[#allocation5 + $0x348] sm:$0xff]
    %v1867 = vld [vmem:[#allocation5 + $0x350] sm:$0xff]
    %v1868 = vld [vmem:[#allocation5 + $0x358] sm:$0xff]
    %v1869 = vld [vmem:[#allocation5 + $0x360] sm:$0xff]
    %v1870 = vld [vmem:[#allocation5 + $0x368] sm:$0xff]
    %v1871 = vld [vmem:[#allocation5 + $0x370] sm:$0xff]
    %v1872 = vld [vmem:[#allocation5 + $0x378] sm:$0xff]
    %v1873 = vld [vmem:[#allocation5 + $0x380] sm:$0xff]
    %v1874 = vld [vmem:[#allocation5 + $0x388] sm:$0xff]
    %v1875 = vld [vmem:[#allocation5 + $0x390] sm:$0xff]
    %v1876 = vld [vmem:[#allocation5 + $0x398] sm:$0xff]
    %v1877 = vld [vmem:[#allocation5 + $0x3a0] sm:$0xff]
    %v1878 = vld [vmem:[#allocation5 + $0x3a8] sm:$0xff]
    %v1879 = vld [vmem:[#allocation5 + $0x3b0] sm:$0xff]
    %v1880 = vld [vmem:[#allocation5 + $0x3b8] sm:$0xff]
    %v1881 = vld [vmem:[#allocation5 + $0x3c0] sm:$0xff]
    %v1882 = vld [vmem:[#allocation5 + $0x3c8] sm:$0xff]
    %v1883 = vld [vmem:[#allocation5 + $0x3d0] sm:$0xff]
    %v1884 = vld [vmem:[#allocation5 + $0x3d8] sm:$0xff]
    %v1885 = vld [vmem:[#allocation5 + $0x3e0] sm:$0xff]
    %v1886 = vld [vmem:[#allocation5 + $0x3e8] sm:$0xff]
    %v1887 = vld [vmem:[#allocation5 + $0x3f0] sm:$0xff]
    %v1888 = vld [vmem:[#allocation5 + $0x3f8] sm:$0xff]
    %v1889 = vld [vmem:[#allocation5 + $0x400] sm:$0xff]
    %v1890 = vld [vmem:[#allocation5 + $0x408] sm:$0xff]
    %v1891 = vld [vmem:[#allocation5 + $0x410] sm:$0xff]
    %v1892 = vld [vmem:[#allocation5 + $0x418] sm:$0xff]
    %v1893 = vld [vmem:[#allocation5 + $0x420] sm:$0xff]
    %v1894 = vld [vmem:[#allocation5 + $0x428] sm:$0xff]
    %v1895 = vld [vmem:[#allocation5 + $0x430] sm:$0xff]
    %v1896 = vld [vmem:[#allocation5 + $0x438] sm:$0xff]
    %v1897 = vld [vmem:[#allocation5 + $0x440] sm:$0xff]
    %v1898 = vld [vmem:[#allocation5 + $0x448] sm:$0xff]
    %v1899 = vld [vmem:[#allocation5 + $0x450] sm:$0xff]
    %v1900 = vld [vmem:[#allocation5 + $0x458] sm:$0xff]
    %v1901 = vld [vmem:[#allocation5 + $0x460] sm:$0xff]
    %v1902 = vld [vmem:[#allocation5 + $0x468] sm:$0xff]
    %v1903 = vld [vmem:[#allocation5 + $0x470] sm:$0xff]
    %v1904 = vld [vmem:[#allocation5 + $0x478] sm:$0xff]
    %v1905 = vld [vmem:[#allocation5 + $0x480] sm:$0xff]
    %v1906 = vld [vmem:[#allocation5 + $0x488] sm:$0xff]
    %v1907 = vld [vmem:[#allocation5 + $0x490] sm:$0xff]
    %v1908 = vld [vmem:[#allocation5 + $0x498] sm:$0xff]
    %v1909 = vld [vmem:[#allocation5 + $0x4a0] sm:$0xff]
    %v1910 = vld [vmem:[#allocation5 + $0x4a8] sm:$0xff]
    %v1911 = vld [vmem:[#allocation5 + $0x4b0] sm:$0xff]
    %v1912 = vld [vmem:[#allocation5 + $0x4b8] sm:$0xff]
    %v1913 = vld [vmem:[#allocation5 + $0x4c0] sm:$0xff]
    %v1914 = vld [vmem:[#allocation5 + $0x4c8] sm:$0xff]
    %v1915 = vld [vmem:[#allocation5 + $0x4d0] sm:$0xff]
    %v1916 = vld [vmem:[#allocation5 + $0x4d8] sm:$0xff]
    %v1917 = vld [vmem:[#allocation5 + $0x4e0] sm:$0xff]
    %v1918 = vld [vmem:[#allocation5 + $0x4e8] sm:$0xff]
    %v1919 = vld [vmem:[#allocation5 + $0x4f0] sm:$0xff]
    %v1920 = vld [vmem:[#allocation5 + $0x4f8] sm:$0xff]
    %v1921 = vld [vmem:[#allocation5 + $0x500] sm:$0xff]
    %v1922 = vld [vmem:[#allocation5 + $0x508] sm:$0xff]
    %v1923 = vld [vmem:[#allocation5 + $0x510] sm:$0xff]
    %v1924 = vld [vmem:[#allocation5 + $0x518] sm:$0xff]
    %v1925 = vld [vmem:[#allocation5 + $0x520] sm:$0xff]
    %v1926 = vld [vmem:[#allocation5 + $0x528] sm:$0xff]
    %v1927 = vld [vmem:[#allocation5 + $0x530] sm:$0xff]
    %v1928 = vld [vmem:[#allocation5 + $0x538] sm:$0xff]
    %v1929 = vld [vmem:[#allocation5 + $0x540] sm:$0xff]
    %v1930 = vld [vmem:[#allocation5 + $0x548] sm:$0xff]
    %v1931 = vld [vmem:[#allocation5 + $0x550] sm:$0xff]
    %v1932 = vld [vmem:[#allocation5 + $0x558] sm:$0xff]
    %v1933 = vld [vmem:[#allocation5 + $0x560] sm:$0xff]
    %v1934 = vld [vmem:[#allocation5 + $0x568] sm:$0xff]
    %v1935 = vld [vmem:[#allocation5 + $0x570] sm:$0xff]
    %v1936 = vld [vmem:[#allocation5 + $0x578] sm:$0xff]
    %v1937 = vld [vmem:[#allocation5 + $0x580] sm:$0xff]
    %v1938 = vld [vmem:[#allocation5 + $0x588] sm:$0xff]
    %v1939 = vld [vmem:[#allocation5 + $0x590] sm:$0xff]
    %v1940 = vld [vmem:[#allocation5 + $0x598] sm:$0xff]
    %v1941 = vld [vmem:[#allocation5 + $0x5a0] sm:$0xff]
    %v1942 = vld [vmem:[#allocation5 + $0x5a8] sm:$0xff]
    %v1943 = vld [vmem:[#allocation5 + $0x5b0] sm:$0xff]
    %v1944 = vld [vmem:[#allocation5 + $0x5b8] sm:$0xff]
    %v1945 = vld [vmem:[#allocation5 + $0x5c0] sm:$0xff]
    %v1946 = vld [vmem:[#allocation5 + $0x5c8] sm:$0xff]
    %v1947 = vld [vmem:[#allocation5 + $0x5d0] sm:$0xff]
    %v1948 = vld [vmem:[#allocation5 + $0x5d8] sm:$0xff]
    %v1949 = vld [vmem:[#allocation5 + $0x5e0] sm:$0xff]
    %v1950 = vld [vmem:[#allocation5 + $0x5e8] sm:$0xff]
    %v1951 = vld [vmem:[#allocation5 + $0x5f0] sm:$0xff]
    %v1952 = vld [vmem:[#allocation5 + $0x5f8] sm:$0xff]
    %v1953 = vld [vmem:[#allocation5 + $0x600] sm:$0xff]
    %v1954 = vld [vmem:[#allocation5 + $0x608] sm:$0xff]
    %v1955 = vld [vmem:[#allocation5 + $0x610] sm:$0xff]
    %v1956 = vld [vmem:[#allocation5 + $0x618] sm:$0xff]
    %v1957 = vld [vmem:[#allocation5 + $0x620] sm:$0xff]
    %v1958 = vld [vmem:[#allocation5 + $0x628] sm:$0xff]
    %v1959 = vld [vmem:[#allocation5 + $0x630] sm:$0xff]
    %v1960 = vld [vmem:[#allocation5 + $0x638] sm:$0xff]
    %v1961 = vld [vmem:[#allocation5 + $0x640] sm:$0xff]
    %v1962 = vld [vmem:[#allocation5 + $0x648] sm:$0xff]
    %v1963 = vld [vmem:[#allocation5 + $0x650] sm:$0xff]
    %v1964 = vld [vmem:[#allocation5 + $0x658] sm:$0xff]
    %v1965 = vld [vmem:[#allocation5 + $0x660] sm:$0xff]
    %v1966 = vld [vmem:[#allocation5 + $0x668] sm:$0xff]
    %v1967 = vld [vmem:[#allocation5 + $0x670] sm:$0xff]
    %v1968 = vld [vmem:[#allocation5 + $0x678] sm:$0xff]
    %v1969 = vld [vmem:[#allocation5 + $0x680] sm:$0xff]
    %v1970 = vld [vmem:[#allocation5 + $0x688] sm:$0xff]
    %v1971 = vld [vmem:[#allocation5 + $0x690] sm:$0xff]
    %v1972 = vld [vmem:[#allocation5 + $0x698] sm:$0xff]
    %v1973 = vld [vmem:[#allocation5 + $0x6a0] sm:$0xff]
    %v1974 = vld [vmem:[#allocation5 + $0x6a8] sm:$0xff]
    %v1975 = vld [vmem:[#allocation5 + $0x6b0] sm:$0xff]
    %v1976 = vld [vmem:[#allocation5 + $0x6b8] sm:$0xff]
    %v1977 = vld [vmem:[#allocation5 + $0x6c0] sm:$0xff]
    %v1978 = vld [vmem:[#allocation5 + $0x6c8] sm:$0xff]
    %v1979 = vld [vmem:[#allocation5 + $0x6d0] sm:$0xff]
    %v1980 = vld [vmem:[#allocation5 + $0x6d8] sm:$0xff]
    %v1981 = vld [vmem:[#allocation5 + $0x6e0] sm:$0xff]
    %v1982 = vld [vmem:[#allocation5 + $0x6e8] sm:$0xff]
    %v1983 = vld [vmem:[#allocation5 + $0x6f0] sm:$0xff]
    %v1984 = vld [vmem:[#allocation5 + $0x6f8] sm:$0xff]
    %v1985 = vld [vmem:[#allocation5 + $0x700] sm:$0xff]
    %v1986 = vld [vmem:[#allocation5 + $0x708] sm:$0xff]
    %v1987 = vld [vmem:[#allocation5 + $0x710] sm:$0xff]
    %v1988 = vld [vmem:[#allocation5 + $0x718] sm:$0xff]
    %v1989 = vld [vmem:[#allocation5 + $0x720] sm:$0xff]
    %v1990 = vld [vmem:[#allocation5 + $0x728] sm:$0xff]
    %v1991 = vld [vmem:[#allocation5 + $0x730] sm:$0xff]
    %v1992 = vld [vmem:[#allocation5 + $0x738] sm:$0xff]
    %v1993 = vld [vmem:[#allocation5 + $0x740] sm:$0xff]
    %v1994 = vld [vmem:[#allocation5 + $0x748] sm:$0xff]
    %v1995 = vld [vmem:[#allocation5 + $0x750] sm:$0xff]
    %v1996 = vld [vmem:[#allocation5 + $0x758] sm:$0xff]
    %v1997 = vld [vmem:[#allocation5 + $0x760] sm:$0xff]
    %v1998 = vld [vmem:[#allocation5 + $0x768] sm:$0xff]
    %v1999 = vld [vmem:[#allocation5 + $0x770] sm:$0xff]
    %v2000 = vld [vmem:[#allocation5 + $0x778] sm:$0xff]
    %v2001 = vld [vmem:[#allocation5 + $0x780] sm:$0xff]
    %v2002 = vld [vmem:[#allocation5 + $0x788] sm:$0xff]
    %v2003 = vld [vmem:[#allocation5 + $0x790] sm:$0xff]
    %v2004 = vld [vmem:[#allocation5 + $0x798] sm:$0xff]
    %v2005 = vld [vmem:[#allocation5 + $0x7a0] sm:$0xff]
    %v2006 = vld [vmem:[#allocation5 + $0x7a8] sm:$0xff]
    %v2007 = vld [vmem:[#allocation5 + $0x7b0] sm:$0xff]
    %v2008 = vld [vmem:[#allocation5 + $0x7b8] sm:$0xff]
    %v2009 = vld [vmem:[#allocation5 + $0x7c0] sm:$0xff]
    %v2010 = vld [vmem:[#allocation5 + $0x7c8] sm:$0xff]
    %v2011 = vld [vmem:[#allocation5 + $0x7d0] sm:$0xff]
    %v2012 = vld [vmem:[#allocation5 + $0x7d8] sm:$0xff]
    %v2013 = vld [vmem:[#allocation5 + $0x7e0] sm:$0xff]
    %v2014 = vld [vmem:[#allocation5 + $0x7e8] sm:$0xff]
    %v2015 = vld [vmem:[#allocation5 + $0x7f0] sm:$0xff]
    %v2016 = vld [vmem:[#allocation5 + $0x7f8] sm:$0xff]
    %v2017 = vld [vmem:[%s6] sm:$0xff]
    %v2019 = vlaneseq
    %v2020 = vshrl.u32 %v2019, 7
    %v2021 = vsub.s32 0, %v2020
    %v2022 = vrot.slane %v2017, %v2021
    %v2023 = vlaneseq
    %v2024 = vshrl.u32 %v2023, 7
    %v2025 = vsub.s32 1, %v2024
    %v2026 = vrot.slane %v2017, %v2025
    %v2027 = vlaneseq
    %v2028 = vshrl.u32 %v2027, 7
    %v2029 = vsub.s32 2, %v2028
    %v2030 = vrot.slane %v2017, %v2029
    %v2031 = vlaneseq
    %v2032 = vshrl.u32 %v2031, 7
    %v2033 = vsub.s32 3, %v2032
    %v2034 = vrot.slane %v2017, %v2033
    %v2035 = vlaneseq
    %v2036 = vshrl.u32 %v2035, 7
    %v2037 = vsub.s32 4, %v2036
    %v2038 = vrot.slane %v2017, %v2037
    %v2039 = vlaneseq
    %v2040 = vshrl.u32 %v2039, 7
    %v2041 = vsub.s32 5, %v2040
    %v2042 = vrot.slane %v2017, %v2041
    %v2043 = vlaneseq
    %v2044 = vshrl.u32 %v2043, 7
    %v2045 = vsub.s32 6, %v2044
    %v2046 = vrot.slane %v2017, %v2045
    %v2047 = vlaneseq
    %v2048 = vshrl.u32 %v2047, 7
    %v2049 = vsub.s32 7, %v2048
    %v2050 = vrot.slane %v2017, %v2049
    %v2315 = vunpack.c.l.b16 %v1761
    %v2316 = vunpack.c.h.b16 %v1761
    %v2317 = vunpack.c.l.b16 %v1762
    %v2318 = vunpack.c.h.b16 %v1762
    %v2319 = vunpack.c.l.b16 %v1763
    %v2320 = vunpack.c.h.b16 %v1763
    %v2321 = vunpack.c.l.b16 %v1764
    %v2322 = vunpack.c.h.b16 %v1764
    %v2323 = vunpack.c.l.b16 %v1765
    %v2324 = vunpack.c.h.b16 %v1765
    %v2325 = vunpack.c.l.b16 %v1766
    %v2326 = vunpack.c.h.b16 %v1766
    %v2327 = vunpack.c.l.b16 %v1767
    %v2328 = vunpack.c.h.b16 %v1767
    %v2329 = vunpack.c.l.b16 %v1768
    %v2330 = vunpack.c.h.b16 %v1768
    %v2331 = vunpack.c.l.b16 %v1769
    %v2332 = vunpack.c.h.b16 %v1769
    %v2333 = vunpack.c.l.b16 %v1770
    %v2334 = vunpack.c.h.b16 %v1770
    %v2335 = vunpack.c.l.b16 %v1771
    %v2336 = vunpack.c.h.b16 %v1771
    %v2337 = vunpack.c.l.b16 %v1772
    %v2338 = vunpack.c.h.b16 %v1772
    %v2339 = vunpack.c.l.b16 %v1773
    %v2340 = vunpack.c.h.b16 %v1773
    %v2341 = vunpack.c.l.b16 %v1774
    %v2342 = vunpack.c.h.b16 %v1774
    %v2343 = vunpack.c.l.b16 %v1775
    %v2344 = vunpack.c.h.b16 %v1775
    %v2345 = vunpack.c.l.b16 %v1776
    %v2346 = vunpack.c.h.b16 %v1776
    %v2347 = vunpack.c.l.b16 %v1777
    %v2348 = vunpack.c.h.b16 %v1777
    %v2349 = vunpack.c.l.b16 %v1778
    %v2350 = vunpack.c.h.b16 %v1778
    %v2351 = vunpack.c.l.b16 %v1779
    %v2352 = vunpack.c.h.b16 %v1779
    %v2353 = vunpack.c.l.b16 %v1780
    %v2354 = vunpack.c.h.b16 %v1780
    %v2355 = vunpack.c.l.b16 %v1781
    %v2356 = vunpack.c.h.b16 %v1781
    %v2357 = vunpack.c.l.b16 %v1782
    %v2358 = vunpack.c.h.b16 %v1782
    %v2359 = vunpack.c.l.b16 %v1783
    %v2360 = vunpack.c.h.b16 %v1783
    %v2361 = vunpack.c.l.b16 %v1784
    %v2362 = vunpack.c.h.b16 %v1784
    %v2363 = vunpack.c.l.b16 %v1785
    %v2364 = vunpack.c.h.b16 %v1785
    %v2365 = vunpack.c.l.b16 %v1786
    %v2366 = vunpack.c.h.b16 %v1786
    %v2367 = vunpack.c.l.b16 %v1787
    %v2368 = vunpack.c.h.b16 %v1787
    %v2369 = vunpack.c.l.b16 %v1788
    %v2370 = vunpack.c.h.b16 %v1788
    %v2371 = vunpack.c.l.b16 %v1789
    %v2372 = vunpack.c.h.b16 %v1789
    %v2373 = vunpack.c.l.b16 %v1790
    %v2374 = vunpack.c.h.b16 %v1790
    %v2375 = vunpack.c.l.b16 %v1791
    %v2376 = vunpack.c.h.b16 %v1791
    %v2377 = vunpack.c.l.b16 %v1792
    %v2378 = vunpack.c.h.b16 %v1792
    %v2379 = vunpack.c.l.b16 %v1793
    %v2380 = vunpack.c.h.b16 %v1793
    %v2381 = vunpack.c.l.b16 %v1794
    %v2382 = vunpack.c.h.b16 %v1794
    %v2383 = vunpack.c.l.b16 %v1795
    %v2384 = vunpack.c.h.b16 %v1795
    %v2385 = vunpack.c.l.b16 %v1796
    %v2386 = vunpack.c.h.b16 %v1796
    %v2387 = vunpack.c.l.b16 %v1797
    %v2388 = vunpack.c.h.b16 %v1797
    %v2389 = vunpack.c.l.b16 %v1798
    %v2390 = vunpack.c.h.b16 %v1798
    %v2391 = vunpack.c.l.b16 %v1799
    %v2392 = vunpack.c.h.b16 %v1799
    %v2393 = vunpack.c.l.b16 %v1800
    %v2394 = vunpack.c.h.b16 %v1800
    %v2395 = vunpack.c.l.b16 %v1801
    %v2396 = vunpack.c.h.b16 %v1801
    %v2397 = vunpack.c.l.b16 %v1802
    %v2398 = vunpack.c.h.b16 %v1802
    %v2399 = vunpack.c.l.b16 %v1803
    %v2400 = vunpack.c.h.b16 %v1803
    %v2401 = vunpack.c.l.b16 %v1804
    %v2402 = vunpack.c.h.b16 %v1804
    %v2403 = vunpack.c.l.b16 %v1805
    %v2404 = vunpack.c.h.b16 %v1805
    %v2405 = vunpack.c.l.b16 %v1806
    %v2406 = vunpack.c.h.b16 %v1806
    %v2407 = vunpack.c.l.b16 %v1807
    %v2408 = vunpack.c.h.b16 %v1807
    %v2409 = vunpack.c.l.b16 %v1808
    %v2410 = vunpack.c.h.b16 %v1808
    %v2411 = vunpack.c.l.b16 %v1809
    %v2412 = vunpack.c.h.b16 %v1809
    %v2413 = vunpack.c.l.b16 %v1810
    %v2414 = vunpack.c.h.b16 %v1810
    %v2415 = vunpack.c.l.b16 %v1811
    %v2416 = vunpack.c.h.b16 %v1811
    %v2417 = vunpack.c.l.b16 %v1812
    %v2418 = vunpack.c.h.b16 %v1812
    %v2419 = vunpack.c.l.b16 %v1813
    %v2420 = vunpack.c.h.b16 %v1813
    %v2421 = vunpack.c.l.b16 %v1814
    %v2422 = vunpack.c.h.b16 %v1814
    %v2423 = vunpack.c.l.b16 %v1815
    %v2424 = vunpack.c.h.b16 %v1815
    %v2425 = vunpack.c.l.b16 %v1816
    %v2426 = vunpack.c.h.b16 %v1816
    %v2427 = vunpack.c.l.b16 %v1817
    %v2428 = vunpack.c.h.b16 %v1817
    %v2429 = vunpack.c.l.b16 %v1818
    %v2430 = vunpack.c.h.b16 %v1818
    %v2431 = vunpack.c.l.b16 %v1819
    %v2432 = vunpack.c.h.b16 %v1819
    %v2433 = vunpack.c.l.b16 %v1820
    %v2434 = vunpack.c.h.b16 %v1820
    %v2435 = vunpack.c.l.b16 %v1821
    %v2436 = vunpack.c.h.b16 %v1821
    %v2437 = vunpack.c.l.b16 %v1822
    %v2438 = vunpack.c.h.b16 %v1822
    %v2439 = vunpack.c.l.b16 %v1823
    %v2440 = vunpack.c.h.b16 %v1823
    %v2441 = vunpack.c.l.b16 %v1824
    %v2442 = vunpack.c.h.b16 %v1824
    %v2443 = vunpack.c.l.b16 %v1825
    %v2444 = vunpack.c.h.b16 %v1825
    %v2445 = vunpack.c.l.b16 %v1826
    %v2446 = vunpack.c.h.b16 %v1826
    %v2447 = vunpack.c.l.b16 %v1827
    %v2448 = vunpack.c.h.b16 %v1827
    %v2449 = vunpack.c.l.b16 %v1828
    %v2450 = vunpack.c.h.b16 %v1828
    %v2451 = vunpack.c.l.b16 %v1829
    %v2452 = vunpack.c.h.b16 %v1829
    %v2453 = vunpack.c.l.b16 %v1830
    %v2454 = vunpack.c.h.b16 %v1830
    %v2455 = vunpack.c.l.b16 %v1831
    %v2456 = vunpack.c.h.b16 %v1831
    %v2457 = vunpack.c.l.b16 %v1832
    %v2458 = vunpack.c.h.b16 %v1832
    %v2459 = vunpack.c.l.b16 %v1833
    %v2460 = vunpack.c.h.b16 %v1833
    %v2461 = vunpack.c.l.b16 %v1834
    %v2462 = vunpack.c.h.b16 %v1834
    %v2463 = vunpack.c.l.b16 %v1835
    %v2464 = vunpack.c.h.b16 %v1835
    %v2465 = vunpack.c.l.b16 %v1836
    %v2466 = vunpack.c.h.b16 %v1836
    %v2467 = vunpack.c.l.b16 %v1837
    %v2468 = vunpack.c.h.b16 %v1837
    %v2469 = vunpack.c.l.b16 %v1838
    %v2470 = vunpack.c.h.b16 %v1838
    %v2471 = vunpack.c.l.b16 %v1839
    %v2472 = vunpack.c.h.b16 %v1839
    %v2473 = vunpack.c.l.b16 %v1840
    %v2474 = vunpack.c.h.b16 %v1840
    %v2475 = vunpack.c.l.b16 %v1841
    %v2476 = vunpack.c.h.b16 %v1841
    %v2477 = vunpack.c.l.b16 %v1842
    %v2478 = vunpack.c.h.b16 %v1842
    %v2479 = vunpack.c.l.b16 %v1843
    %v2480 = vunpack.c.h.b16 %v1843
    %v2481 = vunpack.c.l.b16 %v1844
    %v2482 = vunpack.c.h.b16 %v1844
    %v2483 = vunpack.c.l.b16 %v1845
    %v2484 = vunpack.c.h.b16 %v1845
    %v2485 = vunpack.c.l.b16 %v1846
    %v2486 = vunpack.c.h.b16 %v1846
    %v2487 = vunpack.c.l.b16 %v1847
    %v2488 = vunpack.c.h.b16 %v1847
    %v2489 = vunpack.c.l.b16 %v1848
    %v2490 = vunpack.c.h.b16 %v1848
    %v2491 = vunpack.c.l.b16 %v1849
    %v2492 = vunpack.c.h.b16 %v1849
    %v2493 = vunpack.c.l.b16 %v1850
    %v2494 = vunpack.c.h.b16 %v1850
    %v2495 = vunpack.c.l.b16 %v1851
    %v2496 = vunpack.c.h.b16 %v1851
    %v2497 = vunpack.c.l.b16 %v1852
    %v2498 = vunpack.c.h.b16 %v1852
    %v2499 = vunpack.c.l.b16 %v1853
    %v2500 = vunpack.c.h.b16 %v1853
    %v2501 = vunpack.c.l.b16 %v1854
    %v2502 = vunpack.c.h.b16 %v1854
    %v2503 = vunpack.c.l.b16 %v1855
    %v2504 = vunpack.c.h.b16 %v1855
    %v2505 = vunpack.c.l.b16 %v1856
    %v2506 = vunpack.c.h.b16 %v1856
    %v2507 = vunpack.c.l.b16 %v1857
    %v2508 = vunpack.c.h.b16 %v1857
    %v2509 = vunpack.c.l.b16 %v1858
    %v2510 = vunpack.c.h.b16 %v1858
    %v2511 = vunpack.c.l.b16 %v1859
    %v2512 = vunpack.c.h.b16 %v1859
    %v2513 = vunpack.c.l.b16 %v1860
    %v2514 = vunpack.c.h.b16 %v1860
    %v2515 = vunpack.c.l.b16 %v1861
    %v2516 = vunpack.c.h.b16 %v1861
    %v2517 = vunpack.c.l.b16 %v1862
    %v2518 = vunpack.c.h.b16 %v1862
    %v2519 = vunpack.c.l.b16 %v1863
    %v2520 = vunpack.c.h.b16 %v1863
    %v2521 = vunpack.c.l.b16 %v1864
    %v2522 = vunpack.c.h.b16 %v1864
    %v2523 = vunpack.c.l.b16 %v1865
    %v2524 = vunpack.c.h.b16 %v1865
    %v2525 = vunpack.c.l.b16 %v1866
    %v2526 = vunpack.c.h.b16 %v1866
    %v2527 = vunpack.c.l.b16 %v1867
    %v2528 = vunpack.c.h.b16 %v1867
    %v2529 = vunpack.c.l.b16 %v1868
    %v2530 = vunpack.c.h.b16 %v1868
    %v2531 = vunpack.c.l.b16 %v1869
    %v2532 = vunpack.c.h.b16 %v1869
    %v2533 = vunpack.c.l.b16 %v1870
    %v2534 = vunpack.c.h.b16 %v1870
    %v2535 = vunpack.c.l.b16 %v1871
    %v2536 = vunpack.c.h.b16 %v1871
    %v2537 = vunpack.c.l.b16 %v1872
    %v2538 = vunpack.c.h.b16 %v1872
    %v2539 = vunpack.c.l.b16 %v1873
    %v2540 = vunpack.c.h.b16 %v1873
    %v2541 = vunpack.c.l.b16 %v1874
    %v2542 = vunpack.c.h.b16 %v1874
    %v2543 = vunpack.c.l.b16 %v1875
    %v2544 = vunpack.c.h.b16 %v1875
    %v2545 = vunpack.c.l.b16 %v1876
    %v2546 = vunpack.c.h.b16 %v1876
    %v2547 = vunpack.c.l.b16 %v1877
    %v2548 = vunpack.c.h.b16 %v1877
    %v2549 = vunpack.c.l.b16 %v1878
    %v2550 = vunpack.c.h.b16 %v1878
    %v2551 = vunpack.c.l.b16 %v1879
    %v2552 = vunpack.c.h.b16 %v1879
    %v2553 = vunpack.c.l.b16 %v1880
    %v2554 = vunpack.c.h.b16 %v1880
    %v2555 = vunpack.c.l.b16 %v1881
    %v2556 = vunpack.c.h.b16 %v1881
    %v2557 = vunpack.c.l.b16 %v1882
    %v2558 = vunpack.c.h.b16 %v1882
    %v2559 = vunpack.c.l.b16 %v1883
    %v2560 = vunpack.c.h.b16 %v1883
    %v2561 = vunpack.c.l.b16 %v1884
    %v2562 = vunpack.c.h.b16 %v1884
    %v2563 = vunpack.c.l.b16 %v1885
    %v2564 = vunpack.c.h.b16 %v1885
    %v2565 = vunpack.c.l.b16 %v1886
    %v2566 = vunpack.c.h.b16 %v1886
    %v2567 = vunpack.c.l.b16 %v1887
    %v2568 = vunpack.c.h.b16 %v1887
    %v2569 = vunpack.c.l.b16 %v1888
    %v2570 = vunpack.c.h.b16 %v1888
    %v2571 = vunpack.c.l.b16 %v1889
    %v2572 = vunpack.c.h.b16 %v1889
    %v2573 = vunpack.c.l.b16 %v1890
    %v2574 = vunpack.c.h.b16 %v1890
    %v2575 = vunpack.c.l.b16 %v1891
    %v2576 = vunpack.c.h.b16 %v1891
    %v2577 = vunpack.c.l.b16 %v1892
    %v2578 = vunpack.c.h.b16 %v1892
    %v2579 = vunpack.c.l.b16 %v1893
    %v2580 = vunpack.c.h.b16 %v1893
    %v2581 = vunpack.c.l.b16 %v1894
    %v2582 = vunpack.c.h.b16 %v1894
    %v2583 = vunpack.c.l.b16 %v1895
    %v2584 = vunpack.c.h.b16 %v1895
    %v2585 = vunpack.c.l.b16 %v1896
    %v2586 = vunpack.c.h.b16 %v1896
    %v2587 = vunpack.c.l.b16 %v1897
    %v2588 = vunpack.c.h.b16 %v1897
    %v2589 = vunpack.c.l.b16 %v1898
    %v2590 = vunpack.c.h.b16 %v1898
    %v2591 = vunpack.c.l.b16 %v1899
    %v2592 = vunpack.c.h.b16 %v1899
    %v2593 = vunpack.c.l.b16 %v1900
    %v2594 = vunpack.c.h.b16 %v1900
    %v2595 = vunpack.c.l.b16 %v1901
    %v2596 = vunpack.c.h.b16 %v1901
    %v2597 = vunpack.c.l.b16 %v1902
    %v2598 = vunpack.c.h.b16 %v1902
    %v2599 = vunpack.c.l.b16 %v1903
    %v2600 = vunpack.c.h.b16 %v1903
    %v2601 = vunpack.c.l.b16 %v1904
    %v2602 = vunpack.c.h.b16 %v1904
    %v2603 = vunpack.c.l.b16 %v1905
    %v2604 = vunpack.c.h.b16 %v1905
    %v2605 = vunpack.c.l.b16 %v1906
    %v2606 = vunpack.c.h.b16 %v1906
    %v2607 = vunpack.c.l.b16 %v1907
    %v2608 = vunpack.c.h.b16 %v1907
    %v2609 = vunpack.c.l.b16 %v1908
    %v2610 = vunpack.c.h.b16 %v1908
    %v2611 = vunpack.c.l.b16 %v1909
    %v2612 = vunpack.c.h.b16 %v1909
    %v2613 = vunpack.c.l.b16 %v1910
    %v2614 = vunpack.c.h.b16 %v1910
    %v2615 = vunpack.c.l.b16 %v1911
    %v2616 = vunpack.c.h.b16 %v1911
    %v2617 = vunpack.c.l.b16 %v1912
    %v2618 = vunpack.c.h.b16 %v1912
    %v2619 = vunpack.c.l.b16 %v1913
    %v2620 = vunpack.c.h.b16 %v1913
    %v2621 = vunpack.c.l.b16 %v1914
    %v2622 = vunpack.c.h.b16 %v1914
    %v2623 = vunpack.c.l.b16 %v1915
    %v2624 = vunpack.c.h.b16 %v1915
    %v2625 = vunpack.c.l.b16 %v1916
    %v2626 = vunpack.c.h.b16 %v1916
    %v2627 = vunpack.c.l.b16 %v1917
    %v2628 = vunpack.c.h.b16 %v1917
    %v2629 = vunpack.c.l.b16 %v1918
    %v2630 = vunpack.c.h.b16 %v1918
    %v2631 = vunpack.c.l.b16 %v1919
    %v2632 = vunpack.c.h.b16 %v1919
    %v2633 = vunpack.c.l.b16 %v1920
    %v2634 = vunpack.c.h.b16 %v1920
    %v2635 = vunpack.c.l.b16 %v1921
    %v2636 = vunpack.c.h.b16 %v1921
    %v2637 = vunpack.c.l.b16 %v1922
    %v2638 = vunpack.c.h.b16 %v1922
    %v2639 = vunpack.c.l.b16 %v1923
    %v2640 = vunpack.c.h.b16 %v1923
    %v2641 = vunpack.c.l.b16 %v1924
    %v2642 = vunpack.c.h.b16 %v1924
    %v2643 = vunpack.c.l.b16 %v1925
    %v2644 = vunpack.c.h.b16 %v1925
    %v2645 = vunpack.c.l.b16 %v1926
    %v2646 = vunpack.c.h.b16 %v1926
    %v2647 = vunpack.c.l.b16 %v1927
    %v2648 = vunpack.c.h.b16 %v1927
    %v2649 = vunpack.c.l.b16 %v1928
    %v2650 = vunpack.c.h.b16 %v1928
    %v2651 = vunpack.c.l.b16 %v1929
    %v2652 = vunpack.c.h.b16 %v1929
    %v2653 = vunpack.c.l.b16 %v1930
    %v2654 = vunpack.c.h.b16 %v1930
    %v2655 = vunpack.c.l.b16 %v1931
    %v2656 = vunpack.c.h.b16 %v1931
    %v2657 = vunpack.c.l.b16 %v1932
    %v2658 = vunpack.c.h.b16 %v1932
    %v2659 = vunpack.c.l.b16 %v1933
    %v2660 = vunpack.c.h.b16 %v1933
    %v2661 = vunpack.c.l.b16 %v1934
    %v2662 = vunpack.c.h.b16 %v1934
    %v2663 = vunpack.c.l.b16 %v1935
    %v2664 = vunpack.c.h.b16 %v1935
    %v2665 = vunpack.c.l.b16 %v1936
    %v2666 = vunpack.c.h.b16 %v1936
    %v2667 = vunpack.c.l.b16 %v1937
    %v2668 = vunpack.c.h.b16 %v1937
    %v2669 = vunpack.c.l.b16 %v1938
    %v2670 = vunpack.c.h.b16 %v1938
    %v2671 = vunpack.c.l.b16 %v1939
    %v2672 = vunpack.c.h.b16 %v1939
    %v2673 = vunpack.c.l.b16 %v1940
    %v2674 = vunpack.c.h.b16 %v1940
    %v2675 = vunpack.c.l.b16 %v1941
    %v2676 = vunpack.c.h.b16 %v1941
    %v2677 = vunpack.c.l.b16 %v1942
    %v2678 = vunpack.c.h.b16 %v1942
    %v2679 = vunpack.c.l.b16 %v1943
    %v2680 = vunpack.c.h.b16 %v1943
    %v2681 = vunpack.c.l.b16 %v1944
    %v2682 = vunpack.c.h.b16 %v1944
    %v2683 = vunpack.c.l.b16 %v1945
    %v2684 = vunpack.c.h.b16 %v1945
    %v2685 = vunpack.c.l.b16 %v1946
    %v2686 = vunpack.c.h.b16 %v1946
    %v2687 = vunpack.c.l.b16 %v1947
    %v2688 = vunpack.c.h.b16 %v1947
    %v2689 = vunpack.c.l.b16 %v1948
    %v2690 = vunpack.c.h.b16 %v1948
    %v2691 = vunpack.c.l.b16 %v1949
    %v2692 = vunpack.c.h.b16 %v1949
    %v2693 = vunpack.c.l.b16 %v1950
    %v2694 = vunpack.c.h.b16 %v1950
    %v2695 = vunpack.c.l.b16 %v1951
    %v2696 = vunpack.c.h.b16 %v1951
    %v2697 = vunpack.c.l.b16 %v1952
    %v2698 = vunpack.c.h.b16 %v1952
    %v2699 = vunpack.c.l.b16 %v1953
    %v2700 = vunpack.c.h.b16 %v1953
    %v2701 = vunpack.c.l.b16 %v1954
    %v2702 = vunpack.c.h.b16 %v1954
    %v2703 = vunpack.c.l.b16 %v1955
    %v2704 = vunpack.c.h.b16 %v1955
    %v2705 = vunpack.c.l.b16 %v1956
    %v2706 = vunpack.c.h.b16 %v1956
    %v2707 = vunpack.c.l.b16 %v1957
    %v2708 = vunpack.c.h.b16 %v1957
    %v2709 = vunpack.c.l.b16 %v1958
    %v2710 = vunpack.c.h.b16 %v1958
    %v2711 = vunpack.c.l.b16 %v1959
    %v2712 = vunpack.c.h.b16 %v1959
    %v2713 = vunpack.c.l.b16 %v1960
    %v2714 = vunpack.c.h.b16 %v1960
    %v2715 = vunpack.c.l.b16 %v1961
    %v2716 = vunpack.c.h.b16 %v1961
    %v2717 = vunpack.c.l.b16 %v1962
    %v2718 = vunpack.c.h.b16 %v1962
    %v2719 = vunpack.c.l.b16 %v1963
    %v2720 = vunpack.c.h.b16 %v1963
    %v2721 = vunpack.c.l.b16 %v1964
    %v2722 = vunpack.c.h.b16 %v1964
    %v2723 = vunpack.c.l.b16 %v1965
    %v2724 = vunpack.c.h.b16 %v1965
    %v2725 = vunpack.c.l.b16 %v1966
    %v2726 = vunpack.c.h.b16 %v1966
    %v2727 = vunpack.c.l.b16 %v1967
    %v2728 = vunpack.c.h.b16 %v1967
    %v2729 = vunpack.c.l.b16 %v1968
    %v2730 = vunpack.c.h.b16 %v1968
    %v2731 = vunpack.c.l.b16 %v1969
    %v2732 = vunpack.c.h.b16 %v1969
    %v2733 = vunpack.c.l.b16 %v1970
    %v2734 = vunpack.c.h.b16 %v1970
    %v2735 = vunpack.c.l.b16 %v1971
    %v2736 = vunpack.c.h.b16 %v1971
    %v2737 = vunpack.c.l.b16 %v1972
    %v2738 = vunpack.c.h.b16 %v1972
    %v2739 = vunpack.c.l.b16 %v1973
    %v2740 = vunpack.c.h.b16 %v1973
    %v2741 = vunpack.c.l.b16 %v1974
    %v2742 = vunpack.c.h.b16 %v1974
    %v2743 = vunpack.c.l.b16 %v1975
    %v2744 = vunpack.c.h.b16 %v1975
    %v2745 = vunpack.c.l.b16 %v1976
    %v2746 = vunpack.c.h.b16 %v1976
    %v2747 = vunpack.c.l.b16 %v1977
    %v2748 = vunpack.c.h.b16 %v1977
    %v2749 = vunpack.c.l.b16 %v1978
    %v2750 = vunpack.c.h.b16 %v1978
    %v2751 = vunpack.c.l.b16 %v1979
    %v2752 = vunpack.c.h.b16 %v1979
    %v2753 = vunpack.c.l.b16 %v1980
    %v2754 = vunpack.c.h.b16 %v1980
    %v2755 = vunpack.c.l.b16 %v1981
    %v2756 = vunpack.c.h.b16 %v1981
    %v2757 = vunpack.c.l.b16 %v1982
    %v2758 = vunpack.c.h.b16 %v1982
    %v2759 = vunpack.c.l.b16 %v1983
    %v2760 = vunpack.c.h.b16 %v1983
    %v2761 = vunpack.c.l.b16 %v1984
    %v2762 = vunpack.c.h.b16 %v1984
    %v2763 = vunpack.c.l.b16 %v1985
    %v2764 = vunpack.c.h.b16 %v1985
    %v2765 = vunpack.c.l.b16 %v1986
    %v2766 = vunpack.c.h.b16 %v1986
    %v2767 = vunpack.c.l.b16 %v1987
    %v2768 = vunpack.c.h.b16 %v1987
    %v2769 = vunpack.c.l.b16 %v1988
    %v2770 = vunpack.c.h.b16 %v1988
    %v2771 = vunpack.c.l.b16 %v1989
    %v2772 = vunpack.c.h.b16 %v1989
    %v2773 = vunpack.c.l.b16 %v1990
    %v2774 = vunpack.c.h.b16 %v1990
    %v2775 = vunpack.c.l.b16 %v1991
    %v2776 = vunpack.c.h.b16 %v1991
    %v2777 = vunpack.c.l.b16 %v1992
    %v2778 = vunpack.c.h.b16 %v1992
    %v2779 = vunpack.c.l.b16 %v1993
    %v2780 = vunpack.c.h.b16 %v1993
    %v2781 = vunpack.c.l.b16 %v1994
    %v2782 = vunpack.c.h.b16 %v1994
    %v2783 = vunpack.c.l.b16 %v1995
    %v2784 = vunpack.c.h.b16 %v1995
    %v2785 = vunpack.c.l.b16 %v1996
    %v2786 = vunpack.c.h.b16 %v1996
    %v2787 = vunpack.c.l.b16 %v1997
    %v2788 = vunpack.c.h.b16 %v1997
    %v2789 = vunpack.c.l.b16 %v1998
    %v2790 = vunpack.c.h.b16 %v1998
    %v2791 = vunpack.c.l.b16 %v1999
    %v2792 = vunpack.c.h.b16 %v1999
    %v2793 = vunpack.c.l.b16 %v2000
    %v2794 = vunpack.c.h.b16 %v2000
    %v2795 = vunpack.c.l.b16 %v2001
    %v2796 = vunpack.c.h.b16 %v2001
    %v2797 = vunpack.c.l.b16 %v2002
    %v2798 = vunpack.c.h.b16 %v2002
    %v2799 = vunpack.c.l.b16 %v2003
    %v2800 = vunpack.c.h.b16 %v2003
    %v2801 = vunpack.c.l.b16 %v2004
    %v2802 = vunpack.c.h.b16 %v2004
    %v2803 = vunpack.c.l.b16 %v2005
    %v2804 = vunpack.c.h.b16 %v2005
    %v2805 = vunpack.c.l.b16 %v2006
    %v2806 = vunpack.c.h.b16 %v2006
    %v2807 = vunpack.c.l.b16 %v2007
    %v2808 = vunpack.c.h.b16 %v2007
    %v2809 = vunpack.c.l.b16 %v2008
    %v2810 = vunpack.c.h.b16 %v2008
    %v2811 = vunpack.c.l.b16 %v2009
    %v2812 = vunpack.c.h.b16 %v2009
    %v2813 = vunpack.c.l.b16 %v2010
    %v2814 = vunpack.c.h.b16 %v2010
    %v2815 = vunpack.c.l.b16 %v2011
    %v2816 = vunpack.c.h.b16 %v2011
    %v2817 = vunpack.c.l.b16 %v2012
    %v2818 = vunpack.c.h.b16 %v2012
    %v2819 = vunpack.c.l.b16 %v2013
    %v2820 = vunpack.c.h.b16 %v2013
    %v2821 = vunpack.c.l.b16 %v2014
    %v2822 = vunpack.c.h.b16 %v2014
    %v2823 = vunpack.c.l.b16 %v2015
    %v2824 = vunpack.c.h.b16 %v2015
    %v2825 = vunpack.c.l.b16 %v2016
    %v2826 = vunpack.c.h.b16 %v2016
    %v2827 = vpack.c.b16 %v2323, %v2315
    %v2828 = vpack.c.b16 %v2324, %v2316
    %v2829 = vpack.c.b16 %v2325, %v2317
    %v2830 = vpack.c.b16 %v2326, %v2318
    %v2831 = vpack.c.b16 %v2327, %v2319
    %v2832 = vpack.c.b16 %v2328, %v2320
    %v2833 = vpack.c.b16 %v2329, %v2321
    %v2834 = vpack.c.b16 %v2330, %v2322
    %v2835 = vpack.c.b16 %v2339, %v2331
    %v2836 = vpack.c.b16 %v2340, %v2332
    %v2837 = vpack.c.b16 %v2341, %v2333
    %v2838 = vpack.c.b16 %v2342, %v2334
    %v2839 = vpack.c.b16 %v2343, %v2335
    %v2840 = vpack.c.b16 %v2344, %v2336
    %v2841 = vpack.c.b16 %v2345, %v2337
    %v2842 = vpack.c.b16 %v2346, %v2338
    %v2843 = vpack.c.b16 %v2355, %v2347
    %v2844 = vpack.c.b16 %v2356, %v2348
    %v2845 = vpack.c.b16 %v2357, %v2349
    %v2846 = vpack.c.b16 %v2358, %v2350
    %v2847 = vpack.c.b16 %v2359, %v2351
    %v2848 = vpack.c.b16 %v2360, %v2352
    %v2849 = vpack.c.b16 %v2361, %v2353
    %v2850 = vpack.c.b16 %v2362, %v2354
    %v2851 = vpack.c.b16 %v2371, %v2363
    %v2852 = vpack.c.b16 %v2372, %v2364
    %v2853 = vpack.c.b16 %v2373, %v2365
    %v2854 = vpack.c.b16 %v2374, %v2366
    %v2855 = vpack.c.b16 %v2375, %v2367
    %v2856 = vpack.c.b16 %v2376, %v2368
    %v2857 = vpack.c.b16 %v2377, %v2369
    %v2858 = vpack.c.b16 %v2378, %v2370
    %v2859 = vpack.c.b16 %v2387, %v2379
    %v2860 = vpack.c.b16 %v2388, %v2380
    %v2861 = vpack.c.b16 %v2389, %v2381
    %v2862 = vpack.c.b16 %v2390, %v2382
    %v2863 = vpack.c.b16 %v2391, %v2383
    %v2864 = vpack.c.b16 %v2392, %v2384
    %v2865 = vpack.c.b16 %v2393, %v2385
    %v2866 = vpack.c.b16 %v2394, %v2386
    %v2867 = vpack.c.b16 %v2403, %v2395
    %v2868 = vpack.c.b16 %v2404, %v2396
    %v2869 = vpack.c.b16 %v2405, %v2397
    %v2870 = vpack.c.b16 %v2406, %v2398
    %v2871 = vpack.c.b16 %v2407, %v2399
    %v2872 = vpack.c.b16 %v2408, %v2400
    %v2873 = vpack.c.b16 %v2409, %v2401
    %v2874 = vpack.c.b16 %v2410, %v2402
    %v2875 = vpack.c.b16 %v2419, %v2411
    %v2876 = vpack.c.b16 %v2420, %v2412
    %v2877 = vpack.c.b16 %v2421, %v2413
    %v2878 = vpack.c.b16 %v2422, %v2414
    %v2879 = vpack.c.b16 %v2423, %v2415
    %v2880 = vpack.c.b16 %v2424, %v2416
    %v2881 = vpack.c.b16 %v2425, %v2417
    %v2882 = vpack.c.b16 %v2426, %v2418
    %v2883 = vpack.c.b16 %v2435, %v2427
    %v2884 = vpack.c.b16 %v2436, %v2428
    %v2885 = vpack.c.b16 %v2437, %v2429
    %v2886 = vpack.c.b16 %v2438, %v2430
    %v2887 = vpack.c.b16 %v2439, %v2431
    %v2888 = vpack.c.b16 %v2440, %v2432
    %v2889 = vpack.c.b16 %v2441, %v2433
    %v2890 = vpack.c.b16 %v2442, %v2434
    %v2891 = vpack.c.b16 %v2451, %v2443
    %v2892 = vpack.c.b16 %v2452, %v2444
    %v2893 = vpack.c.b16 %v2453, %v2445
    %v2894 = vpack.c.b16 %v2454, %v2446
    %v2895 = vpack.c.b16 %v2455, %v2447
    %v2896 = vpack.c.b16 %v2456, %v2448
    %v2897 = vpack.c.b16 %v2457, %v2449
    %v2898 = vpack.c.b16 %v2458, %v2450
    %v2899 = vpack.c.b16 %v2467, %v2459
    %v2900 = vpack.c.b16 %v2468, %v2460
    %v2901 = vpack.c.b16 %v2469, %v2461
    %v2902 = vpack.c.b16 %v2470, %v2462
    %v2903 = vpack.c.b16 %v2471, %v2463
    %v2904 = vpack.c.b16 %v2472, %v2464
    %v2905 = vpack.c.b16 %v2473, %v2465
    %v2906 = vpack.c.b16 %v2474, %v2466
    %v2907 = vpack.c.b16 %v2483, %v2475
    %v2908 = vpack.c.b16 %v2484, %v2476
    %v2909 = vpack.c.b16 %v2485, %v2477
    %v2910 = vpack.c.b16 %v2486, %v2478
    %v2911 = vpack.c.b16 %v2487, %v2479
    %v2912 = vpack.c.b16 %v2488, %v2480
    %v2913 = vpack.c.b16 %v2489, %v2481
    %v2914 = vpack.c.b16 %v2490, %v2482
    %v2915 = vpack.c.b16 %v2499, %v2491
    %v2916 = vpack.c.b16 %v2500, %v2492
    %v2917 = vpack.c.b16 %v2501, %v2493
    %v2918 = vpack.c.b16 %v2502, %v2494
    %v2919 = vpack.c.b16 %v2503, %v2495
    %v2920 = vpack.c.b16 %v2504, %v2496
    %v2921 = vpack.c.b16 %v2505, %v2497
    %v2922 = vpack.c.b16 %v2506, %v2498
    %v2923 = vpack.c.b16 %v2515, %v2507
    %v2924 = vpack.c.b16 %v2516, %v2508
    %v2925 = vpack.c.b16 %v2517, %v2509
    %v2926 = vpack.c.b16 %v2518, %v2510
    %v2927 = vpack.c.b16 %v2519, %v2511
    %v2928 = vpack.c.b16 %v2520, %v2512
    %v2929 = vpack.c.b16 %v2521, %v2513
    %v2930 = vpack.c.b16 %v2522, %v2514
    %v2931 = vpack.c.b16 %v2531, %v2523
    %v2932 = vpack.c.b16 %v2532, %v2524
    %v2933 = vpack.c.b16 %v2533, %v2525
    %v2934 = vpack.c.b16 %v2534, %v2526
    %v2935 = vpack.c.b16 %v2535, %v2527
    %v2936 = vpack.c.b16 %v2536, %v2528
    %v2937 = vpack.c.b16 %v2537, %v2529
    %v2938 = vpack.c.b16 %v2538, %v2530
    %v2939 = vpack.c.b16 %v2547, %v2539
    %v2940 = vpack.c.b16 %v2548, %v2540
    %v2941 = vpack.c.b16 %v2549, %v2541
    %v2942 = vpack.c.b16 %v2550, %v2542
    %v2943 = vpack.c.b16 %v2551, %v2543
    %v2944 = vpack.c.b16 %v2552, %v2544
    %v2945 = vpack.c.b16 %v2553, %v2545
    %v2946 = vpack.c.b16 %v2554, %v2546
    %v2947 = vpack.c.b16 %v2563, %v2555
    %v2948 = vpack.c.b16 %v2564, %v2556
    %v2949 = vpack.c.b16 %v2565, %v2557
    %v2950 = vpack.c.b16 %v2566, %v2558
    %v2951 = vpack.c.b16 %v2567, %v2559
    %v2952 = vpack.c.b16 %v2568, %v2560
    %v2953 = vpack.c.b16 %v2569, %v2561
    %v2954 = vpack.c.b16 %v2570, %v2562
    %v2955 = vpack.c.b16 %v2579, %v2571
    %v2956 = vpack.c.b16 %v2580, %v2572
    %v2957 = vpack.c.b16 %v2581, %v2573
    %v2958 = vpack.c.b16 %v2582, %v2574
    %v2959 = vpack.c.b16 %v2583, %v2575
    %v2960 = vpack.c.b16 %v2584, %v2576
    %v2961 = vpack.c.b16 %v2585, %v2577
    %v2962 = vpack.c.b16 %v2586, %v2578
    %v2963 = vpack.c.b16 %v2595, %v2587
    %v2964 = vpack.c.b16 %v2596, %v2588
    %v2965 = vpack.c.b16 %v2597, %v2589
    %v2966 = vpack.c.b16 %v2598, %v2590
    %v2967 = vpack.c.b16 %v2599, %v2591
    %v2968 = vpack.c.b16 %v2600, %v2592
    %v2969 = vpack.c.b16 %v2601, %v2593
    %v2970 = vpack.c.b16 %v2602, %v2594
    %v2971 = vpack.c.b16 %v2611, %v2603
    %v2972 = vpack.c.b16 %v2612, %v2604
    %v2973 = vpack.c.b16 %v2613, %v2605
    %v2974 = vpack.c.b16 %v2614, %v2606
    %v2975 = vpack.c.b16 %v2615, %v2607
    %v2976 = vpack.c.b16 %v2616, %v2608
    %v2977 = vpack.c.b16 %v2617, %v2609
    %v2978 = vpack.c.b16 %v2618, %v2610
    %v2979 = vpack.c.b16 %v2627, %v2619
    %v2980 = vpack.c.b16 %v2628, %v2620
    %v2981 = vpack.c.b16 %v2629, %v2621
    %v2982 = vpack.c.b16 %v2630, %v2622
    %v2983 = vpack.c.b16 %v2631, %v2623
    %v2984 = vpack.c.b16 %v2632, %v2624
    %v2985 = vpack.c.b16 %v2633, %v2625
    %v2986 = vpack.c.b16 %v2634, %v2626
    %v2987 = vpack.c.b16 %v2643, %v2635
    %v2988 = vpack.c.b16 %v2644, %v2636
    %v2989 = vpack.c.b16 %v2645, %v2637
    %v2990 = vpack.c.b16 %v2646, %v2638
    %v2991 = vpack.c.b16 %v2647, %v2639
    %v2992 = vpack.c.b16 %v2648, %v2640
    %v2993 = vpack.c.b16 %v2649, %v2641
    %v2994 = vpack.c.b16 %v2650, %v2642
    %v2995 = vpack.c.b16 %v2659, %v2651
    %v2996 = vpack.c.b16 %v2660, %v2652
    %v2997 = vpack.c.b16 %v2661, %v2653
    %v2998 = vpack.c.b16 %v2662, %v2654
    %v2999 = vpack.c.b16 %v2663, %v2655
    %v3000 = vpack.c.b16 %v2664, %v2656
    %v3001 = vpack.c.b16 %v2665, %v2657
    %v3002 = vpack.c.b16 %v2666, %v2658
    %v3003 = vpack.c.b16 %v2675, %v2667
    %v3004 = vpack.c.b16 %v2676, %v2668
    %v3005 = vpack.c.b16 %v2677, %v2669
    %v3006 = vpack.c.b16 %v2678, %v2670
    %v3007 = vpack.c.b16 %v2679, %v2671
    %v3008 = vpack.c.b16 %v2680, %v2672
    %v3009 = vpack.c.b16 %v2681, %v2673
    %v3010 = vpack.c.b16 %v2682, %v2674
    %v3011 = vpack.c.b16 %v2691, %v2683
    %v3012 = vpack.c.b16 %v2692, %v2684
    %v3013 = vpack.c.b16 %v2693, %v2685
    %v3014 = vpack.c.b16 %v2694, %v2686
    %v3015 = vpack.c.b16 %v2695, %v2687
    %v3016 = vpack.c.b16 %v2696, %v2688
    %v3017 = vpack.c.b16 %v2697, %v2689
    %v3018 = vpack.c.b16 %v2698, %v2690
    %v3019 = vpack.c.b16 %v2707, %v2699
    %v3020 = vpack.c.b16 %v2708, %v2700
    %v3021 = vpack.c.b16 %v2709, %v2701
    %v3022 = vpack.c.b16 %v2710, %v2702
    %v3023 = vpack.c.b16 %v2711, %v2703
    %v3024 = vpack.c.b16 %v2712, %v2704
    %v3025 = vpack.c.b16 %v2713, %v2705
    %v3026 = vpack.c.b16 %v2714, %v2706
    %v3027 = vpack.c.b16 %v2723, %v2715
    %v3028 = vpack.c.b16 %v2724, %v2716
    %v3029 = vpack.c.b16 %v2725, %v2717
    %v3030 = vpack.c.b16 %v2726, %v2718
    %v3031 = vpack.c.b16 %v2727, %v2719
    %v3032 = vpack.c.b16 %v2728, %v2720
    %v3033 = vpack.c.b16 %v2729, %v2721
    %v3034 = vpack.c.b16 %v2730, %v2722
    %v3035 = vpack.c.b16 %v2739, %v2731
    %v3036 = vpack.c.b16 %v2740, %v2732
    %v3037 = vpack.c.b16 %v2741, %v2733
    %v3038 = vpack.c.b16 %v2742, %v2734
    %v3039 = vpack.c.b16 %v2743, %v2735
    %v3040 = vpack.c.b16 %v2744, %v2736
    %v3041 = vpack.c.b16 %v2745, %v2737
    %v3042 = vpack.c.b16 %v2746, %v2738
    %v3043 = vpack.c.b16 %v2755, %v2747
    %v3044 = vpack.c.b16 %v2756, %v2748
    %v3045 = vpack.c.b16 %v2757, %v2749
    %v3046 = vpack.c.b16 %v2758, %v2750
    %v3047 = vpack.c.b16 %v2759, %v2751
    %v3048 = vpack.c.b16 %v2760, %v2752
    %v3049 = vpack.c.b16 %v2761, %v2753
    %v3050 = vpack.c.b16 %v2762, %v2754
    %v3051 = vpack.c.b16 %v2771, %v2763
    %v3052 = vpack.c.b16 %v2772, %v2764
    %v3053 = vpack.c.b16 %v2773, %v2765
    %v3054 = vpack.c.b16 %v2774, %v2766
    %v3055 = vpack.c.b16 %v2775, %v2767
    %v3056 = vpack.c.b16 %v2776, %v2768
    %v3057 = vpack.c.b16 %v2777, %v2769
    %v3058 = vpack.c.b16 %v2778, %v2770
    %v3059 = vpack.c.b16 %v2787, %v2779
    %v3060 = vpack.c.b16 %v2788, %v2780
    %v3061 = vpack.c.b16 %v2789, %v2781
    %v3062 = vpack.c.b16 %v2790, %v2782
    %v3063 = vpack.c.b16 %v2791, %v2783
    %v3064 = vpack.c.b16 %v2792, %v2784
    %v3065 = vpack.c.b16 %v2793, %v2785
    %v3066 = vpack.c.b16 %v2794, %v2786
    %v3067 = vpack.c.b16 %v2803, %v2795
    %v3068 = vpack.c.b16 %v2804, %v2796
    %v3069 = vpack.c.b16 %v2805, %v2797
    %v3070 = vpack.c.b16 %v2806, %v2798
    %v3071 = vpack.c.b16 %v2807, %v2799
    %v3072 = vpack.c.b16 %v2808, %v2800
    %v3073 = vpack.c.b16 %v2809, %v2801
    %v3074 = vpack.c.b16 %v2810, %v2802
    %v3075 = vpack.c.b16 %v2819, %v2811
    %v3076 = vpack.c.b16 %v2820, %v2812
    %v3077 = vpack.c.b16 %v2821, %v2813
    %v3078 = vpack.c.b16 %v2822, %v2814
    %v3079 = vpack.c.b16 %v2823, %v2815
    %v3080 = vpack.c.b16 %v2824, %v2816
    %v3081 = vpack.c.b16 %v2825, %v2817
    %v3082 = vpack.c.b16 %v2826, %v2818
    %3339 = vmatprep.subr.bf16.mxu0 %v2828
    %3340 = vmatpush1.bf16.msra.mxu0 %v2827
    %3341 = vmatprep.subr.bf16.mxu0 %v2836
    %3342 = vmatpush1.bf16.msra.mxu0 %v2835
    %3343 = vmatprep.subr.bf16.mxu0 %v2844
    %3344 = vmatpush1.bf16.msra.mxu0 %v2843
    %3345 = vmatprep.subr.bf16.mxu0 %v2852
    %3346 = vmatpush1.bf16.msra.mxu0 %v2851
    %3347 = vmatprep.subr.bf16.mxu0 %v2860
    %3348 = vmatpush1.bf16.msra.mxu0 %v2859
    %3349 = vmatprep.subr.bf16.mxu0 %v2868
    %3350 = vmatpush1.bf16.msra.mxu0 %v2867
    %3351 = vmatprep.subr.bf16.mxu0 %v2876
    %3352 = vmatpush1.bf16.msra.mxu0 %v2875
    %3353 = vmatprep.subr.bf16.mxu0 %v2884
    %3354 = vmatpush1.bf16.msra.mxu0 %v2883
    %3355 = vmatprep.subr.bf16.mxu0 %v2892
    %3356 = vmatpush1.bf16.msra.mxu0 %v2891
    %3357 = vmatprep.subr.bf16.mxu0 %v2900
    %3358 = vmatpush1.bf16.msra.mxu0 %v2899
    %3359 = vmatprep.subr.bf16.mxu0 %v2908
    %3360 = vmatpush1.bf16.msra.mxu0 %v2907
    %3361 = vmatprep.subr.bf16.mxu0 %v2916
    %3362 = vmatpush1.bf16.msra.mxu0 %v2915
    %3363 = vmatprep.subr.bf16.mxu0 %v2924
    %3364 = vmatpush1.bf16.msra.mxu0 %v2923
    %3365 = vmatprep.subr.bf16.mxu0 %v2932
    %3366 = vmatpush1.bf16.msra.mxu0 %v2931
    %3367 = vmatprep.subr.bf16.mxu0 %v2940
    %3368 = vmatpush1.bf16.msra.mxu0 %v2939
    %3369 = vmatprep.subr.bf16.mxu0 %v2948
    %3370 = vmatpush1.bf16.msra.mxu0 %v2947
    %3371 = vmatprep.mubr.bf16.mxu0 %v1698
    %3372 = vmatmul.mubr.bf16.gmra.mrb[0].mxu0 %v1697
    %v3373 = vpop.f32.mrb[0].mxu0
    %v3374 = vadd.f32 %v2022, %v3373
    %v3375 = vpop.f32.mrb[0].mxu0
    %v3376 = vadd.f32 %v2026, %v3375
    %v3377 = vpop.f32.mrb[0].mxu0
    %v3378 = vadd.f32 %v2022, %v3377
    %v3379 = vpop.f32.mrb[0].mxu0
    %v3380 = vadd.f32 %v2026, %v3379
    %3381 = vmatprep.mubr.bf16.mxu0 %v1702
    %3382 = vmatmul.mubr.bf16.gmra.mrb[0].mxu0 %v1701
    %v3383 = vpop.f32.mrb[0].mxu0
    %v3384 = vadd.f32 %v2022, %v3383
    %v3385 = vpop.f32.mrb[0].mxu0
    %v3386 = vadd.f32 %v2026, %v3385
    %v3387 = vpop.f32.mrb[0].mxu0
    %v3388 = vadd.f32 %v2022, %v3387
    %v3389 = vpop.f32.mrb[0].mxu0
    %v3390 = vadd.f32 %v2026, %v3389
    %3391 = vmatprep.mubr.bf16.mxu0 %v1706
    %3392 = vmatmul.mubr.bf16.gmra.mrb[0].mxu0 %v1705
    %v3393 = vpop.f32.mrb[0].mxu0
    %v3394 = vadd.f32 %v2022, %v3393
    %v3395 = vpop.f32.mrb[0].mxu0
    %v3396 = vadd.f32 %v2026, %v3395
    %v3397 = vpop.f32.mrb[0].mxu0
    %v3398 = vadd.f32 %v2022, %v3397
    %v3399 = vpop.f32.mrb[0].mxu0
    %v3400 = vadd.f32 %v2026, %v3399
    %3401 = vmatprep.mubr.bf16.mxu0 %v1710
    %3402 = vmatmul.mubr.bf16.gmra.mrb[0].mxu0 %v1709
    %v3403 = vpop.f32.mrb[0].mxu0
    %v3404 = vadd.f32 %v2022, %v3403
    %v3405 = vpop.f32.mrb[0].mxu0
    %v3406 = vadd.f32 %v2026, %v3405
    %v3407 = vpop.f32.mrb[0].mxu0
    %v3408 = vadd.f32 %v2022, %v3407
    %v3409 = vpop.f32.mrb[0].mxu0
    %v3410 = vadd.f32 %v2026, %v3409
    %3411 = vmatprep.mubr.bf16.mxu0 %v1714
    %3412 = vmatmul.mubr.bf16.gmra.mrb[0].mxu0 %v1713
    %v3413 = vpop.f32.mrb[0].mxu0
    %v3414 = vadd.f32 %v2022, %v3413
    %v3415 = vpop.f32.mrb[0].mxu0
    %v3416 = vadd.f32 %v2026, %v3415
    %v3417 = vpop.f32.mrb[0].mxu0
    %v3418 = vadd.f32 %v2022, %v3417
    %v3419 = vpop.f32.mrb[0].mxu0
    %v3420 = vadd.f32 %v2026, %v3419
    %3421 = vmatprep.mubr.bf16.mxu0 %v1718
    %3422 = vmatmul.mubr.bf16.gmra.mrb[0].mxu0 %v1717
    %v3423 = vpop.f32.mrb[0].mxu0
    %v3424 = vadd.f32 %v2022, %v3423
    %v3425 = vpop.f32.mrb[0].mxu0
    %v3426 = vadd.f32 %v2026, %v3425
    %v3427 = vpop.f32.mrb[0].mxu0
    %v3428 = vadd.f32 %v2022, %v3427
    %v3429 = vpop.f32.mrb[0].mxu0
    %v3430 = vadd.f32 %v2026, %v3429
    %3431 = vmatprep.mubr.bf16.mxu0 %v1722
    %3432 = vmatmul.mubr.bf16.gmra.mrb[0].mxu0 %v1721
    %v3433 = vpop.f32.mrb[0].mxu0
    %v3434 = vadd.f32 %v2022, %v3433
    %v3435 = vpop.f32.mrb[0].mxu0
    %v3436 = vadd.f32 %v2026, %v3435
    %v3437 = vpop.f32.mrb[0].mxu0
    %v3438 = vadd.f32 %v2022, %v3437
    %v3439 = vpop.f32.mrb[0].mxu0
    %v3440 = vadd.f32 %v2026, %v3439
    %3441 = vmatprep.mubr.bf16.mxu0 %v1726
    %3442 = vmatmul.mubr.bf16.gmra.mrb[0].mxu0 %v1725
    %v3443 = vpop.f32.mrb[0].mxu0
    %v3444 = vadd.f32 %v2022, %v3443
    %v3445 = vpop.f32.mrb[0].mxu0
    %v3446 = vadd.f32 %v2026, %v3445
    %v3447 = vpop.f32.mrb[0].mxu0
    %v3448 = vadd.f32 %v2022, %v3447
    %v3449 = vpop.f32.mrb[0].mxu0
    %v3450 = vadd.f32 %v2026, %v3449
    %3451 = vmatprep.mubr.bf16.mxu0 %v1730
    %3452 = vmatmul.mubr.bf16.gmra.mrb[0].mxu0 %v1729
    %v3453 = vpop.f32.mrb[0].mxu0
    %v3454 = vadd.f32 %v2022, %v3453
    %v3455 = vpop.f32.mrb[0].mxu0
    %v3456 = vadd.f32 %v2026, %v3455
    %v3457 = vpop.f32.mrb[0].mxu0
    %v3458 = vadd.f32 %v2022, %v3457
    %v3459 = vpop.f32.mrb[0].mxu0
    %v3460 = vadd.f32 %v2026, %v3459
    %3461 = vmatprep.mubr.bf16.mxu0 %v1734
    %3462 = vmatmul.mubr.bf16.gmra.mrb[0].mxu0 %v1733
    %v3463 = vpop.f32.mrb[0].mxu0
    %v3464 = vadd.f32 %v2022, %v3463
    %v3465 = vpop.f32.mrb[0].mxu0
    %v3466 = vadd.f32 %v2026, %v3465
    %v3467 = vpop.f32.mrb[0].mxu0
    %v3468 = vadd.f32 %v2022, %v3467
    %v3469 = vpop.f32.mrb[0].mxu0
    %v3470 = vadd.f32 %v2026, %v3469
    %3471 = vmatprep.mubr.bf16.mxu0 %v1738
    %3472 = vmatmul.mubr.bf16.gmra.mrb[0].mxu0 %v1737
    %v3473 = vpop.f32.mrb[0].mxu0
    %v3474 = vadd.f32 %v2022, %v3473
    %v3475 = vpop.f32.mrb[0].mxu0
    %v3476 = vadd.f32 %v2026, %v3475
    %v3477 = vpop.f32.mrb[0].mxu0
    %v3478 = vadd.f32 %v2022, %v3477
    %v3479 = vpop.f32.mrb[0].mxu0
    %v3480 = vadd.f32 %v2026, %v3479
    %3481 = vmatprep.mubr.bf16.mxu0 %v1742
    %3482 = vmatmul.mubr.bf16.gmra.mrb[0].mxu0 %v1741
    %v3483 = vpop.f32.mrb[0].mxu0
    %v3484 = vadd.f32 %v2022, %v3483
    %v3485 = vpop.f32.mrb[0].mxu0
    %v3486 = vadd.f32 %v2026, %v3485
    %v3487 = vpop.f32.mrb[0].mxu0
    %v3488 = vadd.f32 %v2022, %v3487
    %v3489 = vpop.f32.mrb[0].mxu0
    %v3490 = vadd.f32 %v2026, %v3489
    %3491 = vmatprep.mubr.bf16.mxu0 %v1746
    %3492 = vmatmul.mubr.bf16.gmra.mrb[0].mxu0 %v1745
    %v3493 = vpop.f32.mrb[0].mxu0
    %v3494 = vadd.f32 %v2022, %v3493
    %v3495 = vpop.f32.mrb[0].mxu0
    %v3496 = vadd.f32 %v2026, %v3495
    %v3497 = vpop.f32.mrb[0].mxu0
    %v3498 = vadd.f32 %v2022, %v3497
    %v3499 = vpop.f32.mrb[0].mxu0
    %v3500 = vadd.f32 %v2026, %v3499
    %3501 = vmatprep.mubr.bf16.mxu0 %v1750
    %3502 = vmatmul.mubr.bf16.gmra.mrb[0].mxu0 %v1749
    %v3503 = vpop.f32.mrb[0].mxu0
    %v3504 = vadd.f32 %v2022, %v3503
    %v3505 = vpop.f32.mrb[0].mxu0
    %v3506 = vadd.f32 %v2026, %v3505
    %v3507 = vpop.f32.mrb[0].mxu0
    %v3508 = vadd.f32 %v2022, %v3507
    %v3509 = vpop.f32.mrb[0].mxu0
    %v3510 = vadd.f32 %v2026, %v3509
    %3511 = vmatprep.mubr.bf16.mxu0 %v1754
    %3512 = vmatmul.mubr.bf16.gmra.mrb[0].mxu0 %v1753
    %v3513 = vpop.f32.mrb[0].mxu0
    %v3514 = vadd.f32 %v2022, %v3513
    %v3515 = vpop.f32.mrb[0].mxu0
    %v3516 = vadd.f32 %v2026, %v3515
    %v3517 = vpop.f32.mrb[0].mxu0
    %v3518 = vadd.f32 %v2022, %v3517
    %v3519 = vpop.f32.mrb[0].mxu0
    %v3520 = vadd.f32 %v2026, %v3519
    %3521 = vmatprep.mubr.bf16.mxu0 %v1758
    %3522 = vmatmul.mubr.bf16.gmra.mrb[0].mxu0 %v1757
    %v3523 = vpop.f32.mrb[0].mxu0
    %v3524 = vadd.f32 %v2022, %v3523
    %v3525 = vpop.f32.mrb[0].mxu0
    %v3526 = vadd.f32 %v2026, %v3525
    %v3527 = vpop.f32.mrb[0].mxu0
    %v3528 = vadd.f32 %v2022, %v3527
    %v3529 = vpop.f32.mrb[0].mxu0
    %v3530 = vadd.f32 %v2026, %v3529
    %3531 = vdwg.mxu0
    %3532 = vmatprep.subr.bf16.mxu0 %v2956
    %3533 = vmatpush1.bf16.msra.mxu0 %v2955
    %3534 = vmatprep.subr.bf16.mxu0 %v2964
    %3535 = vmatpush1.bf16.msra.mxu0 %v2963
    %3536 = vmatprep.subr.bf16.mxu0 %v2972
    %3537 = vmatpush1.bf16.msra.mxu0 %v2971
    %3538 = vmatprep.subr.bf16.mxu0 %v2980
    %3539 = vmatpush1.bf16.msra.mxu0 %v2979
    %3540 = vmatprep.subr.bf16.mxu0 %v2988
    %3541 = vmatpush1.bf16.msra.mxu0 %v2987
    %3542 = vmatprep.subr.bf16.mxu0 %v2996
    %3543 = vmatpush1.bf16.msra.mxu0 %v2995
    %3544 = vmatprep.subr.bf16.mxu0 %v3004
    %3545 = vmatpush1.bf16.msra.mxu0 %v3003
    %3546 = vmatprep.subr.bf16.mxu0 %v3012
    %3547 = vmatpush1.bf16.msra.mxu0 %v3011
    %3548 = vmatprep.subr.bf16.mxu0 %v3020
    %3549 = vmatpush1.bf16.msra.mxu0 %v3019
    %3550 = vmatprep.subr.bf16.mxu0 %v3028
    %3551 = vmatpush1.bf16.msra.mxu0 %v3027
    %3552 = vmatprep.subr.bf16.mxu0 %v3036
    %3553 = vmatpush1.bf16.msra.mxu0 %v3035
    %3554 = vmatprep.subr.bf16.mxu0 %v3044
    %3555 = vmatpush1.bf16.msra.mxu0 %v3043
    %3556 = vmatprep.subr.bf16.mxu0 %v3052
    %3557 = vmatpush1.bf16.msra.mxu0 %v3051
    %3558 = vmatprep.subr.bf16.mxu0 %v3060
    %3559 = vmatpush1.bf16.msra.mxu0 %v3059
    %3560 = vmatprep.subr.bf16.mxu0 %v3068
    %3561 = vmatpush1.bf16.msra.mxu0 %v3067
    %3562 = vmatprep.subr.bf16.mxu0 %v3076
    %3563 = vmatpush1.bf16.msra.mxu0 %v3075
    %3564 = vmatprep.mubr.bf16.mxu0 %v1700
    %3565 = vmatmul.mubr.bf16.gmra.mrb[0].mxu0 %v1699
    %v3566 = vpop.f32.mrb[0].mxu0
    %v3567 = vadd.f32 %v3374, %v3566
    %v3568 = vpop.f32.mrb[0].mxu0
    %v3569 = vadd.f32 %v3376, %v3568
    %v3570 = vpop.f32.mrb[0].mxu0
    %v3571 = vadd.f32 %v3378, %v3570
    %v3572 = vpop.f32.mrb[0].mxu0
    %v3573 = vadd.f32 %v3380, %v3572
    %3574 = vmatprep.mubr.bf16.mxu0 %v1704
    %3575 = vmatmul.mubr.bf16.gmra.mrb[0].mxu0 %v1703
    %v3576 = vpop.f32.mrb[0].mxu0
    %v3577 = vadd.f32 %v3384, %v3576
    %v3578 = vpop.f32.mrb[0].mxu0
    %v3579 = vadd.f32 %v3386, %v3578
    %v3580 = vpop.f32.mrb[0].mxu0
    %v3581 = vadd.f32 %v3388, %v3580
    %v3582 = vpop.f32.mrb[0].mxu0
    %v3583 = vadd.f32 %v3390, %v3582
    %3584 = vmatprep.mubr.bf16.mxu0 %v1708
    %3585 = vmatmul.mubr.bf16.gmra.mrb[0].mxu0 %v1707
    %v3586 = vpop.f32.mrb[0].mxu0
    %v3587 = vadd.f32 %v3394, %v3586
    %v3588 = vpop.f32.mrb[0].mxu0
    %v3589 = vadd.f32 %v3396, %v3588
    %v3590 = vpop.f32.mrb[0].mxu0
    %v3591 = vadd.f32 %v3398, %v3590
    %v3592 = vpop.f32.mrb[0].mxu0
    %v3593 = vadd.f32 %v3400, %v3592
    %3594 = vmatprep.mubr.bf16.mxu0 %v1712
    %3595 = vmatmul.mubr.bf16.gmra.mrb[0].mxu0 %v1711
    %v3596 = vpop.f32.mrb[0].mxu0
    %v3597 = vadd.f32 %v3404, %v3596
    %v3598 = vpop.f32.mrb[0].mxu0
    %v3599 = vadd.f32 %v3406, %v3598
    %v3600 = vpop.f32.mrb[0].mxu0
    %v3601 = vadd.f32 %v3408, %v3600
    %v3602 = vpop.f32.mrb[0].mxu0
    %v3603 = vadd.f32 %v3410, %v3602
    %3604 = vmatprep.mubr.bf16.mxu0 %v1716
    %3605 = vmatmul.mubr.bf16.gmra.mrb[0].mxu0 %v1715
    %v3606 = vpop.f32.mrb[0].mxu0
    %v3607 = vadd.f32 %v3414, %v3606
    %v3608 = vpop.f32.mrb[0].mxu0
    %v3609 = vadd.f32 %v3416, %v3608
    %v3610 = vpop.f32.mrb[0].mxu0
    %v3611 = vadd.f32 %v3418, %v3610
    %v3612 = vpop.f32.mrb[0].mxu0
    %v3613 = vadd.f32 %v3420, %v3612
    %3614 = vmatprep.mubr.bf16.mxu0 %v1720
    %3615 = vmatmul.mubr.bf16.gmra.mrb[0].mxu0 %v1719
    %v3616 = vpop.f32.mrb[0].mxu0
    %v3617 = vadd.f32 %v3424, %v3616
    %v3618 = vpop.f32.mrb[0].mxu0
    %v3619 = vadd.f32 %v3426, %v3618
    %v3620 = vpop.f32.mrb[0].mxu0
    %v3621 = vadd.f32 %v3428, %v3620
    %v3622 = vpop.f32.mrb[0].mxu0
    %v3623 = vadd.f32 %v3430, %v3622
    %3624 = vmatprep.mubr.bf16.mxu0 %v1724
    %3625 = vmatmul.mubr.bf16.gmra.mrb[0].mxu0 %v1723
    %v3626 = vpop.f32.mrb[0].mxu0
    %v3627 = vadd.f32 %v3434, %v3626
    %v3628 = vpop.f32.mrb[0].mxu0
    %v3629 = vadd.f32 %v3436, %v3628
    %v3630 = vpop.f32.mrb[0].mxu0
    %v3631 = vadd.f32 %v3438, %v3630
    %v3632 = vpop.f32.mrb[0].mxu0
    %v3633 = vadd.f32 %v3440, %v3632
    %3634 = vmatprep.mubr.bf16.mxu0 %v1728
    %3635 = vmatmul.mubr.bf16.gmra.mrb[0].mxu0 %v1727
    %v3636 = vpop.f32.mrb[0].mxu0
    %v3637 = vadd.f32 %v3444, %v3636
    %v3638 = vpop.f32.mrb[0].mxu0
    %v3639 = vadd.f32 %v3446, %v3638
    %v3640 = vpop.f32.mrb[0].mxu0
    %v3641 = vadd.f32 %v3448, %v3640
    %v3642 = vpop.f32.mrb[0].mxu0
    %v3643 = vadd.f32 %v3450, %v3642
    %3644 = vmatprep.mubr.bf16.mxu0 %v1732
    %3645 = vmatmul.mubr.bf16.gmra.mrb[0].mxu0 %v1731
    %v3646 = vpop.f32.mrb[0].mxu0
    %v3647 = vadd.f32 %v3454, %v3646
    %v3648 = vpop.f32.mrb[0].mxu0
    %v3649 = vadd.f32 %v3456, %v3648
    %v3650 = vpop.f32.mrb[0].mxu0
    %v3651 = vadd.f32 %v3458, %v3650
    %v3652 = vpop.f32.mrb[0].mxu0
    %v3653 = vadd.f32 %v3460, %v3652
    %3654 = vmatprep.mubr.bf16.mxu0 %v1736
    %3655 = vmatmul.mubr.bf16.gmra.mrb[0].mxu0 %v1735
    %v3656 = vpop.f32.mrb[0].mxu0
    %v3657 = vadd.f32 %v3464, %v3656
    %v3658 = vpop.f32.mrb[0].mxu0
    %v3659 = vadd.f32 %v3466, %v3658
    %v3660 = vpop.f32.mrb[0].mxu0
    %v3661 = vadd.f32 %v3468, %v3660
    %v3662 = vpop.f32.mrb[0].mxu0
    %v3663 = vadd.f32 %v3470, %v3662
    %3664 = vmatprep.mubr.bf16.mxu0 %v1740
    %3665 = vmatmul.mubr.bf16.gmra.mrb[0].mxu0 %v1739
    %v3666 = vpop.f32.mrb[0].mxu0
    %v3667 = vadd.f32 %v3474, %v3666
    %v3668 = vpop.f32.mrb[0].mxu0
    %v3669 = vadd.f32 %v3476, %v3668
    %v3670 = vpop.f32.mrb[0].mxu0
    %v3671 = vadd.f32 %v3478, %v3670
    %v3672 = vpop.f32.mrb[0].mxu0
    %v3673 = vadd.f32 %v3480, %v3672
    %3674 = vmatprep.mubr.bf16.mxu0 %v1744
    %3675 = vmatmul.mubr.bf16.gmra.mrb[0].mxu0 %v1743
    %v3676 = vpop.f32.mrb[0].mxu0
    %v3677 = vadd.f32 %v3484, %v3676
    %v3678 = vpop.f32.mrb[0].mxu0
    %v3679 = vadd.f32 %v3486, %v3678
    %v3680 = vpop.f32.mrb[0].mxu0
    %v3681 = vadd.f32 %v3488, %v3680
    %v3682 = vpop.f32.mrb[0].mxu0
    %v3683 = vadd.f32 %v3490, %v3682
    %3684 = vmatprep.mubr.bf16.mxu0 %v1748
    %3685 = vmatmul.mubr.bf16.gmra.mrb[0].mxu0 %v1747
    %v3686 = vpop.f32.mrb[0].mxu0
    %v3687 = vadd.f32 %v3494, %v3686
    %v3688 = vpop.f32.mrb[0].mxu0
    %v3689 = vadd.f32 %v3496, %v3688
    %v3690 = vpop.f32.mrb[0].mxu0
    %v3691 = vadd.f32 %v3498, %v3690
    %v3692 = vpop.f32.mrb[0].mxu0
    %v3693 = vadd.f32 %v3500, %v3692
    %3694 = vmatprep.mubr.bf16.mxu0 %v1752
    %3695 = vmatmul.mubr.bf16.gmra.mrb[0].mxu0 %v1751
    %v3696 = vpop.f32.mrb[0].mxu0
    %v3697 = vadd.f32 %v3504, %v3696
    %v3698 = vpop.f32.mrb[0].mxu0
    %v3699 = vadd.f32 %v3506, %v3698
    %v3700 = vpop.f32.mrb[0].mxu0
    %v3701 = vadd.f32 %v3508, %v3700
    %v3702 = vpop.f32.mrb[0].mxu0
    %v3703 = vadd.f32 %v3510, %v3702
    %3704 = vmatprep.mubr.bf16.mxu0 %v1756
    %3705 = vmatmul.mubr.bf16.gmra.mrb[0].mxu0 %v1755
    %v3706 = vpop.f32.mrb[0].mxu0
    %v3707 = vadd.f32 %v3514, %v3706
    %v3708 = vpop.f32.mrb[0].mxu0
    %v3709 = vadd.f32 %v3516, %v3708
    %v3710 = vpop.f32.mrb[0].mxu0
    %v3711 = vadd.f32 %v3518, %v3710
    %v3712 = vpop.f32.mrb[0].mxu0
    %v3713 = vadd.f32 %v3520, %v3712
    %3714 = vmatprep.mubr.bf16.mxu0 %v1760
    %3715 = vmatmul.mubr.bf16.gmra.mrb[0].mxu0 %v1759
    %v3716 = vpop.f32.mrb[0].mxu0
    %v3717 = vadd.f32 %v3524, %v3716
    %v3718 = vpop.f32.mrb[0].mxu0
    %v3719 = vadd.f32 %v3526, %v3718
    %v3720 = vpop.f32.mrb[0].mxu0
    %v3721 = vadd.f32 %v3528, %v3720
    %v3722 = vpop.f32.mrb[0].mxu0
    %v3723 = vadd.f32 %v3530, %v3722
    %3724 = vdwg.mxu0
    %3725 = vmatprep.subr.bf16.mxu0 %v2830
    %3726 = vmatpush1.bf16.msra.mxu0 %v2829
    %3727 = vmatprep.subr.bf16.mxu0 %v2838
    %3728 = vmatpush1.bf16.msra.mxu0 %v2837
    %3729 = vmatprep.subr.bf16.mxu0 %v2846
    %3730 = vmatpush1.bf16.msra.mxu0 %v2845
    %3731 = vmatprep.subr.bf16.mxu0 %v2854
    %3732 = vmatpush1.bf16.msra.mxu0 %v2853
    %3733 = vmatprep.subr.bf16.mxu0 %v2862
    %3734 = vmatpush1.bf16.msra.mxu0 %v2861
    %3735 = vmatprep.subr.bf16.mxu0 %v2870
    %3736 = vmatpush1.bf16.msra.mxu0 %v2869
    %3737 = vmatprep.subr.bf16.mxu0 %v2878
    %3738 = vmatpush1.bf16.msra.mxu0 %v2877
    %3739 = vmatprep.subr.bf16.mxu0 %v2886
    %3740 = vmatpush1.bf16.msra.mxu0 %v2885
    %3741 = vmatprep.subr.bf16.mxu0 %v2894
    %3742 = vmatpush1.bf16.msra.mxu0 %v2893
    %3743 = vmatprep.subr.bf16.mxu0 %v2902
    %3744 = vmatpush1.bf16.msra.mxu0 %v2901
    %3745 = vmatprep.subr.bf16.mxu0 %v2910
    %3746 = vmatpush1.bf16.msra.mxu0 %v2909
    %3747 = vmatprep.subr.bf16.mxu0 %v2918
    %3748 = vmatpush1.bf16.msra.mxu0 %v2917
    %3749 = vmatprep.subr.bf16.mxu0 %v2926
    %3750 = vmatpush1.bf16.msra.mxu0 %v2925
    %3751 = vmatprep.subr.bf16.mxu0 %v2934
    %3752 = vmatpush1.bf16.msra.mxu0 %v2933
    %3753 = vmatprep.subr.bf16.mxu0 %v2942
    %3754 = vmatpush1.bf16.msra.mxu0 %v2941
    %3755 = vmatprep.subr.bf16.mxu0 %v2950
    %3756 = vmatpush1.bf16.msra.mxu0 %v2949
    %3757 = vmatprep.mubr.bf16.mxu0 %v1698
    %3758 = vmatmul.mubr.bf16.gmra.mrb[0].mxu0 %v1697
    %v3759 = vpop.f32.mrb[0].mxu0
    %v3760 = vadd.f32 %v2030, %v3759
    %v3761 = vpop.f32.mrb[0].mxu0
    %v3762 = vadd.f32 %v2034, %v3761
    %v3763 = vpop.f32.mrb[0].mxu0
    %v3764 = vadd.f32 %v2030, %v3763
    %v3765 = vpop.f32.mrb[0].mxu0
    %v3766 = vadd.f32 %v2034, %v3765
    %3767 = vmatprep.mubr.bf16.mxu0 %v1702
    %3768 = vmatmul.mubr.bf16.gmra.mrb[0].mxu0 %v1701
    %v3769 = vpop.f32.mrb[0].mxu0
    %v3770 = vadd.f32 %v2030, %v3769
    %v3771 = vpop.f32.mrb[0].mxu0
    %v3772 = vadd.f32 %v2034, %v3771
    %v3773 = vpop.f32.mrb[0].mxu0
    %v3774 = vadd.f32 %v2030, %v3773
    %v3775 = vpop.f32.mrb[0].mxu0
    %v3776 = vadd.f32 %v2034, %v3775
    %3777 = vmatprep.mubr.bf16.mxu0 %v1706
    %3778 = vmatmul.mubr.bf16.gmra.mrb[0].mxu0 %v1705
    %v3779 = vpop.f32.mrb[0].mxu0
    %v3780 = vadd.f32 %v2030, %v3779
    %v3781 = vpop.f32.mrb[0].mxu0
    %v3782 = vadd.f32 %v2034, %v3781
    %v3783 = vpop.f32.mrb[0].mxu0
    %v3784 = vadd.f32 %v2030, %v3783
    %v3785 = vpop.f32.mrb[0].mxu0
    %v3786 = vadd.f32 %v2034, %v3785
    %3787 = vmatprep.mubr.bf16.mxu0 %v1710
    %3788 = vmatmul.mubr.bf16.gmra.mrb[0].mxu0 %v1709
    %v3789 = vpop.f32.mrb[0].mxu0
    %v3790 = vadd.f32 %v2030, %v3789
    %v3791 = vpop.f32.mrb[0].mxu0
    %v3792 = vadd.f32 %v2034, %v3791
    %v3793 = vpop.f32.mrb[0].mxu0
    %v3794 = vadd.f32 %v2030, %v3793
    %v3795 = vpop.f32.mrb[0].mxu0
    %v3796 = vadd.f32 %v2034, %v3795
    %3797 = vmatprep.mubr.bf16.mxu0 %v1714
    %3798 = vmatmul.mubr.bf16.gmra.mrb[0].mxu0 %v1713
    %v3799 = vpop.f32.mrb[0].mxu0
    %v3800 = vadd.f32 %v2030, %v3799
    %v3801 = vpop.f32.mrb[0].mxu0
    %v3802 = vadd.f32 %v2034, %v3801
    %v3803 = vpop.f32.mrb[0].mxu0
    %v3804 = vadd.f32 %v2030, %v3803
    %v3805 = vpop.f32.mrb[0].mxu0
    %v3806 = vadd.f32 %v2034, %v3805
    %3807 = vmatprep.mubr.bf16.mxu0 %v1718
    %3808 = vmatmul.mubr.bf16.gmra.mrb[0].mxu0 %v1717
    %v3809 = vpop.f32.mrb[0].mxu0
    %v3810 = vadd.f32 %v2030, %v3809
    %v3811 = vpop.f32.mrb[0].mxu0
    %v3812 = vadd.f32 %v2034, %v3811
    %v3813 = vpop.f32.mrb[0].mxu0
    %v3814 = vadd.f32 %v2030, %v3813
    %v3815 = vpop.f32.mrb[0].mxu0
    %v3816 = vadd.f32 %v2034, %v3815
    %3817 = vmatprep.mubr.bf16.mxu0 %v1722
    %3818 = vmatmul.mubr.bf16.gmra.mrb[0].mxu0 %v1721
    %v3819 = vpop.f32.mrb[0].mxu0
    %v3820 = vadd.f32 %v2030, %v3819
    %v3821 = vpop.f32.mrb[0].mxu0
    %v3822 = vadd.f32 %v2034, %v3821
    %v3823 = vpop.f32.mrb[0].mxu0
    %v3824 = vadd.f32 %v2030, %v3823
    %v3825 = vpop.f32.mrb[0].mxu0
    %v3826 = vadd.f32 %v2034, %v3825
    %3827 = vmatprep.mubr.bf16.mxu0 %v1726
    %3828 = vmatmul.mubr.bf16.gmra.mrb[0].mxu0 %v1725
    %v3829 = vpop.f32.mrb[0].mxu0
    %v3830 = vadd.f32 %v2030, %v3829
    %v3831 = vpop.f32.mrb[0].mxu0
    %v3832 = vadd.f32 %v2034, %v3831
    %v3833 = vpop.f32.mrb[0].mxu0
    %v3834 = vadd.f32 %v2030, %v3833
    %v3835 = vpop.f32.mrb[0].mxu0
    %v3836 = vadd.f32 %v2034, %v3835
    %3837 = vmatprep.mubr.bf16.mxu0 %v1730
    %3838 = vmatmul.mubr.bf16.gmra.mrb[0].mxu0 %v1729
    %v3839 = vpop.f32.mrb[0].mxu0
    %v3840 = vadd.f32 %v2030, %v3839
    %v3841 = vpop.f32.mrb[0].mxu0
    %v3842 = vadd.f32 %v2034, %v3841
    %v3843 = vpop.f32.mrb[0].mxu0
    %v3844 = vadd.f32 %v2030, %v3843
    %v3845 = vpop.f32.mrb[0].mxu0
    %v3846 = vadd.f32 %v2034, %v3845
    %3847 = vmatprep.mubr.bf16.mxu0 %v1734
    %3848 = vmatmul.mubr.bf16.gmra.mrb[0].mxu0 %v1733
    %v3849 = vpop.f32.mrb[0].mxu0
    %v3850 = vadd.f32 %v2030, %v3849
    %v3851 = vpop.f32.mrb[0].mxu0
    %v3852 = vadd.f32 %v2034, %v3851
    %v3853 = vpop.f32.mrb[0].mxu0
    %v3854 = vadd.f32 %v2030, %v3853
    %v3855 = vpop.f32.mrb[0].mxu0
    %v3856 = vadd.f32 %v2034, %v3855
    %3857 = vmatprep.mubr.bf16.mxu0 %v1738
    %3858 = vmatmul.mubr.bf16.gmra.mrb[0].mxu0 %v1737
    %v3859 = vpop.f32.mrb[0].mxu0
    %v3860 = vadd.f32 %v2030, %v3859
    %v3861 = vpop.f32.mrb[0].mxu0
    %v3862 = vadd.f32 %v2034, %v3861
    %v3863 = vpop.f32.mrb[0].mxu0
    %v3864 = vadd.f32 %v2030, %v3863
    %v3865 = vpop.f32.mrb[0].mxu0
    %v3866 = vadd.f32 %v2034, %v3865
    %3867 = vmatprep.mubr.bf16.mxu0 %v1742
    %3868 = vmatmul.mubr.bf16.gmra.mrb[0].mxu0 %v1741
    %v3869 = vpop.f32.mrb[0].mxu0
    %v3870 = vadd.f32 %v2030, %v3869
    %v3871 = vpop.f32.mrb[0].mxu0
    %v3872 = vadd.f32 %v2034, %v3871
    %v3873 = vpop.f32.mrb[0].mxu0
    %v3874 = vadd.f32 %v2030, %v3873
    %v3875 = vpop.f32.mrb[0].mxu0
    %v3876 = vadd.f32 %v2034, %v3875
    %3877 = vmatprep.mubr.bf16.mxu0 %v1746
    %3878 = vmatmul.mubr.bf16.gmra.mrb[0].mxu0 %v1745
    %v3879 = vpop.f32.mrb[0].mxu0
    %v3880 = vadd.f32 %v2030, %v3879
    %v3881 = vpop.f32.mrb[0].mxu0
    %v3882 = vadd.f32 %v2034, %v3881
    %v3883 = vpop.f32.mrb[0].mxu0
    %v3884 = vadd.f32 %v2030, %v3883
    %v3885 = vpop.f32.mrb[0].mxu0
    %v3886 = vadd.f32 %v2034, %v3885
    %3887 = vmatprep.mubr.bf16.mxu0 %v1750
    %3888 = vmatmul.mubr.bf16.gmra.mrb[0].mxu0 %v1749
    %v3889 = vpop.f32.mrb[0].mxu0
    %v3890 = vadd.f32 %v2030, %v3889
    %v3891 = vpop.f32.mrb[0].mxu0
    %v3892 = vadd.f32 %v2034, %v3891
    %v3893 = vpop.f32.mrb[0].mxu0
    %v3894 = vadd.f32 %v2030, %v3893
    %v3895 = vpop.f32.mrb[0].mxu0
    %v3896 = vadd.f32 %v2034, %v3895
    %3897 = vmatprep.mubr.bf16.mxu0 %v1754
    %3898 = vmatmul.mubr.bf16.gmra.mrb[0].mxu0 %v1753
    %v3899 = vpop.f32.mrb[0].mxu0
    %v3900 = vadd.f32 %v2030, %v3899
    %v3901 = vpop.f32.mrb[0].mxu0
    %v3902 = vadd.f32 %v2034, %v3901
    %v3903 = vpop.f32.mrb[0].mxu0
    %v3904 = vadd.f32 %v2030, %v3903
    %v3905 = vpop.f32.mrb[0].mxu0
    %v3906 = vadd.f32 %v2034, %v3905
    %3907 = vmatprep.mubr.bf16.mxu0 %v1758
    %3908 = vmatmul.mubr.bf16.gmra.mrb[0].mxu0 %v1757
    %v3909 = vpop.f32.mrb[0].mxu0
    %v3910 = vadd.f32 %v2030, %v3909
    %v3911 = vpop.f32.mrb[0].mxu0
    %v3912 = vadd.f32 %v2034, %v3911
    %v3913 = vpop.f32.mrb[0].mxu0
    %v3914 = vadd.f32 %v2030, %v3913
    %v3915 = vpop.f32.mrb[0].mxu0
    %v3916 = vadd.f32 %v2034, %v3915
    %3917 = vdwg.mxu0
    %3918 = vmatprep.subr.bf16.mxu0 %v2958
    %3919 = vmatpush1.bf16.msra.mxu0 %v2957
    %3920 = vmatprep.subr.bf16.mxu0 %v2966
    %3921 = vmatpush1.bf16.msra.mxu0 %v2965
    %3922 = vmatprep.subr.bf16.mxu0 %v2974
    %3923 = vmatpush1.bf16.msra.mxu0 %v2973
    %3924 = vmatprep.subr.bf16.mxu0 %v2982
    %3925 = vmatpush1.bf16.msra.mxu0 %v2981
    %3926 = vmatprep.subr.bf16.mxu0 %v2990
    %3927 = vmatpush1.bf16.msra.mxu0 %v2989
    %3928 = vmatprep.subr.bf16.mxu0 %v2998
    %3929 = vmatpush1.bf16.msra.mxu0 %v2997
    %3930 = vmatprep.subr.bf16.mxu0 %v3006
    %3931 = vmatpush1.bf16.msra.mxu0 %v3005
    %3932 = vmatprep.subr.bf16.mxu0 %v3014
    %3933 = vmatpush1.bf16.msra.mxu0 %v3013
    %3934 = vmatprep.subr.bf16.mxu0 %v3022
    %3935 = vmatpush1.bf16.msra.mxu0 %v3021
    %3936 = vmatprep.subr.bf16.mxu0 %v3030
    %3937 = vmatpush1.bf16.msra.mxu0 %v3029
    %3938 = vmatprep.subr.bf16.mxu0 %v3038
    %3939 = vmatpush1.bf16.msra.mxu0 %v3037
    %3940 = vmatprep.subr.bf16.mxu0 %v3046
    %3941 = vmatpush1.bf16.msra.mxu0 %v3045
    %3942 = vmatprep.subr.bf16.mxu0 %v3054
    %3943 = vmatpush1.bf16.msra.mxu0 %v3053
    %3944 = vmatprep.subr.bf16.mxu0 %v3062
    %3945 = vmatpush1.bf16.msra.mxu0 %v3061
    %3946 = vmatprep.subr.bf16.mxu0 %v3070
    %3947 = vmatpush1.bf16.msra.mxu0 %v3069
    %3948 = vmatprep.subr.bf16.mxu0 %v3078
    %3949 = vmatpush1.bf16.msra.mxu0 %v3077
    %3950 = vmatprep.mubr.bf16.mxu0 %v1700
    %3951 = vmatmul.mubr.bf16.gmra.mrb[0].mxu0 %v1699
    %v3952 = vpop.f32.mrb[0].mxu0
    %v3953 = vadd.f32 %v3760, %v3952
    %v3954 = vpop.f32.mrb[0].mxu0
    %v3955 = vadd.f32 %v3762, %v3954
    %v3956 = vpop.f32.mrb[0].mxu0
    %v3957 = vadd.f32 %v3764, %v3956
    %v3958 = vpop.f32.mrb[0].mxu0
    %v3959 = vadd.f32 %v3766, %v3958
    %3960 = vmatprep.mubr.bf16.mxu0 %v1704
    %3961 = vmatmul.mubr.bf16.gmra.mrb[0].mxu0 %v1703
    %v3962 = vpop.f32.mrb[0].mxu0
    %v3963 = vadd.f32 %v3770, %v3962
    %v3964 = vpop.f32.mrb[0].mxu0
    %v3965 = vadd.f32 %v3772, %v3964
    %v3966 = vpop.f32.mrb[0].mxu0
    %v3967 = vadd.f32 %v3774, %v3966
    %v3968 = vpop.f32.mrb[0].mxu0
    %v3969 = vadd.f32 %v3776, %v3968
    %3970 = vmatprep.mubr.bf16.mxu0 %v1708
    %3971 = vmatmul.mubr.bf16.gmra.mrb[0].mxu0 %v1707
    %v3972 = vpop.f32.mrb[0].mxu0
    %v3973 = vadd.f32 %v3780, %v3972
    %v3974 = vpop.f32.mrb[0].mxu0
    %v3975 = vadd.f32 %v3782, %v3974
    %v3976 = vpop.f32.mrb[0].mxu0
    %v3977 = vadd.f32 %v3784, %v3976
    %v3978 = vpop.f32.mrb[0].mxu0
    %v3979 = vadd.f32 %v3786, %v3978
    %3980 = vmatprep.mubr.bf16.mxu0 %v1712
    %3981 = vmatmul.mubr.bf16.gmra.mrb[0].mxu0 %v1711
    %v3982 = vpop.f32.mrb[0].mxu0
    %v3983 = vadd.f32 %v3790, %v3982
    %v3984 = vpop.f32.mrb[0].mxu0
    %v3985 = vadd.f32 %v3792, %v3984
    %v3986 = vpop.f32.mrb[0].mxu0
    %v3987 = vadd.f32 %v3794, %v3986
    %v3988 = vpop.f32.mrb[0].mxu0
    %v3989 = vadd.f32 %v3796, %v3988
    %3990 = vmatprep.mubr.bf16.mxu0 %v1716
    %3991 = vmatmul.mubr.bf16.gmra.mrb[0].mxu0 %v1715
    %v3992 = vpop.f32.mrb[0].mxu0
    %v3993 = vadd.f32 %v3800, %v3992
    %v3994 = vpop.f32.mrb[0].mxu0
    %v3995 = vadd.f32 %v3802, %v3994
    %v3996 = vpop.f32.mrb[0].mxu0
    %v3997 = vadd.f32 %v3804, %v3996
    %v3998 = vpop.f32.mrb[0].mxu0
    %v3999 = vadd.f32 %v3806, %v3998
    %4000 = vmatprep.mubr.bf16.mxu0 %v1720
    %4001 = vmatmul.mubr.bf16.gmra.mrb[0].mxu0 %v1719
    %v4002 = vpop.f32.mrb[0].mxu0
    %v4003 = vadd.f32 %v3810, %v4002
    %v4004 = vpop.f32.mrb[0].mxu0
    %v4005 = vadd.f32 %v3812, %v4004
    %v4006 = vpop.f32.mrb[0].mxu0
    %v4007 = vadd.f32 %v3814, %v4006
    %v4008 = vpop.f32.mrb[0].mxu0
    %v4009 = vadd.f32 %v3816, %v4008
    %4010 = vmatprep.mubr.bf16.mxu0 %v1724
    %4011 = vmatmul.mubr.bf16.gmra.mrb[0].mxu0 %v1723
    %v4012 = vpop.f32.mrb[0].mxu0
    %v4013 = vadd.f32 %v3820, %v4012
    %v4014 = vpop.f32.mrb[0].mxu0
    %v4015 = vadd.f32 %v3822, %v4014
    %v4016 = vpop.f32.mrb[0].mxu0
    %v4017 = vadd.f32 %v3824, %v4016
    %v4018 = vpop.f32.mrb[0].mxu0
    %v4019 = vadd.f32 %v3826, %v4018
    %4020 = vmatprep.mubr.bf16.mxu0 %v1728
    %4021 = vmatmul.mubr.bf16.gmra.mrb[0].mxu0 %v1727
    %v4022 = vpop.f32.mrb[0].mxu0
    %v4023 = vadd.f32 %v3830, %v4022
    %v4024 = vpop.f32.mrb[0].mxu0
    %v4025 = vadd.f32 %v3832, %v4024
    %v4026 = vpop.f32.mrb[0].mxu0
    %v4027 = vadd.f32 %v3834, %v4026
    %v4028 = vpop.f32.mrb[0].mxu0
    %v4029 = vadd.f32 %v3836, %v4028
    %4030 = vmatprep.mubr.bf16.mxu0 %v1732
    %4031 = vmatmul.mubr.bf16.gmra.mrb[0].mxu0 %v1731
    %v4032 = vpop.f32.mrb[0].mxu0
    %v4033 = vadd.f32 %v3840, %v4032
    %v4034 = vpop.f32.mrb[0].mxu0
    %v4035 = vadd.f32 %v3842, %v4034
    %v4036 = vpop.f32.mrb[0].mxu0
    %v4037 = vadd.f32 %v3844, %v4036
    %v4038 = vpop.f32.mrb[0].mxu0
    %v4039 = vadd.f32 %v3846, %v4038
    %4040 = vmatprep.mubr.bf16.mxu0 %v1736
    %4041 = vmatmul.mubr.bf16.gmra.mrb[0].mxu0 %v1735
    %v4042 = vpop.f32.mrb[0].mxu0
    %v4043 = vadd.f32 %v3850, %v4042
    %v4044 = vpop.f32.mrb[0].mxu0
    %v4045 = vadd.f32 %v3852, %v4044
    %v4046 = vpop.f32.mrb[0].mxu0
    %v4047 = vadd.f32 %v3854, %v4046
    %v4048 = vpop.f32.mrb[0].mxu0
    %v4049 = vadd.f32 %v3856, %v4048
    %4050 = vmatprep.mubr.bf16.mxu0 %v1740
    %4051 = vmatmul.mubr.bf16.gmra.mrb[0].mxu0 %v1739
    %v4052 = vpop.f32.mrb[0].mxu0
    %v4053 = vadd.f32 %v3860, %v4052
    %v4054 = vpop.f32.mrb[0].mxu0
    %v4055 = vadd.f32 %v3862, %v4054
    %v4056 = vpop.f32.mrb[0].mxu0
    %v4057 = vadd.f32 %v3864, %v4056
    %v4058 = vpop.f32.mrb[0].mxu0
    %v4059 = vadd.f32 %v3866, %v4058
    %4060 = vmatprep.mubr.bf16.mxu0 %v1744
    %4061 = vmatmul.mubr.bf16.gmra.mrb[0].mxu0 %v1743
    %v4062 = vpop.f32.mrb[0].mxu0
    %v4063 = vadd.f32 %v3870, %v4062
    %v4064 = vpop.f32.mrb[0].mxu0
    %v4065 = vadd.f32 %v3872, %v4064
    %v4066 = vpop.f32.mrb[0].mxu0
    %v4067 = vadd.f32 %v3874, %v4066
    %v4068 = vpop.f32.mrb[0].mxu0
    %v4069 = vadd.f32 %v3876, %v4068
    %4070 = vmatprep.mubr.bf16.mxu0 %v1748
    %4071 = vmatmul.mubr.bf16.gmra.mrb[0].mxu0 %v1747
    %v4072 = vpop.f32.mrb[0].mxu0
    %v4073 = vadd.f32 %v3880, %v4072
    %v4074 = vpop.f32.mrb[0].mxu0
    %v4075 = vadd.f32 %v3882, %v4074
    %v4076 = vpop.f32.mrb[0].mxu0
    %v4077 = vadd.f32 %v3884, %v4076
    %v4078 = vpop.f32.mrb[0].mxu0
    %v4079 = vadd.f32 %v3886, %v4078
    %4080 = vmatprep.mubr.bf16.mxu0 %v1752
    %4081 = vmatmul.mubr.bf16.gmra.mrb[0].mxu0 %v1751
    %v4082 = vpop.f32.mrb[0].mxu0
    %v4083 = vadd.f32 %v3890, %v4082
    %v4084 = vpop.f32.mrb[0].mxu0
    %v4085 = vadd.f32 %v3892, %v4084
    %v4086 = vpop.f32.mrb[0].mxu0
    %v4087 = vadd.f32 %v3894, %v4086
    %v4088 = vpop.f32.mrb[0].mxu0
    %v4089 = vadd.f32 %v3896, %v4088
    %4090 = vmatprep.mubr.bf16.mxu0 %v1756
    %4091 = vmatmul.mubr.bf16.gmra.mrb[0].mxu0 %v1755
    %v4092 = vpop.f32.mrb[0].mxu0
    %v4093 = vadd.f32 %v3900, %v4092
    %v4094 = vpop.f32.mrb[0].mxu0
    %v4095 = vadd.f32 %v3902, %v4094
    %v4096 = vpop.f32.mrb[0].mxu0
    %v4097 = vadd.f32 %v3904, %v4096
    %v4098 = vpop.f32.mrb[0].mxu0
    %v4099 = vadd.f32 %v3906, %v4098
    %4100 = vmatprep.mubr.bf16.mxu0 %v1760
    %4101 = vmatmul.mubr.bf16.gmra.mrb[0].mxu0 %v1759
    %v4102 = vpop.f32.mrb[0].mxu0
    %v4103 = vadd.f32 %v3910, %v4102
    %v4104 = vpop.f32.mrb[0].mxu0
    %v4105 = vadd.f32 %v3912, %v4104
    %v4106 = vpop.f32.mrb[0].mxu0
    %v4107 = vadd.f32 %v3914, %v4106
    %v4108 = vpop.f32.mrb[0].mxu0
    %v4109 = vadd.f32 %v3916, %v4108
    %4110 = vdwg.mxu0
    %4111 = vmatprep.subr.bf16.mxu0 %v2832
    %4112 = vmatpush1.bf16.msra.mxu0 %v2831
    %4113 = vmatprep.subr.bf16.mxu0 %v2840
    %4114 = vmatpush1.bf16.msra.mxu0 %v2839
    %4115 = vmatprep.subr.bf16.mxu0 %v2848
    %4116 = vmatpush1.bf16.msra.mxu0 %v2847
    %4117 = vmatprep.subr.bf16.mxu0 %v2856
    %4118 = vmatpush1.bf16.msra.mxu0 %v2855
    %4119 = vmatprep.subr.bf16.mxu0 %v2864
    %4120 = vmatpush1.bf16.msra.mxu0 %v2863
    %4121 = vmatprep.subr.bf16.mxu0 %v2872
    %4122 = vmatpush1.bf16.msra.mxu0 %v2871
    %4123 = vmatprep.subr.bf16.mxu0 %v2880
    %4124 = vmatpush1.bf16.msra.mxu0 %v2879
    %4125 = vmatprep.subr.bf16.mxu0 %v2888
    %4126 = vmatpush1.bf16.msra.mxu0 %v2887
    %4127 = vmatprep.subr.bf16.mxu0 %v2896
    %4128 = vmatpush1.bf16.msra.mxu0 %v2895
    %4129 = vmatprep.subr.bf16.mxu0 %v2904
    %4130 = vmatpush1.bf16.msra.mxu0 %v2903
    %4131 = vmatprep.subr.bf16.mxu0 %v2912
    %4132 = vmatpush1.bf16.msra.mxu0 %v2911
    %4133 = vmatprep.subr.bf16.mxu0 %v2920
    %4134 = vmatpush1.bf16.msra.mxu0 %v2919
    %4135 = vmatprep.subr.bf16.mxu0 %v2928
    %4136 = vmatpush1.bf16.msra.mxu0 %v2927
    %4137 = vmatprep.subr.bf16.mxu0 %v2936
    %4138 = vmatpush1.bf16.msra.mxu0 %v2935
    %4139 = vmatprep.subr.bf16.mxu0 %v2944
    %4140 = vmatpush1.bf16.msra.mxu0 %v2943
    %4141 = vmatprep.subr.bf16.mxu0 %v2952
    %4142 = vmatpush1.bf16.msra.mxu0 %v2951
    %4143 = vmatprep.mubr.bf16.mxu0 %v1698
    %4144 = vmatmul.mubr.bf16.gmra.mrb[0].mxu0 %v1697
    %v4145 = vpop.f32.mrb[0].mxu0
    %v4146 = vadd.f32 %v2038, %v4145
    %v4147 = vpop.f32.mrb[0].mxu0
    %v4148 = vadd.f32 %v2042, %v4147
    %v4149 = vpop.f32.mrb[0].mxu0
    %v4150 = vadd.f32 %v2038, %v4149
    %v4151 = vpop.f32.mrb[0].mxu0
    %v4152 = vadd.f32 %v2042, %v4151
    %4153 = vmatprep.mubr.bf16.mxu0 %v1702
    %4154 = vmatmul.mubr.bf16.gmra.mrb[0].mxu0 %v1701
    %v4155 = vpop.f32.mrb[0].mxu0
    %v4156 = vadd.f32 %v2038, %v4155
    %v4157 = vpop.f32.mrb[0].mxu0
    %v4158 = vadd.f32 %v2042, %v4157
    %v4159 = vpop.f32.mrb[0].mxu0
    %v4160 = vadd.f32 %v2038, %v4159
    %v4161 = vpop.f32.mrb[0].mxu0
    %v4162 = vadd.f32 %v2042, %v4161
    %4163 = vmatprep.mubr.bf16.mxu0 %v1706
    %4164 = vmatmul.mubr.bf16.gmra.mrb[0].mxu0 %v1705
    %v4165 = vpop.f32.mrb[0].mxu0
    %v4166 = vadd.f32 %v2038, %v4165
    %v4167 = vpop.f32.mrb[0].mxu0
    %v4168 = vadd.f32 %v2042, %v4167
    %v4169 = vpop.f32.mrb[0].mxu0
    %v4170 = vadd.f32 %v2038, %v4169
    %v4171 = vpop.f32.mrb[0].mxu0
    %v4172 = vadd.f32 %v2042, %v4171
    %4173 = vmatprep.mubr.bf16.mxu0 %v1710
    %4174 = vmatmul.mubr.bf16.gmra.mrb[0].mxu0 %v1709
    %v4175 = vpop.f32.mrb[0].mxu0
    %v4176 = vadd.f32 %v2038, %v4175
    %v4177 = vpop.f32.mrb[0].mxu0
    %v4178 = vadd.f32 %v2042, %v4177
    %v4179 = vpop.f32.mrb[0].mxu0
    %v4180 = vadd.f32 %v2038, %v4179
    %v4181 = vpop.f32.mrb[0].mxu0
    %v4182 = vadd.f32 %v2042, %v4181
    %4183 = vmatprep.mubr.bf16.mxu0 %v1714
    %4184 = vmatmul.mubr.bf16.gmra.mrb[0].mxu0 %v1713
    %v4185 = vpop.f32.mrb[0].mxu0
    %v4186 = vadd.f32 %v2038, %v4185
    %v4187 = vpop.f32.mrb[0].mxu0
    %v4188 = vadd.f32 %v2042, %v4187
    %v4189 = vpop.f32.mrb[0].mxu0
    %v4190 = vadd.f32 %v2038, %v4189
    %v4191 = vpop.f32.mrb[0].mxu0
    %v4192 = vadd.f32 %v2042, %v4191
    %4193 = vmatprep.mubr.bf16.mxu0 %v1718
    %4194 = vmatmul.mubr.bf16.gmra.mrb[0].mxu0 %v1717
    %v4195 = vpop.f32.mrb[0].mxu0
    %v4196 = vadd.f32 %v2038, %v4195
    %v4197 = vpop.f32.mrb[0].mxu0
    %v4198 = vadd.f32 %v2042, %v4197
    %v4199 = vpop.f32.mrb[0].mxu0
    %v4200 = vadd.f32 %v2038, %v4199
    %v4201 = vpop.f32.mrb[0].mxu0
    %v4202 = vadd.f32 %v2042, %v4201
    %4203 = vmatprep.mubr.bf16.mxu0 %v1722
    %4204 = vmatmul.mubr.bf16.gmra.mrb[0].mxu0 %v1721
    %v4205 = vpop.f32.mrb[0].mxu0
    %v4206 = vadd.f32 %v2038, %v4205
    %v4207 = vpop.f32.mrb[0].mxu0
    %v4208 = vadd.f32 %v2042, %v4207
    %v4209 = vpop.f32.mrb[0].mxu0
    %v4210 = vadd.f32 %v2038, %v4209
    %v4211 = vpop.f32.mrb[0].mxu0
    %v4212 = vadd.f32 %v2042, %v4211
    %4213 = vmatprep.mubr.bf16.mxu0 %v1726
    %4214 = vmatmul.mubr.bf16.gmra.mrb[0].mxu0 %v1725
    %v4215 = vpop.f32.mrb[0].mxu0
    %v4216 = vadd.f32 %v2038, %v4215
    %v4217 = vpop.f32.mrb[0].mxu0
    %v4218 = vadd.f32 %v2042, %v4217
    %v4219 = vpop.f32.mrb[0].mxu0
    %v4220 = vadd.f32 %v2038, %v4219
    %v4221 = vpop.f32.mrb[0].mxu0
    %v4222 = vadd.f32 %v2042, %v4221
    %4223 = vmatprep.mubr.bf16.mxu0 %v1730
    %4224 = vmatmul.mubr.bf16.gmra.mrb[0].mxu0 %v1729
    %v4225 = vpop.f32.mrb[0].mxu0
    %v4226 = vadd.f32 %v2038, %v4225
    %v4227 = vpop.f32.mrb[0].mxu0
    %v4228 = vadd.f32 %v2042, %v4227
    %v4229 = vpop.f32.mrb[0].mxu0
    %v4230 = vadd.f32 %v2038, %v4229
    %v4231 = vpop.f32.mrb[0].mxu0
    %v4232 = vadd.f32 %v2042, %v4231
    %4233 = vmatprep.mubr.bf16.mxu0 %v1734
    %4234 = vmatmul.mubr.bf16.gmra.mrb[0].mxu0 %v1733
    %v4235 = vpop.f32.mrb[0].mxu0
    %v4236 = vadd.f32 %v2038, %v4235
    %v4237 = vpop.f32.mrb[0].mxu0
    %v4238 = vadd.f32 %v2042, %v4237
    %v4239 = vpop.f32.mrb[0].mxu0
    %v4240 = vadd.f32 %v2038, %v4239
    %v4241 = vpop.f32.mrb[0].mxu0
    %v4242 = vadd.f32 %v2042, %v4241
    %4243 = vmatprep.mubr.bf16.mxu0 %v1738
    %4244 = vmatmul.mubr.bf16.gmra.mrb[0].mxu0 %v1737
    %v4245 = vpop.f32.mrb[0].mxu0
    %v4246 = vadd.f32 %v2038, %v4245
    %v4247 = vpop.f32.mrb[0].mxu0
    %v4248 = vadd.f32 %v2042, %v4247
    %v4249 = vpop.f32.mrb[0].mxu0
    %v4250 = vadd.f32 %v2038, %v4249
    %v4251 = vpop.f32.mrb[0].mxu0
    %v4252 = vadd.f32 %v2042, %v4251
    %4253 = vmatprep.mubr.bf16.mxu0 %v1742
    %4254 = vmatmul.mubr.bf16.gmra.mrb[0].mxu0 %v1741
    %v4255 = vpop.f32.mrb[0].mxu0
    %v4256 = vadd.f32 %v2038, %v4255
    %v4257 = vpop.f32.mrb[0].mxu0
    %v4258 = vadd.f32 %v2042, %v4257
    %v4259 = vpop.f32.mrb[0].mxu0
    %v4260 = vadd.f32 %v2038, %v4259
    %v4261 = vpop.f32.mrb[0].mxu0
    %v4262 = vadd.f32 %v2042, %v4261
    %4263 = vmatprep.mubr.bf16.mxu0 %v1746
    %4264 = vmatmul.mubr.bf16.gmra.mrb[0].mxu0 %v1745
    %v4265 = vpop.f32.mrb[0].mxu0
    %v4266 = vadd.f32 %v2038, %v4265
    %v4267 = vpop.f32.mrb[0].mxu0
    %v4268 = vadd.f32 %v2042, %v4267
    %v4269 = vpop.f32.mrb[0].mxu0
    %v4270 = vadd.f32 %v2038, %v4269
    %v4271 = vpop.f32.mrb[0].mxu0
    %v4272 = vadd.f32 %v2042, %v4271
    %4273 = vmatprep.mubr.bf16.mxu0 %v1750
    %4274 = vmatmul.mubr.bf16.gmra.mrb[0].mxu0 %v1749
    %v4275 = vpop.f32.mrb[0].mxu0
    %v4276 = vadd.f32 %v2038, %v4275
    %v4277 = vpop.f32.mrb[0].mxu0
    %v4278 = vadd.f32 %v2042, %v4277
    %v4279 = vpop.f32.mrb[0].mxu0
    %v4280 = vadd.f32 %v2038, %v4279
    %v4281 = vpop.f32.mrb[0].mxu0
    %v4282 = vadd.f32 %v2042, %v4281
    %4283 = vmatprep.mubr.bf16.mxu0 %v1754
    %4284 = vmatmul.mubr.bf16.gmra.mrb[0].mxu0 %v1753
    %v4285 = vpop.f32.mrb[0].mxu0
    %v4286 = vadd.f32 %v2038, %v4285
    %v4287 = vpop.f32.mrb[0].mxu0
    %v4288 = vadd.f32 %v2042, %v4287
    %v4289 = vpop.f32.mrb[0].mxu0
    %v4290 = vadd.f32 %v2038, %v4289
    %v4291 = vpop.f32.mrb[0].mxu0
    %v4292 = vadd.f32 %v2042, %v4291
    %4293 = vmatprep.mubr.bf16.mxu0 %v1758
    %4294 = vmatmul.mubr.bf16.gmra.mrb[0].mxu0 %v1757
    %v4295 = vpop.f32.mrb[0].mxu0
    %v4296 = vadd.f32 %v2038, %v4295
    %v4297 = vpop.f32.mrb[0].mxu0
    %v4298 = vadd.f32 %v2042, %v4297
    %v4299 = vpop.f32.mrb[0].mxu0
    %v4300 = vadd.f32 %v2038, %v4299
    %v4301 = vpop.f32.mrb[0].mxu0
    %v4302 = vadd.f32 %v2042, %v4301
    %4303 = vdwg.mxu0
    %4304 = vmatprep.subr.bf16.mxu0 %v2960
    %4305 = vmatpush1.bf16.msra.mxu0 %v2959
    %4306 = vmatprep.subr.bf16.mxu0 %v2968
    %4307 = vmatpush1.bf16.msra.mxu0 %v2967
    %4308 = vmatprep.subr.bf16.mxu0 %v2976
    %4309 = vmatpush1.bf16.msra.mxu0 %v2975
    %4310 = vmatprep.subr.bf16.mxu0 %v2984
    %4311 = vmatpush1.bf16.msra.mxu0 %v2983
    %4312 = vmatprep.subr.bf16.mxu0 %v2992
    %4313 = vmatpush1.bf16.msra.mxu0 %v2991
    %4314 = vmatprep.subr.bf16.mxu0 %v3000
    %4315 = vmatpush1.bf16.msra.mxu0 %v2999
    %4316 = vmatprep.subr.bf16.mxu0 %v3008
    %4317 = vmatpush1.bf16.msra.mxu0 %v3007
    %4318 = vmatprep.subr.bf16.mxu0 %v3016
    %4319 = vmatpush1.bf16.msra.mxu0 %v3015
    %4320 = vmatprep.subr.bf16.mxu0 %v3024
    %4321 = vmatpush1.bf16.msra.mxu0 %v3023
    %4322 = vmatprep.subr.bf16.mxu0 %v3032
    %4323 = vmatpush1.bf16.msra.mxu0 %v3031
    %4324 = vmatprep.subr.bf16.mxu0 %v3040
    %4325 = vmatpush1.bf16.msra.mxu0 %v3039
    %4326 = vmatprep.subr.bf16.mxu0 %v3048
    %4327 = vmatpush1.bf16.msra.mxu0 %v3047
    %4328 = vmatprep.subr.bf16.mxu0 %v3056
    %4329 = vmatpush1.bf16.msra.mxu0 %v3055
    %4330 = vmatprep.subr.bf16.mxu0 %v3064
    %4331 = vmatpush1.bf16.msra.mxu0 %v3063
    %4332 = vmatprep.subr.bf16.mxu0 %v3072
    %4333 = vmatpush1.bf16.msra.mxu0 %v3071
    %4334 = vmatprep.subr.bf16.mxu0 %v3080
    %4335 = vmatpush1.bf16.msra.mxu0 %v3079
    %4336 = vmatprep.mubr.bf16.mxu0 %v1700
    %4337 = vmatmul.mubr.bf16.gmra.mrb[0].mxu0 %v1699
    %v4338 = vpop.f32.mrb[0].mxu0
    %v4339 = vadd.f32 %v4146, %v4338
    %v4340 = vpop.f32.mrb[0].mxu0
    %v4341 = vadd.f32 %v4148, %v4340
    %v4342 = vpop.f32.mrb[0].mxu0
    %v4343 = vadd.f32 %v4150, %v4342
    %v4344 = vpop.f32.mrb[0].mxu0
    %v4345 = vadd.f32 %v4152, %v4344
    %4346 = vmatprep.mubr.bf16.mxu0 %v1704
    %4347 = vmatmul.mubr.bf16.gmra.mrb[0].mxu0 %v1703
    %v4348 = vpop.f32.mrb[0].mxu0
    %v4349 = vadd.f32 %v4156, %v4348
    %v4350 = vpop.f32.mrb[0].mxu0
    %v4351 = vadd.f32 %v4158, %v4350
    %v4352 = vpop.f32.mrb[0].mxu0
    %v4353 = vadd.f32 %v4160, %v4352
    %v4354 = vpop.f32.mrb[0].mxu0
    %v4355 = vadd.f32 %v4162, %v4354
    %4356 = vmatprep.mubr.bf16.mxu0 %v1708
    %4357 = vmatmul.mubr.bf16.gmra.mrb[0].mxu0 %v1707
    %v4358 = vpop.f32.mrb[0].mxu0
    %v4359 = vadd.f32 %v4166, %v4358
    %v4360 = vpop.f32.mrb[0].mxu0
    %v4361 = vadd.f32 %v4168, %v4360
    %v4362 = vpop.f32.mrb[0].mxu0
    %v4363 = vadd.f32 %v4170, %v4362
    %v4364 = vpop.f32.mrb[0].mxu0
    %v4365 = vadd.f32 %v4172, %v4364
    %4366 = vmatprep.mubr.bf16.mxu0 %v1712
    %4367 = vmatmul.mubr.bf16.gmra.mrb[0].mxu0 %v1711
    %v4368 = vpop.f32.mrb[0].mxu0
    %v4369 = vadd.f32 %v4176, %v4368
    %v4370 = vpop.f32.mrb[0].mxu0
    %v4371 = vadd.f32 %v4178, %v4370
    %v4372 = vpop.f32.mrb[0].mxu0
    %v4373 = vadd.f32 %v4180, %v4372
    %v4374 = vpop.f32.mrb[0].mxu0
    %v4375 = vadd.f32 %v4182, %v4374
    %4376 = vmatprep.mubr.bf16.mxu0 %v1716
    %4377 = vmatmul.mubr.bf16.gmra.mrb[0].mxu0 %v1715
    %v4378 = vpop.f32.mrb[0].mxu0
    %v4379 = vadd.f32 %v4186, %v4378
    %v4380 = vpop.f32.mrb[0].mxu0
    %v4381 = vadd.f32 %v4188, %v4380
    %v4382 = vpop.f32.mrb[0].mxu0
    %v4383 = vadd.f32 %v4190, %v4382
    %v4384 = vpop.f32.mrb[0].mxu0
    %v4385 = vadd.f32 %v4192, %v4384
    %4386 = vmatprep.mubr.bf16.mxu0 %v1720
    %4387 = vmatmul.mubr.bf16.gmra.mrb[0].mxu0 %v1719
    %v4388 = vpop.f32.mrb[0].mxu0
    %v4389 = vadd.f32 %v4196, %v4388
    %v4390 = vpop.f32.mrb[0].mxu0
    %v4391 = vadd.f32 %v4198, %v4390
    %v4392 = vpop.f32.mrb[0].mxu0
    %v4393 = vadd.f32 %v4200, %v4392
    %v4394 = vpop.f32.mrb[0].mxu0
    %v4395 = vadd.f32 %v4202, %v4394
    %4396 = vmatprep.mubr.bf16.mxu0 %v1724
    %4397 = vmatmul.mubr.bf16.gmra.mrb[0].mxu0 %v1723
    %v4398 = vpop.f32.mrb[0].mxu0
    %v4399 = vadd.f32 %v4206, %v4398
    %v4400 = vpop.f32.mrb[0].mxu0
    %v4401 = vadd.f32 %v4208, %v4400
    %v4402 = vpop.f32.mrb[0].mxu0
    %v4403 = vadd.f32 %v4210, %v4402
    %v4404 = vpop.f32.mrb[0].mxu0
    %v4405 = vadd.f32 %v4212, %v4404
    %4406 = vmatprep.mubr.bf16.mxu0 %v1728
    %4407 = vmatmul.mubr.bf16.gmra.mrb[0].mxu0 %v1727
    %v4408 = vpop.f32.mrb[0].mxu0
    %v4409 = vadd.f32 %v4216, %v4408
    %v4410 = vpop.f32.mrb[0].mxu0
    %v4411 = vadd.f32 %v4218, %v4410
    %v4412 = vpop.f32.mrb[0].mxu0
    %v4413 = vadd.f32 %v4220, %v4412
    %v4414 = vpop.f32.mrb[0].mxu0
    %v4415 = vadd.f32 %v4222, %v4414
    %4416 = vmatprep.mubr.bf16.mxu0 %v1732
    %4417 = vmatmul.mubr.bf16.gmra.mrb[0].mxu0 %v1731
    %v4418 = vpop.f32.mrb[0].mxu0
    %v4419 = vadd.f32 %v4226, %v4418
    %v4420 = vpop.f32.mrb[0].mxu0
    %v4421 = vadd.f32 %v4228, %v4420
    %v4422 = vpop.f32.mrb[0].mxu0
    %v4423 = vadd.f32 %v4230, %v4422
    %v4424 = vpop.f32.mrb[0].mxu0
    %v4425 = vadd.f32 %v4232, %v4424
    %4426 = vmatprep.mubr.bf16.mxu0 %v1736
    %4427 = vmatmul.mubr.bf16.gmra.mrb[0].mxu0 %v1735
    %v4428 = vpop.f32.mrb[0].mxu0
    %v4429 = vadd.f32 %v4236, %v4428
    %v4430 = vpop.f32.mrb[0].mxu0
    %v4431 = vadd.f32 %v4238, %v4430
    %v4432 = vpop.f32.mrb[0].mxu0
    %v4433 = vadd.f32 %v4240, %v4432
    %v4434 = vpop.f32.mrb[0].mxu0
    %v4435 = vadd.f32 %v4242, %v4434
    %4436 = vmatprep.mubr.bf16.mxu0 %v1740
    %4437 = vmatmul.mubr.bf16.gmra.mrb[0].mxu0 %v1739
    %v4438 = vpop.f32.mrb[0].mxu0
    %v4439 = vadd.f32 %v4246, %v4438
    %v4440 = vpop.f32.mrb[0].mxu0
    %v4441 = vadd.f32 %v4248, %v4440
    %v4442 = vpop.f32.mrb[0].mxu0
    %v4443 = vadd.f32 %v4250, %v4442
    %v4444 = vpop.f32.mrb[0].mxu0
    %v4445 = vadd.f32 %v4252, %v4444
    %4446 = vmatprep.mubr.bf16.mxu0 %v1744
    %4447 = vmatmul.mubr.bf16.gmra.mrb[0].mxu0 %v1743
    %v4448 = vpop.f32.mrb[0].mxu0
    %v4449 = vadd.f32 %v4256, %v4448
    %v4450 = vpop.f32.mrb[0].mxu0
    %v4451 = vadd.f32 %v4258, %v4450
    %v4452 = vpop.f32.mrb[0].mxu0
    %v4453 = vadd.f32 %v4260, %v4452
    %v4454 = vpop.f32.mrb[0].mxu0
    %v4455 = vadd.f32 %v4262, %v4454
    %4456 = vmatprep.mubr.bf16.mxu0 %v1748
    %4457 = vmatmul.mubr.bf16.gmra.mrb[0].mxu0 %v1747
    %v4458 = vpop.f32.mrb[0].mxu0
    %v4459 = vadd.f32 %v4266, %v4458
    %v4460 = vpop.f32.mrb[0].mxu0
    %v4461 = vadd.f32 %v4268, %v4460
    %v4462 = vpop.f32.mrb[0].mxu0
    %v4463 = vadd.f32 %v4270, %v4462
    %v4464 = vpop.f32.mrb[0].mxu0
    %v4465 = vadd.f32 %v4272, %v4464
    %4466 = vmatprep.mubr.bf16.mxu0 %v1752
    %4467 = vmatmul.mubr.bf16.gmra.mrb[0].mxu0 %v1751
    %v4468 = vpop.f32.mrb[0].mxu0
    %v4469 = vadd.f32 %v4276, %v4468
    %v4470 = vpop.f32.mrb[0].mxu0
    %v4471 = vadd.f32 %v4278, %v4470
    %v4472 = vpop.f32.mrb[0].mxu0
    %v4473 = vadd.f32 %v4280, %v4472
    %v4474 = vpop.f32.mrb[0].mxu0
    %v4475 = vadd.f32 %v4282, %v4474
    %4476 = vmatprep.mubr.bf16.mxu0 %v1756
    %4477 = vmatmul.mubr.bf16.gmra.mrb[0].mxu0 %v1755
    %v4478 = vpop.f32.mrb[0].mxu0
    %v4479 = vadd.f32 %v4286, %v4478
    %v4480 = vpop.f32.mrb[0].mxu0
    %v4481 = vadd.f32 %v4288, %v4480
    %v4482 = vpop.f32.mrb[0].mxu0
    %v4483 = vadd.f32 %v4290, %v4482
    %v4484 = vpop.f32.mrb[0].mxu0
    %v4485 = vadd.f32 %v4292, %v4484
    %4486 = vmatprep.mubr.bf16.mxu0 %v1760
    %4487 = vmatmul.mubr.bf16.gmra.mrb[0].mxu0 %v1759
    %v4488 = vpop.f32.mrb[0].mxu0
    %v4489 = vadd.f32 %v4296, %v4488
    %v4490 = vpop.f32.mrb[0].mxu0
    %v4491 = vadd.f32 %v4298, %v4490
    %v4492 = vpop.f32.mrb[0].mxu0
    %v4493 = vadd.f32 %v4300, %v4492
    %v4494 = vpop.f32.mrb[0].mxu0
    %v4495 = vadd.f32 %v4302, %v4494
    %4496 = vdwg.mxu0
    %4497 = vmatprep.subr.bf16.mxu0 %v2834
    %4498 = vmatpush1.bf16.msra.mxu0 %v2833
    %4499 = vmatprep.subr.bf16.mxu0 %v2842
    %4500 = vmatpush1.bf16.msra.mxu0 %v2841
    %4501 = vmatprep.subr.bf16.mxu0 %v2850
    %4502 = vmatpush1.bf16.msra.mxu0 %v2849
    %4503 = vmatprep.subr.bf16.mxu0 %v2858
    %4504 = vmatpush1.bf16.msra.mxu0 %v2857
    %4505 = vmatprep.subr.bf16.mxu0 %v2866
    %4506 = vmatpush1.bf16.msra.mxu0 %v2865
    %4507 = vmatprep.subr.bf16.mxu0 %v2874
    %4508 = vmatpush1.bf16.msra.mxu0 %v2873
    %4509 = vmatprep.subr.bf16.mxu0 %v2882
    %4510 = vmatpush1.bf16.msra.mxu0 %v2881
    %4511 = vmatprep.subr.bf16.mxu0 %v2890
    %4512 = vmatpush1.bf16.msra.mxu0 %v2889
    %4513 = vmatprep.subr.bf16.mxu0 %v2898
    %4514 = vmatpush1.bf16.msra.mxu0 %v2897
    %4515 = vmatprep.subr.bf16.mxu0 %v2906
    %4516 = vmatpush1.bf16.msra.mxu0 %v2905
    %4517 = vmatprep.subr.bf16.mxu0 %v2914
    %4518 = vmatpush1.bf16.msra.mxu0 %v2913
    %4519 = vmatprep.subr.bf16.mxu0 %v2922
    %4520 = vmatpush1.bf16.msra.mxu0 %v2921
    %4521 = vmatprep.subr.bf16.mxu0 %v2930
    %4522 = vmatpush1.bf16.msra.mxu0 %v2929
    %4523 = vmatprep.subr.bf16.mxu0 %v2938
    %4524 = vmatpush1.bf16.msra.mxu0 %v2937
    %4525 = vmatprep.subr.bf16.mxu0 %v2946
    %4526 = vmatpush1.bf16.msra.mxu0 %v2945
    %4527 = vmatprep.subr.bf16.mxu0 %v2954
    %4528 = vmatpush1.bf16.msra.mxu0 %v2953
    %4529 = vmatprep.mubr.bf16.mxu0 %v1698
    %4530 = vmatmul.mubr.bf16.gmra.mrb[0].mxu0 %v1697
    %v4531 = vpop.f32.mrb[0].mxu0
    %v4532 = vadd.f32 %v2046, %v4531
    %v4533 = vpop.f32.mrb[0].mxu0
    %v4534 = vadd.f32 %v2050, %v4533
    %v4535 = vpop.f32.mrb[0].mxu0
    %v4536 = vadd.f32 %v2046, %v4535
    %v4537 = vpop.f32.mrb[0].mxu0
    %v4538 = vadd.f32 %v2050, %v4537
    %4539 = vmatprep.mubr.bf16.mxu0 %v1702
    %4540 = vmatmul.mubr.bf16.gmra.mrb[0].mxu0 %v1701
    %v4541 = vpop.f32.mrb[0].mxu0
    %v4542 = vadd.f32 %v2046, %v4541
    %v4543 = vpop.f32.mrb[0].mxu0
    %v4544 = vadd.f32 %v2050, %v4543
    %v4545 = vpop.f32.mrb[0].mxu0
    %v4546 = vadd.f32 %v2046, %v4545
    %v4547 = vpop.f32.mrb[0].mxu0
    %v4548 = vadd.f32 %v2050, %v4547
    %4549 = vmatprep.mubr.bf16.mxu0 %v1706
    %4550 = vmatmul.mubr.bf16.gmra.mrb[0].mxu0 %v1705
    %v4551 = vpop.f32.mrb[0].mxu0
    %v4552 = vadd.f32 %v2046, %v4551
    %v4553 = vpop.f32.mrb[0].mxu0
    %v4554 = vadd.f32 %v2050, %v4553
    %v4555 = vpop.f32.mrb[0].mxu0
    %v4556 = vadd.f32 %v2046, %v4555
    %v4557 = vpop.f32.mrb[0].mxu0
    %v4558 = vadd.f32 %v2050, %v4557
    %4559 = vmatprep.mubr.bf16.mxu0 %v1710
    %4560 = vmatmul.mubr.bf16.gmra.mrb[0].mxu0 %v1709
    %v4561 = vpop.f32.mrb[0].mxu0
    %v4562 = vadd.f32 %v2046, %v4561
    %v4563 = vpop.f32.mrb[0].mxu0
    %v4564 = vadd.f32 %v2050, %v4563
    %v4565 = vpop.f32.mrb[0].mxu0
    %v4566 = vadd.f32 %v2046, %v4565
    %v4567 = vpop.f32.mrb[0].mxu0
    %v4568 = vadd.f32 %v2050, %v4567
    %4569 = vmatprep.mubr.bf16.mxu0 %v1714
    %4570 = vmatmul.mubr.bf16.gmra.mrb[0].mxu0 %v1713
    %v4571 = vpop.f32.mrb[0].mxu0
    %v4572 = vadd.f32 %v2046, %v4571
    %v4573 = vpop.f32.mrb[0].mxu0
    %v4574 = vadd.f32 %v2050, %v4573
    %v4575 = vpop.f32.mrb[0].mxu0
    %v4576 = vadd.f32 %v2046, %v4575
    %v4577 = vpop.f32.mrb[0].mxu0
    %v4578 = vadd.f32 %v2050, %v4577
    %4579 = vmatprep.mubr.bf16.mxu0 %v1718
    %4580 = vmatmul.mubr.bf16.gmra.mrb[0].mxu0 %v1717
    %v4581 = vpop.f32.mrb[0].mxu0
    %v4582 = vadd.f32 %v2046, %v4581
    %v4583 = vpop.f32.mrb[0].mxu0
    %v4584 = vadd.f32 %v2050, %v4583
    %v4585 = vpop.f32.mrb[0].mxu0
    %v4586 = vadd.f32 %v2046, %v4585
    %v4587 = vpop.f32.mrb[0].mxu0
    %v4588 = vadd.f32 %v2050, %v4587
    %4589 = vmatprep.mubr.bf16.mxu0 %v1722
    %4590 = vmatmul.mubr.bf16.gmra.mrb[0].mxu0 %v1721
    %v4591 = vpop.f32.mrb[0].mxu0
    %v4592 = vadd.f32 %v2046, %v4591
    %v4593 = vpop.f32.mrb[0].mxu0
    %v4594 = vadd.f32 %v2050, %v4593
    %v4595 = vpop.f32.mrb[0].mxu0
    %v4596 = vadd.f32 %v2046, %v4595
    %v4597 = vpop.f32.mrb[0].mxu0
    %v4598 = vadd.f32 %v2050, %v4597
    %4599 = vmatprep.mubr.bf16.mxu0 %v1726
    %4600 = vmatmul.mubr.bf16.gmra.mrb[0].mxu0 %v1725
    %v4601 = vpop.f32.mrb[0].mxu0
    %v4602 = vadd.f32 %v2046, %v4601
    %v4603 = vpop.f32.mrb[0].mxu0
    %v4604 = vadd.f32 %v2050, %v4603
    %v4605 = vpop.f32.mrb[0].mxu0
    %v4606 = vadd.f32 %v2046, %v4605
    %v4607 = vpop.f32.mrb[0].mxu0
    %v4608 = vadd.f32 %v2050, %v4607
    %4609 = vmatprep.mubr.bf16.mxu0 %v1730
    %4610 = vmatmul.mubr.bf16.gmra.mrb[0].mxu0 %v1729
    %v4611 = vpop.f32.mrb[0].mxu0
    %v4612 = vadd.f32 %v2046, %v4611
    %v4613 = vpop.f32.mrb[0].mxu0
    %v4614 = vadd.f32 %v2050, %v4613
    %v4615 = vpop.f32.mrb[0].mxu0
    %v4616 = vadd.f32 %v2046, %v4615
    %v4617 = vpop.f32.mrb[0].mxu0
    %v4618 = vadd.f32 %v2050, %v4617
    %4619 = vmatprep.mubr.bf16.mxu0 %v1734
    %4620 = vmatmul.mubr.bf16.gmra.mrb[0].mxu0 %v1733
    %v4621 = vpop.f32.mrb[0].mxu0
    %v4622 = vadd.f32 %v2046, %v4621
    %v4623 = vpop.f32.mrb[0].mxu0
    %v4624 = vadd.f32 %v2050, %v4623
    %v4625 = vpop.f32.mrb[0].mxu0
    %v4626 = vadd.f32 %v2046, %v4625
    %v4627 = vpop.f32.mrb[0].mxu0
    %v4628 = vadd.f32 %v2050, %v4627
    %4629 = vmatprep.mubr.bf16.mxu0 %v1738
    %4630 = vmatmul.mubr.bf16.gmra.mrb[0].mxu0 %v1737
    %v4631 = vpop.f32.mrb[0].mxu0
    %v4632 = vadd.f32 %v2046, %v4631
    %v4633 = vpop.f32.mrb[0].mxu0
    %v4634 = vadd.f32 %v2050, %v4633
    %v4635 = vpop.f32.mrb[0].mxu0
    %v4636 = vadd.f32 %v2046, %v4635
    %v4637 = vpop.f32.mrb[0].mxu0
    %v4638 = vadd.f32 %v2050, %v4637
    %4639 = vmatprep.mubr.bf16.mxu0 %v1742
    %4640 = vmatmul.mubr.bf16.gmra.mrb[0].mxu0 %v1741
    %v4641 = vpop.f32.mrb[0].mxu0
    %v4642 = vadd.f32 %v2046, %v4641
    %v4643 = vpop.f32.mrb[0].mxu0
    %v4644 = vadd.f32 %v2050, %v4643
    %v4645 = vpop.f32.mrb[0].mxu0
    %v4646 = vadd.f32 %v2046, %v4645
    %v4647 = vpop.f32.mrb[0].mxu0
    %v4648 = vadd.f32 %v2050, %v4647
    %4649 = vmatprep.mubr.bf16.mxu0 %v1746
    %4650 = vmatmul.mubr.bf16.gmra.mrb[0].mxu0 %v1745
    %v4651 = vpop.f32.mrb[0].mxu0
    %v4652 = vadd.f32 %v2046, %v4651
    %v4653 = vpop.f32.mrb[0].mxu0
    %v4654 = vadd.f32 %v2050, %v4653
    %v4655 = vpop.f32.mrb[0].mxu0
    %v4656 = vadd.f32 %v2046, %v4655
    %v4657 = vpop.f32.mrb[0].mxu0
    %v4658 = vadd.f32 %v2050, %v4657
    %4659 = vmatprep.mubr.bf16.mxu0 %v1750
    %4660 = vmatmul.mubr.bf16.gmra.mrb[0].mxu0 %v1749
    %v4661 = vpop.f32.mrb[0].mxu0
    %v4662 = vadd.f32 %v2046, %v4661
    %v4663 = vpop.f32.mrb[0].mxu0
    %v4664 = vadd.f32 %v2050, %v4663
    %v4665 = vpop.f32.mrb[0].mxu0
    %v4666 = vadd.f32 %v2046, %v4665
    %v4667 = vpop.f32.mrb[0].mxu0
    %v4668 = vadd.f32 %v2050, %v4667
    %4669 = vmatprep.mubr.bf16.mxu0 %v1754
    %4670 = vmatmul.mubr.bf16.gmra.mrb[0].mxu0 %v1753
    %v4671 = vpop.f32.mrb[0].mxu0
    %v4672 = vadd.f32 %v2046, %v4671
    %v4673 = vpop.f32.mrb[0].mxu0
    %v4674 = vadd.f32 %v2050, %v4673
    %v4675 = vpop.f32.mrb[0].mxu0
    %v4676 = vadd.f32 %v2046, %v4675
    %v4677 = vpop.f32.mrb[0].mxu0
    %v4678 = vadd.f32 %v2050, %v4677
    %4679 = vmatprep.mubr.bf16.mxu0 %v1758
    %4680 = vmatmul.mubr.bf16.gmra.mrb[0].mxu0 %v1757
    %v4681 = vpop.f32.mrb[0].mxu0
    %v4682 = vadd.f32 %v2046, %v4681
    %v4683 = vpop.f32.mrb[0].mxu0
    %v4684 = vadd.f32 %v2050, %v4683
    %v4685 = vpop.f32.mrb[0].mxu0
    %v4686 = vadd.f32 %v2046, %v4685
    %v4687 = vpop.f32.mrb[0].mxu0
    %v4688 = vadd.f32 %v2050, %v4687
    %4689 = vdwg.mxu0
    %4690 = vmatprep.subr.bf16.mxu0 %v2962
    %4691 = vmatpush1.bf16.msra.mxu0 %v2961
    %4692 = vmatprep.subr.bf16.mxu0 %v2970
    %4693 = vmatpush1.bf16.msra.mxu0 %v2969
    %4694 = vmatprep.subr.bf16.mxu0 %v2978
    %4695 = vmatpush1.bf16.msra.mxu0 %v2977
    %4696 = vmatprep.subr.bf16.mxu0 %v2986
    %4697 = vmatpush1.bf16.msra.mxu0 %v2985
    %4698 = vmatprep.subr.bf16.mxu0 %v2994
    %4699 = vmatpush1.bf16.msra.mxu0 %v2993
    %4700 = vmatprep.subr.bf16.mxu0 %v3002
    %4701 = vmatpush1.bf16.msra.mxu0 %v3001
    %4702 = vmatprep.subr.bf16.mxu0 %v3010
    %4703 = vmatpush1.bf16.msra.mxu0 %v3009
    %4704 = vmatprep.subr.bf16.mxu0 %v3018
    %4705 = vmatpush1.bf16.msra.mxu0 %v3017
    %4706 = vmatprep.subr.bf16.mxu0 %v3026
    %4707 = vmatpush1.bf16.msra.mxu0 %v3025
    %4708 = vmatprep.subr.bf16.mxu0 %v3034
    %4709 = vmatpush1.bf16.msra.mxu0 %v3033
    %4710 = vmatprep.subr.bf16.mxu0 %v3042
    %4711 = vmatpush1.bf16.msra.mxu0 %v3041
    %4712 = vmatprep.subr.bf16.mxu0 %v3050
    %4713 = vmatpush1.bf16.msra.mxu0 %v3049
    %4714 = vmatprep.subr.bf16.mxu0 %v3058
    %4715 = vmatpush1.bf16.msra.mxu0 %v3057
    %4716 = vmatprep.subr.bf16.mxu0 %v3066
    %4717 = vmatpush1.bf16.msra.mxu0 %v3065
    %4718 = vmatprep.subr.bf16.mxu0 %v3074
    %4719 = vmatpush1.bf16.msra.mxu0 %v3073
    %4720 = vmatprep.subr.bf16.mxu0 %v3082
    %4721 = vmatpush1.bf16.msra.mxu0 %v3081
    %4722 = vmatprep.mubr.bf16.mxu0 %v1700
    %4723 = vmatmul.mubr.bf16.gmra.mrb[0].mxu0 %v1699
    %v4724 = vpop.f32.mrb[0].mxu0
    %v4725 = vadd.f32 %v4532, %v4724
    %v4726 = vpop.f32.mrb[0].mxu0
    %v4727 = vadd.f32 %v4534, %v4726
    %v4728 = vpop.f32.mrb[0].mxu0
    %v4729 = vadd.f32 %v4536, %v4728
    %v4730 = vpop.f32.mrb[0].mxu0
    %v4731 = vadd.f32 %v4538, %v4730
    %4732 = vmatprep.mubr.bf16.mxu0 %v1704
    %4733 = vmatmul.mubr.bf16.gmra.mrb[0].mxu0 %v1703
    %v4734 = vpop.f32.mrb[0].mxu0
    %v4735 = vadd.f32 %v4542, %v4734
    %v4736 = vpop.f32.mrb[0].mxu0
    %v4737 = vadd.f32 %v4544, %v4736
    %v4738 = vpop.f32.mrb[0].mxu0
    %v4739 = vadd.f32 %v4546, %v4738
    %v4740 = vpop.f32.mrb[0].mxu0
    %v4741 = vadd.f32 %v4548, %v4740
    %4742 = vmatprep.mubr.bf16.mxu0 %v1708
    %4743 = vmatmul.mubr.bf16.gmra.mrb[0].mxu0 %v1707
    %v4744 = vpop.f32.mrb[0].mxu0
    %v4745 = vadd.f32 %v4552, %v4744
    %v4746 = vpop.f32.mrb[0].mxu0
    %v4747 = vadd.f32 %v4554, %v4746
    %v4748 = vpop.f32.mrb[0].mxu0
    %v4749 = vadd.f32 %v4556, %v4748
    %v4750 = vpop.f32.mrb[0].mxu0
    %v4751 = vadd.f32 %v4558, %v4750
    %4752 = vmatprep.mubr.bf16.mxu0 %v1712
    %4753 = vmatmul.mubr.bf16.gmra.mrb[0].mxu0 %v1711
    %v4754 = vpop.f32.mrb[0].mxu0
    %v4755 = vadd.f32 %v4562, %v4754
    %v4756 = vpop.f32.mrb[0].mxu0
    %v4757 = vadd.f32 %v4564, %v4756
    %v4758 = vpop.f32.mrb[0].mxu0
    %v4759 = vadd.f32 %v4566, %v4758
    %v4760 = vpop.f32.mrb[0].mxu0
    %v4761 = vadd.f32 %v4568, %v4760
    %4762 = vmatprep.mubr.bf16.mxu0 %v1716
    %4763 = vmatmul.mubr.bf16.gmra.mrb[0].mxu0 %v1715
    %v4764 = vpop.f32.mrb[0].mxu0
    %v4765 = vadd.f32 %v4572, %v4764
    %v4766 = vpop.f32.mrb[0].mxu0
    %v4767 = vadd.f32 %v4574, %v4766
    %v4768 = vpop.f32.mrb[0].mxu0
    %v4769 = vadd.f32 %v4576, %v4768
    %v4770 = vpop.f32.mrb[0].mxu0
    %v4771 = vadd.f32 %v4578, %v4770
    %4772 = vmatprep.mubr.bf16.mxu0 %v1720
    %4773 = vmatmul.mubr.bf16.gmra.mrb[0].mxu0 %v1719
    %v4774 = vpop.f32.mrb[0].mxu0
    %v4775 = vadd.f32 %v4582, %v4774
    %v4776 = vpop.f32.mrb[0].mxu0
    %v4777 = vadd.f32 %v4584, %v4776
    %v4778 = vpop.f32.mrb[0].mxu0
    %v4779 = vadd.f32 %v4586, %v4778
    %v4780 = vpop.f32.mrb[0].mxu0
    %v4781 = vadd.f32 %v4588, %v4780
    %4782 = vmatprep.mubr.bf16.mxu0 %v1724
    %4783 = vmatmul.mubr.bf16.gmra.mrb[0].mxu0 %v1723
    %v4784 = vpop.f32.mrb[0].mxu0
    %v4785 = vadd.f32 %v4592, %v4784
    %v4786 = vpop.f32.mrb[0].mxu0
    %v4787 = vadd.f32 %v4594, %v4786
    %v4788 = vpop.f32.mrb[0].mxu0
    %v4789 = vadd.f32 %v4596, %v4788
    %v4790 = vpop.f32.mrb[0].mxu0
    %v4791 = vadd.f32 %v4598, %v4790
    %4792 = vmatprep.mubr.bf16.mxu0 %v1728
    %4793 = vmatmul.mubr.bf16.gmra.mrb[0].mxu0 %v1727
    %v4794 = vpop.f32.mrb[0].mxu0
    %v4795 = vadd.f32 %v4602, %v4794
    %v4796 = vpop.f32.mrb[0].mxu0
    %v4797 = vadd.f32 %v4604, %v4796
    %v4798 = vpop.f32.mrb[0].mxu0
    %v4799 = vadd.f32 %v4606, %v4798
    %v4800 = vpop.f32.mrb[0].mxu0
    %v4801 = vadd.f32 %v4608, %v4800
    %4802 = vmatprep.mubr.bf16.mxu0 %v1732
    %4803 = vmatmul.mubr.bf16.gmra.mrb[0].mxu0 %v1731
    %v4804 = vpop.f32.mrb[0].mxu0
    %v4805 = vadd.f32 %v4612, %v4804
    %v4806 = vpop.f32.mrb[0].mxu0
    %v4807 = vadd.f32 %v4614, %v4806
    %v4808 = vpop.f32.mrb[0].mxu0
    %v4809 = vadd.f32 %v4616, %v4808
    %v4810 = vpop.f32.mrb[0].mxu0
    %v4811 = vadd.f32 %v4618, %v4810
    %4812 = vmatprep.mubr.bf16.mxu0 %v1736
    %4813 = vmatmul.mubr.bf16.gmra.mrb[0].mxu0 %v1735
    %v4814 = vpop.f32.mrb[0].mxu0
    %v4815 = vadd.f32 %v4622, %v4814
    %v4816 = vpop.f32.mrb[0].mxu0
    %v4817 = vadd.f32 %v4624, %v4816
    %v4818 = vpop.f32.mrb[0].mxu0
    %v4819 = vadd.f32 %v4626, %v4818
    %v4820 = vpop.f32.mrb[0].mxu0
    %v4821 = vadd.f32 %v4628, %v4820
    %4822 = vmatprep.mubr.bf16.mxu0 %v1740
    %4823 = vmatmul.mubr.bf16.gmra.mrb[0].mxu0 %v1739
    %v4824 = vpop.f32.mrb[0].mxu0
    %v4825 = vadd.f32 %v4632, %v4824
    %v4826 = vpop.f32.mrb[0].mxu0
    %v4827 = vadd.f32 %v4634, %v4826
    %v4828 = vpop.f32.mrb[0].mxu0
    %v4829 = vadd.f32 %v4636, %v4828
    %v4830 = vpop.f32.mrb[0].mxu0
    %v4831 = vadd.f32 %v4638, %v4830
    %4832 = vmatprep.mubr.bf16.mxu0 %v1744
    %4833 = vmatmul.mubr.bf16.gmra.mrb[0].mxu0 %v1743
    %v4834 = vpop.f32.mrb[0].mxu0
    %v4835 = vadd.f32 %v4642, %v4834
    %v4836 = vpop.f32.mrb[0].mxu0
    %v4837 = vadd.f32 %v4644, %v4836
    %v4838 = vpop.f32.mrb[0].mxu0
    %v4839 = vadd.f32 %v4646, %v4838
    %v4840 = vpop.f32.mrb[0].mxu0
    %v4841 = vadd.f32 %v4648, %v4840
    %4842 = vmatprep.mubr.bf16.mxu0 %v1748
    %4843 = vmatmul.mubr.bf16.gmra.mrb[0].mxu0 %v1747
    %v4844 = vpop.f32.mrb[0].mxu0
    %v4845 = vadd.f32 %v4652, %v4844
    %v4846 = vpop.f32.mrb[0].mxu0
    %v4847 = vadd.f32 %v4654, %v4846
    %v4848 = vpop.f32.mrb[0].mxu0
    %v4849 = vadd.f32 %v4656, %v4848
    %v4850 = vpop.f32.mrb[0].mxu0
    %v4851 = vadd.f32 %v4658, %v4850
    %4852 = vmatprep.mubr.bf16.mxu0 %v1752
    %4853 = vmatmul.mubr.bf16.gmra.mrb[0].mxu0 %v1751
    %v4854 = vpop.f32.mrb[0].mxu0
    %v4855 = vadd.f32 %v4662, %v4854
    %v4856 = vpop.f32.mrb[0].mxu0
    %v4857 = vadd.f32 %v4664, %v4856
    %v4858 = vpop.f32.mrb[0].mxu0
    %v4859 = vadd.f32 %v4666, %v4858
    %v4860 = vpop.f32.mrb[0].mxu0
    %v4861 = vadd.f32 %v4668, %v4860
    %4862 = vmatprep.mubr.bf16.mxu0 %v1756
    %4863 = vmatmul.mubr.bf16.gmra.mrb[0].mxu0 %v1755
    %v4864 = vpop.f32.mrb[0].mxu0
    %v4865 = vadd.f32 %v4672, %v4864
    %v4866 = vpop.f32.mrb[0].mxu0
    %v4867 = vadd.f32 %v4674, %v4866
    %v4868 = vpop.f32.mrb[0].mxu0
    %v4869 = vadd.f32 %v4676, %v4868
    %v4870 = vpop.f32.mrb[0].mxu0
    %v4871 = vadd.f32 %v4678, %v4870
    %4872 = vmatprep.mubr.bf16.mxu0 %v1760
    %4873 = vmatmul.mubr.bf16.gmra.mrb[0].mxu0 %v1759
    %v4874 = vpop.f32.mrb[0].mxu0
    %v4875 = vadd.f32 %v4682, %v4874
    %v4876 = vpop.f32.mrb[0].mxu0
    %v4877 = vadd.f32 %v4684, %v4876
    %v4878 = vpop.f32.mrb[0].mxu0
    %v4879 = vadd.f32 %v4686, %v4878
    %v4880 = vpop.f32.mrb[0].mxu0
    %v4881 = vadd.f32 %v4688, %v4880
    %4882 = vdwg.mxu0
    %v4883 = vmul.f32 %v3567, 0.2
    %v4884 = vmul.f32 %v3569, 0.2
    %v4885 = vmul.f32 %v3953, 0.2
    %v4886 = vmul.f32 %v3955, 0.2
    %v4887 = vmul.f32 %v4339, 0.2
    %v4888 = vmul.f32 %v4341, 0.2
    %v4889 = vmul.f32 %v4725, 0.2
    %v4890 = vmul.f32 %v4727, 0.2
    %v4891 = vmul.f32 %v3571, 0.2
    %v4892 = vmul.f32 %v3573, 0.2
    %v4893 = vmul.f32 %v3957, 0.2
    %v4894 = vmul.f32 %v3959, 0.2
    %v4895 = vmul.f32 %v4343, 0.2
    %v4896 = vmul.f32 %v4345, 0.2
    %v4897 = vmul.f32 %v4729, 0.2
    %v4898 = vmul.f32 %v4731, 0.2
    %v4899 = vmul.f32 %v3577, 0.2
    %v4900 = vmul.f32 %v3579, 0.2
    %v4901 = vmul.f32 %v3963, 0.2
    %v4902 = vmul.f32 %v3965, 0.2
    %v4903 = vmul.f32 %v4349, 0.2
    %v4904 = vmul.f32 %v4351, 0.2
    %v4905 = vmul.f32 %v4735, 0.2
    %v4906 = vmul.f32 %v4737, 0.2
    %v4907 = vmul.f32 %v3581, 0.2
    %v4908 = vmul.f32 %v3583, 0.2
    %v4909 = vmul.f32 %v3967, 0.2
    %v4910 = vmul.f32 %v3969, 0.2
    %v4911 = vmul.f32 %v4353, 0.2
    %v4912 = vmul.f32 %v4355, 0.2
    %v4913 = vmul.f32 %v4739, 0.2
    %v4914 = vmul.f32 %v4741, 0.2
    %v4915 = vmul.f32 %v3587, 0.2
    %v4916 = vmul.f32 %v3589, 0.2
    %v4917 = vmul.f32 %v3973, 0.2
    %v4918 = vmul.f32 %v3975, 0.2
    %v4919 = vmul.f32 %v4359, 0.2
    %v4920 = vmul.f32 %v4361, 0.2
    %v4921 = vmul.f32 %v4745, 0.2
    %v4922 = vmul.f32 %v4747, 0.2
    %v4923 = vmul.f32 %v3591, 0.2
    %v4924 = vmul.f32 %v3593, 0.2
    %v4925 = vmul.f32 %v3977, 0.2
    %v4926 = vmul.f32 %v3979, 0.2
    %v4927 = vmul.f32 %v4363, 0.2
    %v4928 = vmul.f32 %v4365, 0.2
    %v4929 = vmul.f32 %v4749, 0.2
    %v4930 = vmul.f32 %v4751, 0.2
    %v4931 = vmul.f32 %v3597, 0.2
    %v4932 = vmul.f32 %v3599, 0.2
    %v4933 = vmul.f32 %v3983, 0.2
    %v4934 = vmul.f32 %v3985, 0.2
    %v4935 = vmul.f32 %v4369, 0.2
    %v4936 = vmul.f32 %v4371, 0.2
    %v4937 = vmul.f32 %v4755, 0.2
    %v4938 = vmul.f32 %v4757, 0.2
    %v4939 = vmul.f32 %v3601, 0.2
    %v4940 = vmul.f32 %v3603, 0.2
    %v4941 = vmul.f32 %v3987, 0.2
    %v4942 = vmul.f32 %v3989, 0.2
    %v4943 = vmul.f32 %v4373, 0.2
    %v4944 = vmul.f32 %v4375, 0.2
    %v4945 = vmul.f32 %v4759, 0.2
    %v4946 = vmul.f32 %v4761, 0.2
    %v4947 = vmul.f32 %v3607, 0.2
    %v4948 = vmul.f32 %v3609, 0.2
    %v4949 = vmul.f32 %v3993, 0.2
    %v4950 = vmul.f32 %v3995, 0.2
    %v4951 = vmul.f32 %v4379, 0.2
    %v4952 = vmul.f32 %v4381, 0.2
    %v4953 = vmul.f32 %v4765, 0.2
    %v4954 = vmul.f32 %v4767, 0.2
    %v4955 = vmul.f32 %v3611, 0.2
    %v4956 = vmul.f32 %v3613, 0.2
    %v4957 = vmul.f32 %v3997, 0.2
    %v4958 = vmul.f32 %v3999, 0.2
    %v4959 = vmul.f32 %v4383, 0.2
    %v4960 = vmul.f32 %v4385, 0.2
    %v4961 = vmul.f32 %v4769, 0.2
    %v4962 = vmul.f32 %v4771, 0.2
    %v4963 = vmul.f32 %v3617, 0.2
    %v4964 = vmul.f32 %v3619, 0.2
    %v4965 = vmul.f32 %v4003, 0.2
    %v4966 = vmul.f32 %v4005, 0.2
    %v4967 = vmul.f32 %v4389, 0.2
    %v4968 = vmul.f32 %v4391, 0.2
    %v4969 = vmul.f32 %v4775, 0.2
    %v4970 = vmul.f32 %v4777, 0.2
    %v4971 = vmul.f32 %v3621, 0.2
    %v4972 = vmul.f32 %v3623, 0.2
    %v4973 = vmul.f32 %v4007, 0.2
    %v4974 = vmul.f32 %v4009, 0.2
    %v4975 = vmul.f32 %v4393, 0.2
    %v4976 = vmul.f32 %v4395, 0.2
    %v4977 = vmul.f32 %v4779, 0.2
    %v4978 = vmul.f32 %v4781, 0.2
    %v4979 = vmul.f32 %v3627, 0.2
    %v4980 = vmul.f32 %v3629, 0.2
    %v4981 = vmul.f32 %v4013, 0.2
    %v4982 = vmul.f32 %v4015, 0.2
    %v4983 = vmul.f32 %v4399, 0.2
    %v4984 = vmul.f32 %v4401, 0.2
    %v4985 = vmul.f32 %v4785, 0.2
    %v4986 = vmul.f32 %v4787, 0.2
    %v4987 = vmul.f32 %v3631, 0.2
    %v4988 = vmul.f32 %v3633, 0.2
    %v4989 = vmul.f32 %v4017, 0.2
    %v4990 = vmul.f32 %v4019, 0.2
    %v4991 = vmul.f32 %v4403, 0.2
    %v4992 = vmul.f32 %v4405, 0.2
    %v4993 = vmul.f32 %v4789, 0.2
    %v4994 = vmul.f32 %v4791, 0.2
    %v4995 = vmul.f32 %v3637, 0.2
    %v4996 = vmul.f32 %v3639, 0.2
    %v4997 = vmul.f32 %v4023, 0.2
    %v4998 = vmul.f32 %v4025, 0.2
    %v4999 = vmul.f32 %v4409, 0.2
    %v5000 = vmul.f32 %v4411, 0.2
    %v5001 = vmul.f32 %v4795, 0.2
    %v5002 = vmul.f32 %v4797, 0.2
    %v5003 = vmul.f32 %v3641, 0.2
    %v5004 = vmul.f32 %v3643, 0.2
    %v5005 = vmul.f32 %v4027, 0.2
    %v5006 = vmul.f32 %v4029, 0.2
    %v5007 = vmul.f32 %v4413, 0.2
    %v5008 = vmul.f32 %v4415, 0.2
    %v5009 = vmul.f32 %v4799, 0.2
    %v5010 = vmul.f32 %v4801, 0.2
    %v5011 = vmul.f32 %v3647, 0.2
    %v5012 = vmul.f32 %v3649, 0.2
    %v5013 = vmul.f32 %v4033, 0.2
    %v5014 = vmul.f32 %v4035, 0.2
    %v5015 = vmul.f32 %v4419, 0.2
    %v5016 = vmul.f32 %v4421, 0.2
    %v5017 = vmul.f32 %v4805, 0.2
    %v5018 = vmul.f32 %v4807, 0.2
    %v5019 = vmul.f32 %v3651, 0.2
    %v5020 = vmul.f32 %v3653, 0.2
    %v5021 = vmul.f32 %v4037, 0.2
    %v5022 = vmul.f32 %v4039, 0.2
    %v5023 = vmul.f32 %v4423, 0.2
    %v5024 = vmul.f32 %v4425, 0.2
    %v5025 = vmul.f32 %v4809, 0.2
    %v5026 = vmul.f32 %v4811, 0.2
    %v5027 = vmul.f32 %v3657, 0.2
    %v5028 = vmul.f32 %v3659, 0.2
    %v5029 = vmul.f32 %v4043, 0.2
    %v5030 = vmul.f32 %v4045, 0.2
    %v5031 = vmul.f32 %v4429, 0.2
    %v5032 = vmul.f32 %v4431, 0.2
    %v5033 = vmul.f32 %v4815, 0.2
    %v5034 = vmul.f32 %v4817, 0.2
    %v5035 = vmul.f32 %v3661, 0.2
    %v5036 = vmul.f32 %v3663, 0.2
    %v5037 = vmul.f32 %v4047, 0.2
    %v5038 = vmul.f32 %v4049, 0.2
    %v5039 = vmul.f32 %v4433, 0.2
    %v5040 = vmul.f32 %v4435, 0.2
    %v5041 = vmul.f32 %v4819, 0.2
    %v5042 = vmul.f32 %v4821, 0.2
    %v5043 = vmul.f32 %v3667, 0.2
    %v5044 = vmul.f32 %v3669, 0.2
    %v5045 = vmul.f32 %v4053, 0.2
    %v5046 = vmul.f32 %v4055, 0.2
    %v5047 = vmul.f32 %v4439, 0.2
    %v5048 = vmul.f32 %v4441, 0.2
    %v5049 = vmul.f32 %v4825, 0.2
    %v5050 = vmul.f32 %v4827, 0.2
    %v5051 = vmul.f32 %v3671, 0.2
    %v5052 = vmul.f32 %v3673, 0.2
    %v5053 = vmul.f32 %v4057, 0.2
    %v5054 = vmul.f32 %v4059, 0.2
    %v5055 = vmul.f32 %v4443, 0.2
    %v5056 = vmul.f32 %v4445, 0.2
    %v5057 = vmul.f32 %v4829, 0.2
    %v5058 = vmul.f32 %v4831, 0.2
    %v5059 = vmul.f32 %v3677, 0.2
    %v5060 = vmul.f32 %v3679, 0.2
    %v5061 = vmul.f32 %v4063, 0.2
    %v5062 = vmul.f32 %v4065, 0.2
    %v5063 = vmul.f32 %v4449, 0.2
    %v5064 = vmul.f32 %v4451, 0.2
    %v5065 = vmul.f32 %v4835, 0.2
    %v5066 = vmul.f32 %v4837, 0.2
    %v5067 = vmul.f32 %v3681, 0.2
    %v5068 = vmul.f32 %v3683, 0.2
    %v5069 = vmul.f32 %v4067, 0.2
    %v5070 = vmul.f32 %v4069, 0.2
    %v5071 = vmul.f32 %v4453, 0.2
    %v5072 = vmul.f32 %v4455, 0.2
    %v5073 = vmul.f32 %v4839, 0.2
    %v5074 = vmul.f32 %v4841, 0.2
    %v5075 = vmul.f32 %v3687, 0.2
    %v5076 = vmul.f32 %v3689, 0.2
    %v5077 = vmul.f32 %v4073, 0.2
    %v5078 = vmul.f32 %v4075, 0.2
    %v5079 = vmul.f32 %v4459, 0.2
    %v5080 = vmul.f32 %v4461, 0.2
    %v5081 = vmul.f32 %v4845, 0.2
    %v5082 = vmul.f32 %v4847, 0.2
    %v5083 = vmul.f32 %v3691, 0.2
    %v5084 = vmul.f32 %v3693, 0.2
    %v5085 = vmul.f32 %v4077, 0.2
    %v5086 = vmul.f32 %v4079, 0.2
    %v5087 = vmul.f32 %v4463, 0.2
    %v5088 = vmul.f32 %v4465, 0.2
    %v5089 = vmul.f32 %v4849, 0.2
    %v5090 = vmul.f32 %v4851, 0.2
    %v5091 = vmul.f32 %v3697, 0.2
    %v5092 = vmul.f32 %v3699, 0.2
    %v5093 = vmul.f32 %v4083, 0.2
    %v5094 = vmul.f32 %v4085, 0.2
    %v5095 = vmul.f32 %v4469, 0.2
    %v5096 = vmul.f32 %v4471, 0.2
    %v5097 = vmul.f32 %v4855, 0.2
    %v5098 = vmul.f32 %v4857, 0.2
    %v5099 = vmul.f32 %v3701, 0.2
    %v5100 = vmul.f32 %v3703, 0.2
    %v5101 = vmul.f32 %v4087, 0.2
    %v5102 = vmul.f32 %v4089, 0.2
    %v5103 = vmul.f32 %v4473, 0.2
    %v5104 = vmul.f32 %v4475, 0.2
    %v5105 = vmul.f32 %v4859, 0.2
    %v5106 = vmul.f32 %v4861, 0.2
    %v5107 = vmul.f32 %v3707, 0.2
    %v5108 = vmul.f32 %v3709, 0.2
    %v5109 = vmul.f32 %v4093, 0.2
    %v5110 = vmul.f32 %v4095, 0.2
    %v5111 = vmul.f32 %v4479, 0.2
    %v5112 = vmul.f32 %v4481, 0.2
    %v5113 = vmul.f32 %v4865, 0.2
    %v5114 = vmul.f32 %v4867, 0.2
    %v5115 = vmul.f32 %v3711, 0.2
    %v5116 = vmul.f32 %v3713, 0.2
    %v5117 = vmul.f32 %v4097, 0.2
    %v5118 = vmul.f32 %v4099, 0.2
    %v5119 = vmul.f32 %v4483, 0.2
    %v5120 = vmul.f32 %v4485, 0.2
    %v5121 = vmul.f32 %v4869, 0.2
    %v5122 = vmul.f32 %v4871, 0.2
    %v5123 = vmul.f32 %v3717, 0.2
    %v5124 = vmul.f32 %v3719, 0.2
    %v5125 = vmul.f32 %v4103, 0.2
    %v5126 = vmul.f32 %v4105, 0.2
    %v5127 = vmul.f32 %v4489, 0.2
    %v5128 = vmul.f32 %v4491, 0.2
    %v5129 = vmul.f32 %v4875, 0.2
    %v5130 = vmul.f32 %v4877, 0.2
    %v5131 = vmul.f32 %v3721, 0.2
    %v5132 = vmul.f32 %v3723, 0.2
    %v5133 = vmul.f32 %v4107, 0.2
    %v5134 = vmul.f32 %v4109, 0.2
    %v5135 = vmul.f32 %v4493, 0.2
    %v5136 = vmul.f32 %v4495, 0.2
    %v5137 = vmul.f32 %v4879, 0.2
    %v5138 = vmul.f32 %v4881, 0.2
    %v5139 = vmax.f32 %v3567, %v4883
    %v5140 = vmax.f32 %v3569, %v4884
    %v5141 = vmax.f32 %v3953, %v4885
    %v5142 = vmax.f32 %v3955, %v4886
    %v5143 = vmax.f32 %v4339, %v4887
    %v5144 = vmax.f32 %v4341, %v4888
    %v5145 = vmax.f32 %v4725, %v4889
    %v5146 = vmax.f32 %v4727, %v4890
    %v5147 = vmax.f32 %v3571, %v4891
    %v5148 = vmax.f32 %v3573, %v4892
    %v5149 = vmax.f32 %v3957, %v4893
    %v5150 = vmax.f32 %v3959, %v4894
    %v5151 = vmax.f32 %v4343, %v4895
    %v5152 = vmax.f32 %v4345, %v4896
    %v5153 = vmax.f32 %v4729, %v4897
    %v5154 = vmax.f32 %v4731, %v4898
    %v5155 = vmax.f32 %v3577, %v4899
    %v5156 = vmax.f32 %v3579, %v4900
    %v5157 = vmax.f32 %v3963, %v4901
    %v5158 = vmax.f32 %v3965, %v4902
    %v5159 = vmax.f32 %v4349, %v4903
    %v5160 = vmax.f32 %v4351, %v4904
    %v5161 = vmax.f32 %v4735, %v4905
    %v5162 = vmax.f32 %v4737, %v4906
    %v5163 = vmax.f32 %v3581, %v4907
    %v5164 = vmax.f32 %v3583, %v4908
    %v5165 = vmax.f32 %v3967, %v4909
    %v5166 = vmax.f32 %v3969, %v4910
    %v5167 = vmax.f32 %v4353, %v4911
    %v5168 = vmax.f32 %v4355, %v4912
    %v5169 = vmax.f32 %v4739, %v4913
    %v5170 = vmax.f32 %v4741, %v4914
    %v5171 = vmax.f32 %v3587, %v4915
    %v5172 = vmax.f32 %v3589, %v4916
    %v5173 = vmax.f32 %v3973, %v4917
    %v5174 = vmax.f32 %v3975, %v4918
    %v5175 = vmax.f32 %v4359, %v4919
    %v5176 = vmax.f32 %v4361, %v4920
    %v5177 = vmax.f32 %v4745, %v4921
    %v5178 = vmax.f32 %v4747, %v4922
    %v5179 = vmax.f32 %v3591, %v4923
    %v5180 = vmax.f32 %v3593, %v4924
    %v5181 = vmax.f32 %v3977, %v4925
    %v5182 = vmax.f32 %v3979, %v4926
    %v5183 = vmax.f32 %v4363, %v4927
    %v5184 = vmax.f32 %v4365, %v4928
    %v5185 = vmax.f32 %v4749, %v4929
    %v5186 = vmax.f32 %v4751, %v4930
    %v5187 = vmax.f32 %v3597, %v4931
    %v5188 = vmax.f32 %v3599, %v4932
    %v5189 = vmax.f32 %v3983, %v4933
    %v5190 = vmax.f32 %v3985, %v4934
    %v5191 = vmax.f32 %v4369, %v4935
    %v5192 = vmax.f32 %v4371, %v4936
    %v5193 = vmax.f32 %v4755, %v4937
    %v5194 = vmax.f32 %v4757, %v4938
    %v5195 = vmax.f32 %v3601, %v4939
    %v5196 = vmax.f32 %v3603, %v4940
    %v5197 = vmax.f32 %v3987, %v4941
    %v5198 = vmax.f32 %v3989, %v4942
    %v5199 = vmax.f32 %v4373, %v4943
    %v5200 = vmax.f32 %v4375, %v4944
    %v5201 = vmax.f32 %v4759, %v4945
    %v5202 = vmax.f32 %v4761, %v4946
    %v5203 = vmax.f32 %v3607, %v4947
    %v5204 = vmax.f32 %v3609, %v4948
    %v5205 = vmax.f32 %v3993, %v4949
    %v5206 = vmax.f32 %v3995, %v4950
    %v5207 = vmax.f32 %v4379, %v4951
    %v5208 = vmax.f32 %v4381, %v4952
    %v5209 = vmax.f32 %v4765, %v4953
    %v5210 = vmax.f32 %v4767, %v4954
    %v5211 = vmax.f32 %v3611, %v4955
    %v5212 = vmax.f32 %v3613, %v4956
    %v5213 = vmax.f32 %v3997, %v4957
    %v5214 = vmax.f32 %v3999, %v4958
    %v5215 = vmax.f32 %v4383, %v4959
    %v5216 = vmax.f32 %v4385, %v4960
    %v5217 = vmax.f32 %v4769, %v4961
    %v5218 = vmax.f32 %v4771, %v4962
    %v5219 = vmax.f32 %v3617, %v4963
    %v5220 = vmax.f32 %v3619, %v4964
    %v5221 = vmax.f32 %v4003, %v4965
    %v5222 = vmax.f32 %v4005, %v4966
    %v5223 = vmax.f32 %v4389, %v4967
    %v5224 = vmax.f32 %v4391, %v4968
    %v5225 = vmax.f32 %v4775, %v4969
    %v5226 = vmax.f32 %v4777, %v4970
    %v5227 = vmax.f32 %v3621, %v4971
    %v5228 = vmax.f32 %v3623, %v4972
    %v5229 = vmax.f32 %v4007, %v4973
    %v5230 = vmax.f32 %v4009, %v4974
    %v5231 = vmax.f32 %v4393, %v4975
    %v5232 = vmax.f32 %v4395, %v4976
    %v5233 = vmax.f32 %v4779, %v4977
    %v5234 = vmax.f32 %v4781, %v4978
    %v5235 = vmax.f32 %v3627, %v4979
    %v5236 = vmax.f32 %v3629, %v4980
    %v5237 = vmax.f32 %v4013, %v4981
    %v5238 = vmax.f32 %v4015, %v4982
    %v5239 = vmax.f32 %v4399, %v4983
    %v5240 = vmax.f32 %v4401, %v4984
    %v5241 = vmax.f32 %v4785, %v4985
    %v5242 = vmax.f32 %v4787, %v4986
    %v5243 = vmax.f32 %v3631, %v4987
    %v5244 = vmax.f32 %v3633, %v4988
    %v5245 = vmax.f32 %v4017, %v4989
    %v5246 = vmax.f32 %v4019, %v4990
    %v5247 = vmax.f32 %v4403, %v4991
    %v5248 = vmax.f32 %v4405, %v4992
    %v5249 = vmax.f32 %v4789, %v4993
    %v5250 = vmax.f32 %v4791, %v4994
    %v5251 = vmax.f32 %v3637, %v4995
    %v5252 = vmax.f32 %v3639, %v4996
    %v5253 = vmax.f32 %v4023, %v4997
    %v5254 = vmax.f32 %v4025, %v4998
    %v5255 = vmax.f32 %v4409, %v4999
    %v5256 = vmax.f32 %v4411, %v5000
    %v5257 = vmax.f32 %v4795, %v5001
    %v5258 = vmax.f32 %v4797, %v5002
    %v5259 = vmax.f32 %v3641, %v5003
    %v5260 = vmax.f32 %v3643, %v5004
    %v5261 = vmax.f32 %v4027, %v5005
    %v5262 = vmax.f32 %v4029, %v5006
    %v5263 = vmax.f32 %v4413, %v5007
    %v5264 = vmax.f32 %v4415, %v5008
    %v5265 = vmax.f32 %v4799, %v5009
    %v5266 = vmax.f32 %v4801, %v5010
    %v5267 = vmax.f32 %v3647, %v5011
    %v5268 = vmax.f32 %v3649, %v5012
    %v5269 = vmax.f32 %v4033, %v5013
    %v5270 = vmax.f32 %v4035, %v5014
    %v5271 = vmax.f32 %v4419, %v5015
    %v5272 = vmax.f32 %v4421, %v5016
    %v5273 = vmax.f32 %v4805, %v5017
    %v5274 = vmax.f32 %v4807, %v5018
    %v5275 = vmax.f32 %v3651, %v5019
    %v5276 = vmax.f32 %v3653, %v5020
    %v5277 = vmax.f32 %v4037, %v5021
    %v5278 = vmax.f32 %v4039, %v5022
    %v5279 = vmax.f32 %v4423, %v5023
    %v5280 = vmax.f32 %v4425, %v5024
    %v5281 = vmax.f32 %v4809, %v5025
    %v5282 = vmax.f32 %v4811, %v5026
    %v5283 = vmax.f32 %v3657, %v5027
    %v5284 = vmax.f32 %v3659, %v5028
    %v5285 = vmax.f32 %v4043, %v5029
    %v5286 = vmax.f32 %v4045, %v5030
    %v5287 = vmax.f32 %v4429, %v5031
    %v5288 = vmax.f32 %v4431, %v5032
    %v5289 = vmax.f32 %v4815, %v5033
    %v5290 = vmax.f32 %v4817, %v5034
    %v5291 = vmax.f32 %v3661, %v5035
    %v5292 = vmax.f32 %v3663, %v5036
    %v5293 = vmax.f32 %v4047, %v5037
    %v5294 = vmax.f32 %v4049, %v5038
    %v5295 = vmax.f32 %v4433, %v5039
    %v5296 = vmax.f32 %v4435, %v5040
    %v5297 = vmax.f32 %v4819, %v5041
    %v5298 = vmax.f32 %v4821, %v5042
    %v5299 = vmax.f32 %v3667, %v5043
    %v5300 = vmax.f32 %v3669, %v5044
    %v5301 = vmax.f32 %v4053, %v5045
    %v5302 = vmax.f32 %v4055, %v5046
    %v5303 = vmax.f32 %v4439, %v5047
    %v5304 = vmax.f32 %v4441, %v5048
    %v5305 = vmax.f32 %v4825, %v5049
    %v5306 = vmax.f32 %v4827, %v5050
    %v5307 = vmax.f32 %v3671, %v5051
    %v5308 = vmax.f32 %v3673, %v5052
    %v5309 = vmax.f32 %v4057, %v5053
    %v5310 = vmax.f32 %v4059, %v5054
    %v5311 = vmax.f32 %v4443, %v5055
    %v5312 = vmax.f32 %v4445, %v5056
    %v5313 = vmax.f32 %v4829, %v5057
    %v5314 = vmax.f32 %v4831, %v5058
    %v5315 = vmax.f32 %v3677, %v5059
    %v5316 = vmax.f32 %v3679, %v5060
    %v5317 = vmax.f32 %v4063, %v5061
    %v5318 = vmax.f32 %v4065, %v5062
    %v5319 = vmax.f32 %v4449, %v5063
    %v5320 = vmax.f32 %v4451, %v5064
    %v5321 = vmax.f32 %v4835, %v5065
    %v5322 = vmax.f32 %v4837, %v5066
    %v5323 = vmax.f32 %v3681, %v5067
    %v5324 = vmax.f32 %v3683, %v5068
    %v5325 = vmax.f32 %v4067, %v5069
    %v5326 = vmax.f32 %v4069, %v5070
    %v5327 = vmax.f32 %v4453, %v5071
    %v5328 = vmax.f32 %v4455, %v5072
    %v5329 = vmax.f32 %v4839, %v5073
    %v5330 = vmax.f32 %v4841, %v5074
    %v5331 = vmax.f32 %v3687, %v5075
    %v5332 = vmax.f32 %v3689, %v5076
    %v5333 = vmax.f32 %v4073, %v5077
    %v5334 = vmax.f32 %v4075, %v5078
    %v5335 = vmax.f32 %v4459, %v5079
    %v5336 = vmax.f32 %v4461, %v5080
    %v5337 = vmax.f32 %v4845, %v5081
    %v5338 = vmax.f32 %v4847, %v5082
    %v5339 = vmax.f32 %v3691, %v5083
    %v5340 = vmax.f32 %v3693, %v5084
    %v5341 = vmax.f32 %v4077, %v5085
    %v5342 = vmax.f32 %v4079, %v5086
    %v5343 = vmax.f32 %v4463, %v5087
    %v5344 = vmax.f32 %v4465, %v5088
    %v5345 = vmax.f32 %v4849, %v5089
    %v5346 = vmax.f32 %v4851, %v5090
    %v5347 = vmax.f32 %v3697, %v5091
    %v5348 = vmax.f32 %v3699, %v5092
    %v5349 = vmax.f32 %v4083, %v5093
    %v5350 = vmax.f32 %v4085, %v5094
    %v5351 = vmax.f32 %v4469, %v5095
    %v5352 = vmax.f32 %v4471, %v5096
    %v5353 = vmax.f32 %v4855, %v5097
    %v5354 = vmax.f32 %v4857, %v5098
    %v5355 = vmax.f32 %v3701, %v5099
    %v5356 = vmax.f32 %v3703, %v5100
    %v5357 = vmax.f32 %v4087, %v5101
    %v5358 = vmax.f32 %v4089, %v5102
    %v5359 = vmax.f32 %v4473, %v5103
    %v5360 = vmax.f32 %v4475, %v5104
    %v5361 = vmax.f32 %v4859, %v5105
    %v5362 = vmax.f32 %v4861, %v5106
    %v5363 = vmax.f32 %v3707, %v5107
    %v5364 = vmax.f32 %v3709, %v5108
    %v5365 = vmax.f32 %v4093, %v5109
    %v5366 = vmax.f32 %v4095, %v5110
    %v5367 = vmax.f32 %v4479, %v5111
    %v5368 = vmax.f32 %v4481, %v5112
    %v5369 = vmax.f32 %v4865, %v5113
    %v5370 = vmax.f32 %v4867, %v5114
    %v5371 = vmax.f32 %v3711, %v5115
    %v5372 = vmax.f32 %v3713, %v5116
    %v5373 = vmax.f32 %v4097, %v5117
    %v5374 = vmax.f32 %v4099, %v5118
    %v5375 = vmax.f32 %v4483, %v5119
    %v5376 = vmax.f32 %v4485, %v5120
    %v5377 = vmax.f32 %v4869, %v5121
    %v5378 = vmax.f32 %v4871, %v5122
    %v5379 = vmax.f32 %v3717, %v5123
    %v5380 = vmax.f32 %v3719, %v5124
    %v5381 = vmax.f32 %v4103, %v5125
    %v5382 = vmax.f32 %v4105, %v5126
    %v5383 = vmax.f32 %v4489, %v5127
    %v5384 = vmax.f32 %v4491, %v5128
    %v5385 = vmax.f32 %v4875, %v5129
    %v5386 = vmax.f32 %v4877, %v5130
    %v5387 = vmax.f32 %v3721, %v5131
    %v5388 = vmax.f32 %v3723, %v5132
    %v5389 = vmax.f32 %v4107, %v5133
    %v5390 = vmax.f32 %v4109, %v5134
    %v5391 = vmax.f32 %v4493, %v5135
    %v5392 = vmax.f32 %v4495, %v5136
    %v5393 = vmax.f32 %v4879, %v5137
    %v5394 = vmax.f32 %v4881, %v5138
    %v5395 = vpack.c.bf16 %v5147, %v5139
    %v5396 = vpack.c.bf16 %v5148, %v5140
    %v5397 = vpack.c.bf16 %v5149, %v5141
    %v5398 = vpack.c.bf16 %v5150, %v5142
    %v5399 = vpack.c.bf16 %v5151, %v5143
    %v5400 = vpack.c.bf16 %v5152, %v5144
    %v5401 = vpack.c.bf16 %v5153, %v5145
    %v5402 = vpack.c.bf16 %v5154, %v5146
    %v5403 = vpack.c.bf16 %v5163, %v5155
    %v5404 = vpack.c.bf16 %v5164, %v5156
    %v5405 = vpack.c.bf16 %v5165, %v5157
    %v5406 = vpack.c.bf16 %v5166, %v5158
    %v5407 = vpack.c.bf16 %v5167, %v5159
    %v5408 = vpack.c.bf16 %v5168, %v5160
    %v5409 = vpack.c.bf16 %v5169, %v5161
    %v5410 = vpack.c.bf16 %v5170, %v5162
    %v5411 = vpack.c.bf16 %v5179, %v5171
    %v5412 = vpack.c.bf16 %v5180, %v5172
    %v5413 = vpack.c.bf16 %v5181, %v5173
    %v5414 = vpack.c.bf16 %v5182, %v5174
    %v5415 = vpack.c.bf16 %v5183, %v5175
    %v5416 = vpack.c.bf16 %v5184, %v5176
    %v5417 = vpack.c.bf16 %v5185, %v5177
    %v5418 = vpack.c.bf16 %v5186, %v5178
    %v5419 = vpack.c.bf16 %v5195, %v5187
    %v5420 = vpack.c.bf16 %v5196, %v5188
    %v5421 = vpack.c.bf16 %v5197, %v5189
    %v5422 = vpack.c.bf16 %v5198, %v5190
    %v5423 = vpack.c.bf16 %v5199, %v5191
    %v5424 = vpack.c.bf16 %v5200, %v5192
    %v5425 = vpack.c.bf16 %v5201, %v5193
    %v5426 = vpack.c.bf16 %v5202, %v5194
    %v5427 = vpack.c.bf16 %v5211, %v5203
    %v5428 = vpack.c.bf16 %v5212, %v5204
    %v5429 = vpack.c.bf16 %v5213, %v5205
    %v5430 = vpack.c.bf16 %v5214, %v5206
    %v5431 = vpack.c.bf16 %v5215, %v5207
    %v5432 = vpack.c.bf16 %v5216, %v5208
    %v5433 = vpack.c.bf16 %v5217, %v5209
    %v5434 = vpack.c.bf16 %v5218, %v5210
    %v5435 = vpack.c.bf16 %v5227, %v5219
    %v5436 = vpack.c.bf16 %v5228, %v5220
    %v5437 = vpack.c.bf16 %v5229, %v5221
    %v5438 = vpack.c.bf16 %v5230, %v5222
    %v5439 = vpack.c.bf16 %v5231, %v5223
    %v5440 = vpack.c.bf16 %v5232, %v5224
    %v5441 = vpack.c.bf16 %v5233, %v5225
    %v5442 = vpack.c.bf16 %v5234, %v5226
    %v5443 = vpack.c.bf16 %v5243, %v5235
    %v5444 = vpack.c.bf16 %v5244, %v5236
    %v5445 = vpack.c.bf16 %v5245, %v5237
    %v5446 = vpack.c.bf16 %v5246, %v5238
    %v5447 = vpack.c.bf16 %v5247, %v5239
    %v5448 = vpack.c.bf16 %v5248, %v5240
    %v5449 = vpack.c.bf16 %v5249, %v5241
    %v5450 = vpack.c.bf16 %v5250, %v5242
    %v5451 = vpack.c.bf16 %v5259, %v5251
    %v5452 = vpack.c.bf16 %v5260, %v5252
    %v5453 = vpack.c.bf16 %v5261, %v5253
    %v5454 = vpack.c.bf16 %v5262, %v5254
    %v5455 = vpack.c.bf16 %v5263, %v5255
    %v5456 = vpack.c.bf16 %v5264, %v5256
    %v5457 = vpack.c.bf16 %v5265, %v5257
    %v5458 = vpack.c.bf16 %v5266, %v5258
    %v5459 = vpack.c.bf16 %v5275, %v5267
    %v5460 = vpack.c.bf16 %v5276, %v5268
    %v5461 = vpack.c.bf16 %v5277, %v5269
    %v5462 = vpack.c.bf16 %v5278, %v5270
    %v5463 = vpack.c.bf16 %v5279, %v5271
    %v5464 = vpack.c.bf16 %v5280, %v5272
    %v5465 = vpack.c.bf16 %v5281, %v5273
    %v5466 = vpack.c.bf16 %v5282, %v5274
    %v5467 = vpack.c.bf16 %v5291, %v5283
    %v5468 = vpack.c.bf16 %v5292, %v5284
    %v5469 = vpack.c.bf16 %v5293, %v5285
    %v5470 = vpack.c.bf16 %v5294, %v5286
    %v5471 = vpack.c.bf16 %v5295, %v5287
    %v5472 = vpack.c.bf16 %v5296, %v5288
    %v5473 = vpack.c.bf16 %v5297, %v5289
    %v5474 = vpack.c.bf16 %v5298, %v5290
    %v5475 = vpack.c.bf16 %v5307, %v5299
    %v5476 = vpack.c.bf16 %v5308, %v5300
    %v5477 = vpack.c.bf16 %v5309, %v5301
    %v5478 = vpack.c.bf16 %v5310, %v5302
    %v5479 = vpack.c.bf16 %v5311, %v5303
    %v5480 = vpack.c.bf16 %v5312, %v5304
    %v5481 = vpack.c.bf16 %v5313, %v5305
    %v5482 = vpack.c.bf16 %v5314, %v5306
    %v5483 = vpack.c.bf16 %v5323, %v5315
    %v5484 = vpack.c.bf16 %v5324, %v5316
    %v5485 = vpack.c.bf16 %v5325, %v5317
    %v5486 = vpack.c.bf16 %v5326, %v5318
    %v5487 = vpack.c.bf16 %v5327, %v5319
    %v5488 = vpack.c.bf16 %v5328, %v5320
    %v5489 = vpack.c.bf16 %v5329, %v5321
    %v5490 = vpack.c.bf16 %v5330, %v5322
    %v5491 = vpack.c.bf16 %v5339, %v5331
    %v5492 = vpack.c.bf16 %v5340, %v5332
    %v5493 = vpack.c.bf16 %v5341, %v5333
    %v5494 = vpack.c.bf16 %v5342, %v5334
    %v5495 = vpack.c.bf16 %v5343, %v5335
    %v5496 = vpack.c.bf16 %v5344, %v5336
    %v5497 = vpack.c.bf16 %v5345, %v5337
    %v5498 = vpack.c.bf16 %v5346, %v5338
    %v5499 = vpack.c.bf16 %v5355, %v5347
    %v5500 = vpack.c.bf16 %v5356, %v5348
    %v5501 = vpack.c.bf16 %v5357, %v5349
    %v5502 = vpack.c.bf16 %v5358, %v5350
    %v5503 = vpack.c.bf16 %v5359, %v5351
    %v5504 = vpack.c.bf16 %v5360, %v5352
    %v5505 = vpack.c.bf16 %v5361, %v5353
    %v5506 = vpack.c.bf16 %v5362, %v5354
    %v5507 = vpack.c.bf16 %v5371, %v5363
    %v5508 = vpack.c.bf16 %v5372, %v5364
    %v5509 = vpack.c.bf16 %v5373, %v5365
    %v5510 = vpack.c.bf16 %v5374, %v5366
    %v5511 = vpack.c.bf16 %v5375, %v5367
    %v5512 = vpack.c.bf16 %v5376, %v5368
    %v5513 = vpack.c.bf16 %v5377, %v5369
    %v5514 = vpack.c.bf16 %v5378, %v5370
    %v5515 = vpack.c.bf16 %v5387, %v5379
    %v5516 = vpack.c.bf16 %v5388, %v5380
    %v5517 = vpack.c.bf16 %v5389, %v5381
    %v5518 = vpack.c.bf16 %v5390, %v5382
    %v5519 = vpack.c.bf16 %v5391, %v5383
    %v5520 = vpack.c.bf16 %v5392, %v5384
    %v5521 = vpack.c.bf16 %v5393, %v5385
    %v5522 = vpack.c.bf16 %v5394, %v5386
    %v5523 = vld [vmem:[#allocation7] sm:$0xf]
    %v5524 = vld [vmem:[#allocation7 + $0x4] sm:$0xf]
    %v5525 = vld [vmem:[#allocation7 + $0x8] sm:$0xf]
    %v5526 = vld [vmem:[#allocation7 + $0xc] sm:$0xf]
    %v5527 = vld [vmem:[#allocation7 + $0x10] sm:$0xf]
    %v5528 = vld [vmem:[#allocation7 + $0x14] sm:$0xf]
    %v5529 = vld [vmem:[#allocation7 + $0x18] sm:$0xf]
    %v5530 = vld [vmem:[#allocation7 + $0x1c] sm:$0xf]
    %v5531 = vld [vmem:[#allocation7 + $0x20] sm:$0xf]
    %v5532 = vld [vmem:[#allocation7 + $0x24] sm:$0xf]
    %v5533 = vld [vmem:[#allocation7 + $0x28] sm:$0xf]
    %v5534 = vld [vmem:[#allocation7 + $0x2c] sm:$0xf]
    %v5535 = vld [vmem:[#allocation7 + $0x30] sm:$0xf]
    %v5536 = vld [vmem:[#allocation7 + $0x34] sm:$0xf]
    %v5537 = vld [vmem:[#allocation7 + $0x38] sm:$0xf]
    %v5538 = vld [vmem:[#allocation7 + $0x3c] sm:$0xf]
    %v5539 = vld [vmem:[#allocation7 + $0x40] sm:$0xf]
    %v5540 = vld [vmem:[#allocation7 + $0x44] sm:$0xf]
    %v5541 = vld [vmem:[#allocation7 + $0x48] sm:$0xf]
    %v5542 = vld [vmem:[#allocation7 + $0x4c] sm:$0xf]
    %v5543 = vld [vmem:[#allocation7 + $0x50] sm:$0xf]
    %v5544 = vld [vmem:[#allocation7 + $0x54] sm:$0xf]
    %v5545 = vld [vmem:[#allocation7 + $0x58] sm:$0xf]
    %v5546 = vld [vmem:[#allocation7 + $0x5c] sm:$0xf]
    %v5547 = vld [vmem:[#allocation7 + $0x60] sm:$0xf]
    %v5548 = vld [vmem:[#allocation7 + $0x64] sm:$0xf]
    %v5549 = vld [vmem:[#allocation7 + $0x68] sm:$0xf]
    %v5550 = vld [vmem:[#allocation7 + $0x6c] sm:$0xf]
    %v5551 = vld [vmem:[#allocation7 + $0x70] sm:$0xf]
    %v5552 = vld [vmem:[#allocation7 + $0x74] sm:$0xf]
    %v5553 = vld [vmem:[#allocation7 + $0x78] sm:$0xf]
    %v5554 = vld [vmem:[#allocation7 + $0x7c] sm:$0xf]
    %v5555 = vld [vmem:[#allocation7 + $0x80] sm:$0xf]
    %v5556 = vld [vmem:[#allocation7 + $0x84] sm:$0xf]
    %v5557 = vld [vmem:[#allocation7 + $0x88] sm:$0xf]
    %v5558 = vld [vmem:[#allocation7 + $0x8c] sm:$0xf]
    %v5559 = vld [vmem:[#allocation7 + $0x90] sm:$0xf]
    %v5560 = vld [vmem:[#allocation7 + $0x94] sm:$0xf]
    %v5561 = vld [vmem:[#allocation7 + $0x98] sm:$0xf]
    %v5562 = vld [vmem:[#allocation7 + $0x9c] sm:$0xf]
    %v5563 = vld [vmem:[#allocation7 + $0xa0] sm:$0xf]
    %v5564 = vld [vmem:[#allocation7 + $0xa4] sm:$0xf]
    %v5565 = vld [vmem:[#allocation7 + $0xa8] sm:$0xf]
    %v5566 = vld [vmem:[#allocation7 + $0xac] sm:$0xf]
    %v5567 = vld [vmem:[#allocation7 + $0xb0] sm:$0xf]
    %v5568 = vld [vmem:[#allocation7 + $0xb4] sm:$0xf]
    %v5569 = vld [vmem:[#allocation7 + $0xb8] sm:$0xf]
    %v5570 = vld [vmem:[#allocation7 + $0xbc] sm:$0xf]
    %v5571 = vld [vmem:[#allocation7 + $0xc0] sm:$0xf]
    %v5572 = vld [vmem:[#allocation7 + $0xc4] sm:$0xf]
    %v5573 = vld [vmem:[#allocation7 + $0xc8] sm:$0xf]
    %v5574 = vld [vmem:[#allocation7 + $0xcc] sm:$0xf]
    %v5575 = vld [vmem:[#allocation7 + $0xd0] sm:$0xf]
    %v5576 = vld [vmem:[#allocation7 + $0xd4] sm:$0xf]
    %v5577 = vld [vmem:[#allocation7 + $0xd8] sm:$0xf]
    %v5578 = vld [vmem:[#allocation7 + $0xdc] sm:$0xf]
    %v5579 = vld [vmem:[#allocation7 + $0xe0] sm:$0xf]
    %v5580 = vld [vmem:[#allocation7 + $0xe4] sm:$0xf]
    %v5581 = vld [vmem:[#allocation7 + $0xe8] sm:$0xf]
    %v5582 = vld [vmem:[#allocation7 + $0xec] sm:$0xf]
    %v5583 = vld [vmem:[#allocation7 + $0xf0] sm:$0xf]
    %v5584 = vld [vmem:[#allocation7 + $0xf4] sm:$0xf]
    %v5585 = vld [vmem:[#allocation7 + $0xf8] sm:$0xf]
    %v5586 = vld [vmem:[#allocation7 + $0xfc] sm:$0xf]
    %v5587 = vld [vmem:[#allocation7 + $0x100] sm:$0xf]
    %v5588 = vld [vmem:[#allocation7 + $0x104] sm:$0xf]
    %v5589 = vld [vmem:[#allocation7 + $0x108] sm:$0xf]
    %v5590 = vld [vmem:[#allocation7 + $0x10c] sm:$0xf]
    %v5591 = vld [vmem:[#allocation7 + $0x110] sm:$0xf]
    %v5592 = vld [vmem:[#allocation7 + $0x114] sm:$0xf]
    %v5593 = vld [vmem:[#allocation7 + $0x118] sm:$0xf]
    %v5594 = vld [vmem:[#allocation7 + $0x11c] sm:$0xf]
    %v5595 = vld [vmem:[#allocation7 + $0x120] sm:$0xf]
    %v5596 = vld [vmem:[#allocation7 + $0x124] sm:$0xf]
    %v5597 = vld [vmem:[#allocation7 + $0x128] sm:$0xf]
    %v5598 = vld [vmem:[#allocation7 + $0x12c] sm:$0xf]
    %v5599 = vld [vmem:[#allocation7 + $0x130] sm:$0xf]
    %v5600 = vld [vmem:[#allocation7 + $0x134] sm:$0xf]
    %v5601 = vld [vmem:[#allocation7 + $0x138] sm:$0xf]
    %v5602 = vld [vmem:[#allocation7 + $0x13c] sm:$0xf]
    %v5603 = vld [vmem:[#allocation7 + $0x140] sm:$0xf]
    %v5604 = vld [vmem:[#allocation7 + $0x144] sm:$0xf]
    %v5605 = vld [vmem:[#allocation7 + $0x148] sm:$0xf]
    %v5606 = vld [vmem:[#allocation7 + $0x14c] sm:$0xf]
    %v5607 = vld [vmem:[#allocation7 + $0x150] sm:$0xf]
    %v5608 = vld [vmem:[#allocation7 + $0x154] sm:$0xf]
    %v5609 = vld [vmem:[#allocation7 + $0x158] sm:$0xf]
    %v5610 = vld [vmem:[#allocation7 + $0x15c] sm:$0xf]
    %v5611 = vld [vmem:[#allocation7 + $0x160] sm:$0xf]
    %v5612 = vld [vmem:[#allocation7 + $0x164] sm:$0xf]
    %v5613 = vld [vmem:[#allocation7 + $0x168] sm:$0xf]
    %v5614 = vld [vmem:[#allocation7 + $0x16c] sm:$0xf]
    %v5615 = vld [vmem:[#allocation7 + $0x170] sm:$0xf]
    %v5616 = vld [vmem:[#allocation7 + $0x174] sm:$0xf]
    %v5617 = vld [vmem:[#allocation7 + $0x178] sm:$0xf]
    %v5618 = vld [vmem:[#allocation7 + $0x17c] sm:$0xf]
    %v5619 = vld [vmem:[#allocation7 + $0x180] sm:$0xf]
    %v5620 = vld [vmem:[#allocation7 + $0x184] sm:$0xf]
    %v5621 = vld [vmem:[#allocation7 + $0x188] sm:$0xf]
    %v5622 = vld [vmem:[#allocation7 + $0x18c] sm:$0xf]
    %v5623 = vld [vmem:[#allocation7 + $0x190] sm:$0xf]
    %v5624 = vld [vmem:[#allocation7 + $0x194] sm:$0xf]
    %v5625 = vld [vmem:[#allocation7 + $0x198] sm:$0xf]
    %v5626 = vld [vmem:[#allocation7 + $0x19c] sm:$0xf]
    %v5627 = vld [vmem:[#allocation7 + $0x1a0] sm:$0xf]
    %v5628 = vld [vmem:[#allocation7 + $0x1a4] sm:$0xf]
    %v5629 = vld [vmem:[#allocation7 + $0x1a8] sm:$0xf]
    %v5630 = vld [vmem:[#allocation7 + $0x1ac] sm:$0xf]
    %v5631 = vld [vmem:[#allocation7 + $0x1b0] sm:$0xf]
    %v5632 = vld [vmem:[#allocation7 + $0x1b4] sm:$0xf]
    %v5633 = vld [vmem:[#allocation7 + $0x1b8] sm:$0xf]
    %v5634 = vld [vmem:[#allocation7 + $0x1bc] sm:$0xf]
    %v5635 = vld [vmem:[#allocation7 + $0x1c0] sm:$0xf]
    %v5636 = vld [vmem:[#allocation7 + $0x1c4] sm:$0xf]
    %v5637 = vld [vmem:[#allocation7 + $0x1c8] sm:$0xf]
    %v5638 = vld [vmem:[#allocation7 + $0x1cc] sm:$0xf]
    %v5639 = vld [vmem:[#allocation7 + $0x1d0] sm:$0xf]
    %v5640 = vld [vmem:[#allocation7 + $0x1d4] sm:$0xf]
    %v5641 = vld [vmem:[#allocation7 + $0x1d8] sm:$0xf]
    %v5642 = vld [vmem:[#allocation7 + $0x1dc] sm:$0xf]
    %v5643 = vld [vmem:[#allocation7 + $0x1e0] sm:$0xf]
    %v5644 = vld [vmem:[#allocation7 + $0x1e4] sm:$0xf]
    %v5645 = vld [vmem:[#allocation7 + $0x1e8] sm:$0xf]
    %v5646 = vld [vmem:[#allocation7 + $0x1ec] sm:$0xf]
    %v5647 = vld [vmem:[#allocation7 + $0x1f0] sm:$0xf]
    %v5648 = vld [vmem:[#allocation7 + $0x1f4] sm:$0xf]
    %v5649 = vld [vmem:[#allocation7 + $0x1f8] sm:$0xf]
    %v5650 = vld [vmem:[#allocation7 + $0x1fc] sm:$0xf]
    %v5651 = vld [vmem:[%s8] sm:$0x1]
    %v5653 = vlaneseq
    %v5654 = vshrl.u32 %v5653, 7
    %v5655 = vsub.s32 0, %v5654
    %v5656 = vrot.slane %v5651, %v5655
    %v5786 = vunpack.c.l.b16 %v5523
    %v5787 = vunpack.c.l.b16 %v5524
    %v5788 = vunpack.c.l.b16 %v5525
    %v5789 = vunpack.c.l.b16 %v5526
    %v5790 = vunpack.c.l.b16 %v5527
    %v5791 = vunpack.c.l.b16 %v5528
    %v5792 = vunpack.c.l.b16 %v5529
    %v5793 = vunpack.c.l.b16 %v5530
    %v5794 = vunpack.c.l.b16 %v5531
    %v5795 = vunpack.c.l.b16 %v5532
    %v5796 = vunpack.c.l.b16 %v5533
    %v5797 = vunpack.c.l.b16 %v5534
    %v5798 = vunpack.c.l.b16 %v5535
    %v5799 = vunpack.c.l.b16 %v5536
    %v5800 = vunpack.c.l.b16 %v5537
    %v5801 = vunpack.c.l.b16 %v5538
    %v5802 = vunpack.c.l.b16 %v5539
    %v5803 = vunpack.c.l.b16 %v5540
    %v5804 = vunpack.c.l.b16 %v5541
    %v5805 = vunpack.c.l.b16 %v5542
    %v5806 = vunpack.c.l.b16 %v5543
    %v5807 = vunpack.c.l.b16 %v5544
    %v5808 = vunpack.c.l.b16 %v5545
    %v5809 = vunpack.c.l.b16 %v5546
    %v5810 = vunpack.c.l.b16 %v5547
    %v5811 = vunpack.c.l.b16 %v5548
    %v5812 = vunpack.c.l.b16 %v5549
    %v5813 = vunpack.c.l.b16 %v5550
    %v5814 = vunpack.c.l.b16 %v5551
    %v5815 = vunpack.c.l.b16 %v5552
    %v5816 = vunpack.c.l.b16 %v5553
    %v5817 = vunpack.c.l.b16 %v5554
    %v5818 = vunpack.c.l.b16 %v5555
    %v5819 = vunpack.c.l.b16 %v5556
    %v5820 = vunpack.c.l.b16 %v5557
    %v5821 = vunpack.c.l.b16 %v5558
    %v5822 = vunpack.c.l.b16 %v5559
    %v5823 = vunpack.c.l.b16 %v5560
    %v5824 = vunpack.c.l.b16 %v5561
    %v5825 = vunpack.c.l.b16 %v5562
    %v5826 = vunpack.c.l.b16 %v5563
    %v5827 = vunpack.c.l.b16 %v5564
    %v5828 = vunpack.c.l.b16 %v5565
    %v5829 = vunpack.c.l.b16 %v5566
    %v5830 = vunpack.c.l.b16 %v5567
    %v5831 = vunpack.c.l.b16 %v5568
    %v5832 = vunpack.c.l.b16 %v5569
    %v5833 = vunpack.c.l.b16 %v5570
    %v5834 = vunpack.c.l.b16 %v5571
    %v5835 = vunpack.c.l.b16 %v5572
    %v5836 = vunpack.c.l.b16 %v5573
    %v5837 = vunpack.c.l.b16 %v5574
    %v5838 = vunpack.c.l.b16 %v5575
    %v5839 = vunpack.c.l.b16 %v5576
    %v5840 = vunpack.c.l.b16 %v5577
    %v5841 = vunpack.c.l.b16 %v5578
    %v5842 = vunpack.c.l.b16 %v5579
    %v5843 = vunpack.c.l.b16 %v5580
    %v5844 = vunpack.c.l.b16 %v5581
    %v5845 = vunpack.c.l.b16 %v5582
    %v5846 = vunpack.c.l.b16 %v5583
    %v5847 = vunpack.c.l.b16 %v5584
    %v5848 = vunpack.c.l.b16 %v5585
    %v5849 = vunpack.c.l.b16 %v5586
    %v5850 = vunpack.c.l.b16 %v5587
    %v5851 = vunpack.c.l.b16 %v5588
    %v5852 = vunpack.c.l.b16 %v5589
    %v5853 = vunpack.c.l.b16 %v5590
    %v5854 = vunpack.c.l.b16 %v5591
    %v5855 = vunpack.c.l.b16 %v5592
    %v5856 = vunpack.c.l.b16 %v5593
    %v5857 = vunpack.c.l.b16 %v5594
    %v5858 = vunpack.c.l.b16 %v5595
    %v5859 = vunpack.c.l.b16 %v5596
    %v5860 = vunpack.c.l.b16 %v5597
    %v5861 = vunpack.c.l.b16 %v5598
    %v5862 = vunpack.c.l.b16 %v5599
    %v5863 = vunpack.c.l.b16 %v5600
    %v5864 = vunpack.c.l.b16 %v5601
    %v5865 = vunpack.c.l.b16 %v5602
    %v5866 = vunpack.c.l.b16 %v5603
    %v5867 = vunpack.c.l.b16 %v5604
    %v5868 = vunpack.c.l.b16 %v5605
    %v5869 = vunpack.c.l.b16 %v5606
    %v5870 = vunpack.c.l.b16 %v5607
    %v5871 = vunpack.c.l.b16 %v5608
    %v5872 = vunpack.c.l.b16 %v5609
    %v5873 = vunpack.c.l.b16 %v5610
    %v5874 = vunpack.c.l.b16 %v5611
    %v5875 = vunpack.c.l.b16 %v5612
    %v5876 = vunpack.c.l.b16 %v5613
    %v5877 = vunpack.c.l.b16 %v5614
    %v5878 = vunpack.c.l.b16 %v5615
    %v5879 = vunpack.c.l.b16 %v5616
    %v5880 = vunpack.c.l.b16 %v5617
    %v5881 = vunpack.c.l.b16 %v5618
    %v5882 = vunpack.c.l.b16 %v5619
    %v5883 = vunpack.c.l.b16 %v5620
    %v5884 = vunpack.c.l.b16 %v5621
    %v5885 = vunpack.c.l.b16 %v5622
    %v5886 = vunpack.c.l.b16 %v5623
    %v5887 = vunpack.c.l.b16 %v5624
    %v5888 = vunpack.c.l.b16 %v5625
    %v5889 = vunpack.c.l.b16 %v5626
    %v5890 = vunpack.c.l.b16 %v5627
    %v5891 = vunpack.c.l.b16 %v5628
    %v5892 = vunpack.c.l.b16 %v5629
    %v5893 = vunpack.c.l.b16 %v5630
    %v5894 = vunpack.c.l.b16 %v5631
    %v5895 = vunpack.c.l.b16 %v5632
    %v5896 = vunpack.c.l.b16 %v5633
    %v5897 = vunpack.c.l.b16 %v5634
    %v5898 = vunpack.c.l.b16 %v5635
    %v5899 = vunpack.c.l.b16 %v5636
    %v5900 = vunpack.c.l.b16 %v5637
    %v5901 = vunpack.c.l.b16 %v5638
    %v5902 = vunpack.c.l.b16 %v5639
    %v5903 = vunpack.c.l.b16 %v5640
    %v5904 = vunpack.c.l.b16 %v5641
    %v5905 = vunpack.c.l.b16 %v5642
    %v5906 = vunpack.c.l.b16 %v5643
    %v5907 = vunpack.c.l.b16 %v5644
    %v5908 = vunpack.c.l.b16 %v5645
    %v5909 = vunpack.c.l.b16 %v5646
    %v5910 = vunpack.c.l.b16 %v5647
    %v5911 = vunpack.c.l.b16 %v5648
    %v5912 = vunpack.c.l.b16 %v5649
    %v5913 = vunpack.c.l.b16 %v5650
    %v5914 = vpack.c.b16 %v5787, %v5786
    %v5915 = vpack.c.b16 %v5789, %v5788
    %v5916 = vpack.c.b16 %v5791, %v5790
    %v5917 = vpack.c.b16 %v5793, %v5792
    %v5918 = vpack.c.b16 %v5795, %v5794
    %v5919 = vpack.c.b16 %v5797, %v5796
    %v5920 = vpack.c.b16 %v5799, %v5798
    %v5921 = vpack.c.b16 %v5801, %v5800
    %v5922 = vpack.c.b16 %v5803, %v5802
    %v5923 = vpack.c.b16 %v5805, %v5804
    %v5924 = vpack.c.b16 %v5807, %v5806
    %v5925 = vpack.c.b16 %v5809, %v5808
    %v5926 = vpack.c.b16 %v5811, %v5810
    %v5927 = vpack.c.b16 %v5813, %v5812
    %v5928 = vpack.c.b16 %v5815, %v5814
    %v5929 = vpack.c.b16 %v5817, %v5816
    %v5930 = vpack.c.b16 %v5819, %v5818
    %v5931 = vpack.c.b16 %v5821, %v5820
    %v5932 = vpack.c.b16 %v5823, %v5822
    %v5933 = vpack.c.b16 %v5825, %v5824
    %v5934 = vpack.c.b16 %v5827, %v5826
    %v5935 = vpack.c.b16 %v5829, %v5828
    %v5936 = vpack.c.b16 %v5831, %v5830
    %v5937 = vpack.c.b16 %v5833, %v5832
    %v5938 = vpack.c.b16 %v5835, %v5834
    %v5939 = vpack.c.b16 %v5837, %v5836
    %v5940 = vpack.c.b16 %v5839, %v5838
    %v5941 = vpack.c.b16 %v5841, %v5840
    %v5942 = vpack.c.b16 %v5843, %v5842
    %v5943 = vpack.c.b16 %v5845, %v5844
    %v5944 = vpack.c.b16 %v5847, %v5846
    %v5945 = vpack.c.b16 %v5849, %v5848
    %v5946 = vpack.c.b16 %v5851, %v5850
    %v5947 = vpack.c.b16 %v5853, %v5852
    %v5948 = vpack.c.b16 %v5855, %v5854
    %v5949 = vpack.c.b16 %v5857, %v5856
    %v5950 = vpack.c.b16 %v5859, %v5858
    %v5951 = vpack.c.b16 %v5861, %v5860
    %v5952 = vpack.c.b16 %v5863, %v5862
    %v5953 = vpack.c.b16 %v5865, %v5864
    %v5954 = vpack.c.b16 %v5867, %v5866
    %v5955 = vpack.c.b16 %v5869, %v5868
    %v5956 = vpack.c.b16 %v5871, %v5870
    %v5957 = vpack.c.b16 %v5873, %v5872
    %v5958 = vpack.c.b16 %v5875, %v5874
    %v5959 = vpack.c.b16 %v5877, %v5876
    %v5960 = vpack.c.b16 %v5879, %v5878
    %v5961 = vpack.c.b16 %v5881, %v5880
    %v5962 = vpack.c.b16 %v5883, %v5882
    %v5963 = vpack.c.b16 %v5885, %v5884
    %v5964 = vpack.c.b16 %v5887, %v5886
    %v5965 = vpack.c.b16 %v5889, %v5888
    %v5966 = vpack.c.b16 %v5891, %v5890
    %v5967 = vpack.c.b16 %v5893, %v5892
    %v5968 = vpack.c.b16 %v5895, %v5894
    %v5969 = vpack.c.b16 %v5897, %v5896
    %v5970 = vpack.c.b16 %v5899, %v5898
    %v5971 = vpack.c.b16 %v5901, %v5900
    %v5972 = vpack.c.b16 %v5903, %v5902
    %v5973 = vpack.c.b16 %v5905, %v5904
    %v5974 = vpack.c.b16 %v5907, %v5906
    %v5975 = vpack.c.b16 %v5909, %v5908
    %v5976 = vpack.c.b16 %v5911, %v5910
    %v5977 = vpack.c.b16 %v5913, %v5912
    %6042 = vmatprep.subr.bf16.mxu0 0
    %6043 = vmatpush1.bf16.msra.mxu0 %v5914
    %6044 = vmatprep.subr.bf16.mxu0 0
    %6045 = vmatpush1.bf16.msra.mxu0 %v5915
    %6046 = vmatprep.subr.bf16.mxu0 0
    %6047 = vmatpush1.bf16.msra.mxu0 %v5916
    %6048 = vmatprep.subr.bf16.mxu0 0
    %6049 = vmatpush1.bf16.msra.mxu0 %v5917
    %6050 = vmatprep.subr.bf16.mxu0 0
    %6051 = vmatpush1.bf16.msra.mxu0 %v5918
    %6052 = vmatprep.subr.bf16.mxu0 0
    %6053 = vmatpush1.bf16.msra.mxu0 %v5919
    %6054 = vmatprep.subr.bf16.mxu0 0
    %6055 = vmatpush1.bf16.msra.mxu0 %v5920
    %6056 = vmatprep.subr.bf16.mxu0 0
    %6057 = vmatpush1.bf16.msra.mxu0 %v5921
    %6058 = vmatprep.subr.bf16.mxu0 0
    %6059 = vmatpush1.bf16.msra.mxu0 %v5922
    %6060 = vmatprep.subr.bf16.mxu0 0
    %6061 = vmatpush1.bf16.msra.mxu0 %v5923
    %6062 = vmatprep.subr.bf16.mxu0 0
    %6063 = vmatpush1.bf16.msra.mxu0 %v5924
    %6064 = vmatprep.subr.bf16.mxu0 0
    %6065 = vmatpush1.bf16.msra.mxu0 %v5925
    %6066 = vmatprep.subr.bf16.mxu0 0
    %6067 = vmatpush1.bf16.msra.mxu0 %v5926
    %6068 = vmatprep.subr.bf16.mxu0 0
    %6069 = vmatpush1.bf16.msra.mxu0 %v5927
    %6070 = vmatprep.subr.bf16.mxu0 0
    %6071 = vmatpush1.bf16.msra.mxu0 %v5928
    %6072 = vmatprep.subr.bf16.mxu0 0
    %6073 = vmatpush1.bf16.msra.mxu0 %v5929
    %6074 = vmatprep.mubr.bf16.mxu0 %v5396
    %6075 = vmatmul.mubr.bf16.gmra.mrb[0].mxu0 %v5395
    %v6076 = vpop.f32.mrb[0].mxu0
    %v6077 = vadd.f32 %v5656, %v6076
    %v6078 = vpop.f32.mrb[0].mxu0
    %v6079 = vpop.f32.mrb[0].mxu0
    %v6080 = vadd.f32 %v5656, %v6079
    %v6081 = vpop.f32.mrb[0].mxu0
    %6082 = vmatprep.mubr.bf16.mxu0 %v5404
    %6083 = vmatmul.mubr.bf16.gmra.mrb[0].mxu0 %v5403
    %v6084 = vpop.f32.mrb[0].mxu0
    %v6085 = vadd.f32 %v5656, %v6084
    %v6086 = vpop.f32.mrb[0].mxu0
    %v6087 = vpop.f32.mrb[0].mxu0
    %v6088 = vadd.f32 %v5656, %v6087
    %v6089 = vpop.f32.mrb[0].mxu0
    %6090 = vmatprep.mubr.bf16.mxu0 %v5412
    %6091 = vmatmul.mubr.bf16.gmra.mrb[0].mxu0 %v5411
    %v6092 = vpop.f32.mrb[0].mxu0
    %v6093 = vadd.f32 %v5656, %v6092
    %v6094 = vpop.f32.mrb[0].mxu0
    %v6095 = vpop.f32.mrb[0].mxu0
    %v6096 = vadd.f32 %v5656, %v6095
    %v6097 = vpop.f32.mrb[0].mxu0
    %6098 = vmatprep.mubr.bf16.mxu0 %v5420
    %6099 = vmatmul.mubr.bf16.gmra.mrb[0].mxu0 %v5419
    %v6100 = vpop.f32.mrb[0].mxu0
    %v6101 = vadd.f32 %v5656, %v6100
    %v6102 = vpop.f32.mrb[0].mxu0
    %v6103 = vpop.f32.mrb[0].mxu0
    %v6104 = vadd.f32 %v5656, %v6103
    %v6105 = vpop.f32.mrb[0].mxu0
    %6106 = vmatprep.mubr.bf16.mxu0 %v5428
    %6107 = vmatmul.mubr.bf16.gmra.mrb[0].mxu0 %v5427
    %v6108 = vpop.f32.mrb[0].mxu0
    %v6109 = vadd.f32 %v5656, %v6108
    %v6110 = vpop.f32.mrb[0].mxu0
    %v6111 = vpop.f32.mrb[0].mxu0
    %v6112 = vadd.f32 %v5656, %v6111
    %v6113 = vpop.f32.mrb[0].mxu0
    %6114 = vmatprep.mubr.bf16.mxu0 %v5436
    %6115 = vmatmul.mubr.bf16.gmra.mrb[0].mxu0 %v5435
    %v6116 = vpop.f32.mrb[0].mxu0
    %v6117 = vadd.f32 %v5656, %v6116
    %v6118 = vpop.f32.mrb[0].mxu0
    %v6119 = vpop.f32.mrb[0].mxu0
    %v6120 = vadd.f32 %v5656, %v6119
    %v6121 = vpop.f32.mrb[0].mxu0
    %6122 = vmatprep.mubr.bf16.mxu0 %v5444
    %6123 = vmatmul.mubr.bf16.gmra.mrb[0].mxu0 %v5443
    %v6124 = vpop.f32.mrb[0].mxu0
    %v6125 = vadd.f32 %v5656, %v6124
    %v6126 = vpop.f32.mrb[0].mxu0
    %v6127 = vpop.f32.mrb[0].mxu0
    %v6128 = vadd.f32 %v5656, %v6127
    %v6129 = vpop.f32.mrb[0].mxu0
    %6130 = vmatprep.mubr.bf16.mxu0 %v5452
    %6131 = vmatmul.mubr.bf16.gmra.mrb[0].mxu0 %v5451
    %v6132 = vpop.f32.mrb[0].mxu0
    %v6133 = vadd.f32 %v5656, %v6132
    %v6134 = vpop.f32.mrb[0].mxu0
    %v6135 = vpop.f32.mrb[0].mxu0
    %v6136 = vadd.f32 %v5656, %v6135
    %v6137 = vpop.f32.mrb[0].mxu0
    %6138 = vmatprep.mubr.bf16.mxu0 %v5460
    %6139 = vmatmul.mubr.bf16.gmra.mrb[0].mxu0 %v5459
    %v6140 = vpop.f32.mrb[0].mxu0
    %v6141 = vadd.f32 %v5656, %v6140
    %v6142 = vpop.f32.mrb[0].mxu0
    %v6143 = vpop.f32.mrb[0].mxu0
    %v6144 = vadd.f32 %v5656, %v6143
    %v6145 = vpop.f32.mrb[0].mxu0
    %6146 = vmatprep.mubr.bf16.mxu0 %v5468
    %6147 = vmatmul.mubr.bf16.gmra.mrb[0].mxu0 %v5467
    %v6148 = vpop.f32.mrb[0].mxu0
    %v6149 = vadd.f32 %v5656, %v6148
    %v6150 = vpop.f32.mrb[0].mxu0
    %v6151 = vpop.f32.mrb[0].mxu0
    %v6152 = vadd.f32 %v5656, %v6151
    %v6153 = vpop.f32.mrb[0].mxu0
    %6154 = vmatprep.mubr.bf16.mxu0 %v5476
    %6155 = vmatmul.mubr.bf16.gmra.mrb[0].mxu0 %v5475
    %v6156 = vpop.f32.mrb[0].mxu0
    %v6157 = vadd.f32 %v5656, %v6156
    %v6158 = vpop.f32.mrb[0].mxu0
    %v6159 = vpop.f32.mrb[0].mxu0
    %v6160 = vadd.f32 %v5656, %v6159
    %v6161 = vpop.f32.mrb[0].mxu0
    %6162 = vmatprep.mubr.bf16.mxu0 %v5484
    %6163 = vmatmul.mubr.bf16.gmra.mrb[0].mxu0 %v5483
    %v6164 = vpop.f32.mrb[0].mxu0
    %v6165 = vadd.f32 %v5656, %v6164
    %v6166 = vpop.f32.mrb[0].mxu0
    %v6167 = vpop.f32.mrb[0].mxu0
    %v6168 = vadd.f32 %v5656, %v6167
    %v6169 = vpop.f32.mrb[0].mxu0
    %6170 = vmatprep.mubr.bf16.mxu0 %v5492
    %6171 = vmatmul.mubr.bf16.gmra.mrb[0].mxu0 %v5491
    %v6172 = vpop.f32.mrb[0].mxu0
    %v6173 = vadd.f32 %v5656, %v6172
    %v6174 = vpop.f32.mrb[0].mxu0
    %v6175 = vpop.f32.mrb[0].mxu0
    %v6176 = vadd.f32 %v5656, %v6175
    %v6177 = vpop.f32.mrb[0].mxu0
    %6178 = vmatprep.mubr.bf16.mxu0 %v5500
    %6179 = vmatmul.mubr.bf16.gmra.mrb[0].mxu0 %v5499
    %v6180 = vpop.f32.mrb[0].mxu0
    %v6181 = vadd.f32 %v5656, %v6180
    %v6182 = vpop.f32.mrb[0].mxu0
    %v6183 = vpop.f32.mrb[0].mxu0
    %v6184 = vadd.f32 %v5656, %v6183
    %v6185 = vpop.f32.mrb[0].mxu0
    %6186 = vmatprep.mubr.bf16.mxu0 %v5508
    %6187 = vmatmul.mubr.bf16.gmra.mrb[0].mxu0 %v5507
    %v6188 = vpop.f32.mrb[0].mxu0
    %v6189 = vadd.f32 %v5656, %v6188
    %v6190 = vpop.f32.mrb[0].mxu0
    %v6191 = vpop.f32.mrb[0].mxu0
    %v6192 = vadd.f32 %v5656, %v6191
    %v6193 = vpop.f32.mrb[0].mxu0
    %6194 = vmatprep.mubr.bf16.mxu0 %v5516
    %6195 = vmatmul.mubr.bf16.gmra.mrb[0].mxu0 %v5515
    %v6196 = vpop.f32.mrb[0].mxu0
    %v6197 = vadd.f32 %v5656, %v6196
    %v6198 = vpop.f32.mrb[0].mxu0
    %v6199 = vpop.f32.mrb[0].mxu0
    %v6200 = vadd.f32 %v5656, %v6199
    %v6201 = vpop.f32.mrb[0].mxu0
    %6202 = vdwg.mxu0
    %6203 = vmatprep.subr.bf16.mxu0 0
    %6204 = vmatpush1.bf16.msra.mxu0 %v5930
    %6205 = vmatprep.subr.bf16.mxu0 0
    %6206 = vmatpush1.bf16.msra.mxu0 %v5931
    %6207 = vmatprep.subr.bf16.mxu0 0
    %6208 = vmatpush1.bf16.msra.mxu0 %v5932
    %6209 = vmatprep.subr.bf16.mxu0 0
    %6210 = vmatpush1.bf16.msra.mxu0 %v5933
    %6211 = vmatprep.subr.bf16.mxu0 0
    %6212 = vmatpush1.bf16.msra.mxu0 %v5934
    %6213 = vmatprep.subr.bf16.mxu0 0
    %6214 = vmatpush1.bf16.msra.mxu0 %v5935
    %6215 = vmatprep.subr.bf16.mxu0 0
    %6216 = vmatpush1.bf16.msra.mxu0 %v5936
    %6217 = vmatprep.subr.bf16.mxu0 0
    %6218 = vmatpush1.bf16.msra.mxu0 %v5937
    %6219 = vmatprep.subr.bf16.mxu0 0
    %6220 = vmatpush1.bf16.msra.mxu0 %v5938
    %6221 = vmatprep.subr.bf16.mxu0 0
    %6222 = vmatpush1.bf16.msra.mxu0 %v5939
    %6223 = vmatprep.subr.bf16.mxu0 0
    %6224 = vmatpush1.bf16.msra.mxu0 %v5940
    %6225 = vmatprep.subr.bf16.mxu0 0
    %6226 = vmatpush1.bf16.msra.mxu0 %v5941
    %6227 = vmatprep.subr.bf16.mxu0 0
    %6228 = vmatpush1.bf16.msra.mxu0 %v5942
    %6229 = vmatprep.subr.bf16.mxu0 0
    %6230 = vmatpush1.bf16.msra.mxu0 %v5943
    %6231 = vmatprep.subr.bf16.mxu0 0
    %6232 = vmatpush1.bf16.msra.mxu0 %v5944
    %6233 = vmatprep.subr.bf16.mxu0 0
    %6234 = vmatpush1.bf16.msra.mxu0 %v5945
    %6235 = vmatprep.mubr.bf16.mxu0 %v5398
    %6236 = vmatmul.mubr.bf16.gmra.mrb[0].mxu0 %v5397
    %v6237 = vpop.f32.mrb[0].mxu0
    %v6238 = vadd.f32 %v6077, %v6237
    %v6239 = vpop.f32.mrb[0].mxu0
    %v6240 = vpop.f32.mrb[0].mxu0
    %v6241 = vadd.f32 %v6080, %v6240
    %v6242 = vpop.f32.mrb[0].mxu0
    %6243 = vmatprep.mubr.bf16.mxu0 %v5406
    %6244 = vmatmul.mubr.bf16.gmra.mrb[0].mxu0 %v5405
    %v6245 = vpop.f32.mrb[0].mxu0
    %v6246 = vadd.f32 %v6085, %v6245
    %v6247 = vpop.f32.mrb[0].mxu0
    %v6248 = vpop.f32.mrb[0].mxu0
    %v6249 = vadd.f32 %v6088, %v6248
    %v6250 = vpop.f32.mrb[0].mxu0
    %6251 = vmatprep.mubr.bf16.mxu0 %v5414
    %6252 = vmatmul.mubr.bf16.gmra.mrb[0].mxu0 %v5413
    %v6253 = vpop.f32.mrb[0].mxu0
    %v6254 = vadd.f32 %v6093, %v6253
    %v6255 = vpop.f32.mrb[0].mxu0
    %v6256 = vpop.f32.mrb[0].mxu0
    %v6257 = vadd.f32 %v6096, %v6256
    %v6258 = vpop.f32.mrb[0].mxu0
    %6259 = vmatprep.mubr.bf16.mxu0 %v5422
    %6260 = vmatmul.mubr.bf16.gmra.mrb[0].mxu0 %v5421
    %v6261 = vpop.f32.mrb[0].mxu0
    %v6262 = vadd.f32 %v6101, %v6261
    %v6263 = vpop.f32.mrb[0].mxu0
    %v6264 = vpop.f32.mrb[0].mxu0
    %v6265 = vadd.f32 %v6104, %v6264
    %v6266 = vpop.f32.mrb[0].mxu0
    %6267 = vmatprep.mubr.bf16.mxu0 %v5430
    %6268 = vmatmul.mubr.bf16.gmra.mrb[0].mxu0 %v5429
    %v6269 = vpop.f32.mrb[0].mxu0
    %v6270 = vadd.f32 %v6109, %v6269
    %v6271 = vpop.f32.mrb[0].mxu0
    %v6272 = vpop.f32.mrb[0].mxu0
    %v6273 = vadd.f32 %v6112, %v6272
    %v6274 = vpop.f32.mrb[0].mxu0
    %6275 = vmatprep.mubr.bf16.mxu0 %v5438
    %6276 = vmatmul.mubr.bf16.gmra.mrb[0].mxu0 %v5437
    %v6277 = vpop.f32.mrb[0].mxu0
    %v6278 = vadd.f32 %v6117, %v6277
    %v6279 = vpop.f32.mrb[0].mxu0
    %v6280 = vpop.f32.mrb[0].mxu0
    %v6281 = vadd.f32 %v6120, %v6280
    %v6282 = vpop.f32.mrb[0].mxu0
    %6283 = vmatprep.mubr.bf16.mxu0 %v5446
    %6284 = vmatmul.mubr.bf16.gmra.mrb[0].mxu0 %v5445
    %v6285 = vpop.f32.mrb[0].mxu0
    %v6286 = vadd.f32 %v6125, %v6285
    %v6287 = vpop.f32.mrb[0].mxu0
    %v6288 = vpop.f32.mrb[0].mxu0
    %v6289 = vadd.f32 %v6128, %v6288
    %v6290 = vpop.f32.mrb[0].mxu0
    %6291 = vmatprep.mubr.bf16.mxu0 %v5454
    %6292 = vmatmul.mubr.bf16.gmra.mrb[0].mxu0 %v5453
    %v6293 = vpop.f32.mrb[0].mxu0
    %v6294 = vadd.f32 %v6133, %v6293
    %v6295 = vpop.f32.mrb[0].mxu0
    %v6296 = vpop.f32.mrb[0].mxu0
    %v6297 = vadd.f32 %v6136, %v6296
    %v6298 = vpop.f32.mrb[0].mxu0
    %6299 = vmatprep.mubr.bf16.mxu0 %v5462
    %6300 = vmatmul.mubr.bf16.gmra.mrb[0].mxu0 %v5461
    %v6301 = vpop.f32.mrb[0].mxu0
    %v6302 = vadd.f32 %v6141, %v6301
    %v6303 = vpop.f32.mrb[0].mxu0
    %v6304 = vpop.f32.mrb[0].mxu0
    %v6305 = vadd.f32 %v6144, %v6304
    %v6306 = vpop.f32.mrb[0].mxu0
    %6307 = vmatprep.mubr.bf16.mxu0 %v5470
    %6308 = vmatmul.mubr.bf16.gmra.mrb[0].mxu0 %v5469
    %v6309 = vpop.f32.mrb[0].mxu0
    %v6310 = vadd.f32 %v6149, %v6309
    %v6311 = vpop.f32.mrb[0].mxu0
    %v6312 = vpop.f32.mrb[0].mxu0
    %v6313 = vadd.f32 %v6152, %v6312
    %v6314 = vpop.f32.mrb[0].mxu0
    %6315 = vmatprep.mubr.bf16.mxu0 %v5478
    %6316 = vmatmul.mubr.bf16.gmra.mrb[0].mxu0 %v5477
    %v6317 = vpop.f32.mrb[0].mxu0
    %v6318 = vadd.f32 %v6157, %v6317
    %v6319 = vpop.f32.mrb[0].mxu0
    %v6320 = vpop.f32.mrb[0].mxu0
    %v6321 = vadd.f32 %v6160, %v6320
    %v6322 = vpop.f32.mrb[0].mxu0
    %6323 = vmatprep.mubr.bf16.mxu0 %v5486
    %6324 = vmatmul.mubr.bf16.gmra.mrb[0].mxu0 %v5485
    %v6325 = vpop.f32.mrb[0].mxu0
    %v6326 = vadd.f32 %v6165, %v6325
    %v6327 = vpop.f32.mrb[0].mxu0
    %v6328 = vpop.f32.mrb[0].mxu0
    %v6329 = vadd.f32 %v6168, %v6328
    %v6330 = vpop.f32.mrb[0].mxu0
    %6331 = vmatprep.mubr.bf16.mxu0 %v5494
    %6332 = vmatmul.mubr.bf16.gmra.mrb[0].mxu0 %v5493
    %v6333 = vpop.f32.mrb[0].mxu0
    %v6334 = vadd.f32 %v6173, %v6333
    %v6335 = vpop.f32.mrb[0].mxu0
    %v6336 = vpop.f32.mrb[0].mxu0
    %v6337 = vadd.f32 %v6176, %v6336
    %v6338 = vpop.f32.mrb[0].mxu0
    %6339 = vmatprep.mubr.bf16.mxu0 %v5502
    %6340 = vmatmul.mubr.bf16.gmra.mrb[0].mxu0 %v5501
    %v6341 = vpop.f32.mrb[0].mxu0
    %v6342 = vadd.f32 %v6181, %v6341
    %v6343 = vpop.f32.mrb[0].mxu0
    %v6344 = vpop.f32.mrb[0].mxu0
    %v6345 = vadd.f32 %v6184, %v6344
    %v6346 = vpop.f32.mrb[0].mxu0
    %6347 = vmatprep.mubr.bf16.mxu0 %v5510
    %6348 = vmatmul.mubr.bf16.gmra.mrb[0].mxu0 %v5509
    %v6349 = vpop.f32.mrb[0].mxu0
    %v6350 = vadd.f32 %v6189, %v6349
    %v6351 = vpop.f32.mrb[0].mxu0
    %v6352 = vpop.f32.mrb[0].mxu0
    %v6353 = vadd.f32 %v6192, %v6352
    %v6354 = vpop.f32.mrb[0].mxu0
    %6355 = vmatprep.mubr.bf16.mxu0 %v5518
    %6356 = vmatmul.mubr.bf16.gmra.mrb[0].mxu0 %v5517
    %v6357 = vpop.f32.mrb[0].mxu0
    %v6358 = vadd.f32 %v6197, %v6357
    %v6359 = vpop.f32.mrb[0].mxu0
    %v6360 = vpop.f32.mrb[0].mxu0
    %v6361 = vadd.f32 %v6200, %v6360
    %v6362 = vpop.f32.mrb[0].mxu0
    %6363 = vdwg.mxu0
    %6364 = vmatprep.subr.bf16.mxu0 0
    %6365 = vmatpush1.bf16.msra.mxu0 %v5946
    %6366 = vmatprep.subr.bf16.mxu0 0
    %6367 = vmatpush1.bf16.msra.mxu0 %v5947
    %6368 = vmatprep.subr.bf16.mxu0 0
    %6369 = vmatpush1.bf16.msra.mxu0 %v5948
    %6370 = vmatprep.subr.bf16.mxu0 0
    %6371 = vmatpush1.bf16.msra.mxu0 %v5949
    %6372 = vmatprep.subr.bf16.mxu0 0
    %6373 = vmatpush1.bf16.msra.mxu0 %v5950
    %6374 = vmatprep.subr.bf16.mxu0 0
    %6375 = vmatpush1.bf16.msra.mxu0 %v5951
    %6376 = vmatprep.subr.bf16.mxu0 0
    %6377 = vmatpush1.bf16.msra.mxu0 %v5952
    %6378 = vmatprep.subr.bf16.mxu0 0
    %6379 = vmatpush1.bf16.msra.mxu0 %v5953
    %6380 = vmatprep.subr.bf16.mxu0 0
    %6381 = vmatpush1.bf16.msra.mxu0 %v5954
    %6382 = vmatprep.subr.bf16.mxu0 0
    %6383 = vmatpush1.bf16.msra.mxu0 %v5955
    %6384 = vmatprep.subr.bf16.mxu0 0
    %6385 = vmatpush1.bf16.msra.mxu0 %v5956
    %6386 = vmatprep.subr.bf16.mxu0 0
    %6387 = vmatpush1.bf16.msra.mxu0 %v5957
    %6388 = vmatprep.subr.bf16.mxu0 0
    %6389 = vmatpush1.bf16.msra.mxu0 %v5958
    %6390 = vmatprep.subr.bf16.mxu0 0
    %6391 = vmatpush1.bf16.msra.mxu0 %v5959
    %6392 = vmatprep.subr.bf16.mxu0 0
    %6393 = vmatpush1.bf16.msra.mxu0 %v5960
    %6394 = vmatprep.subr.bf16.mxu0 0
    %6395 = vmatpush1.bf16.msra.mxu0 %v5961
    %6396 = vmatprep.mubr.bf16.mxu0 %v5400
    %6397 = vmatmul.mubr.bf16.gmra.mrb[0].mxu0 %v5399
    %v6398 = vpop.f32.mrb[0].mxu0
    %v6399 = vadd.f32 %v6238, %v6398
    %v6400 = vpop.f32.mrb[0].mxu0
    %v6401 = vpop.f32.mrb[0].mxu0
    %v6402 = vadd.f32 %v6241, %v6401
    %v6403 = vpop.f32.mrb[0].mxu0
    %6404 = vmatprep.mubr.bf16.mxu0 %v5408
    %6405 = vmatmul.mubr.bf16.gmra.mrb[0].mxu0 %v5407
    %v6406 = vpop.f32.mrb[0].mxu0
    %v6407 = vadd.f32 %v6246, %v6406
    %v6408 = vpop.f32.mrb[0].mxu0
    %v6409 = vpop.f32.mrb[0].mxu0
    %v6410 = vadd.f32 %v6249, %v6409
    %v6411 = vpop.f32.mrb[0].mxu0
    %6412 = vmatprep.mubr.bf16.mxu0 %v5416
    %6413 = vmatmul.mubr.bf16.gmra.mrb[0].mxu0 %v5415
    %v6414 = vpop.f32.mrb[0].mxu0
    %v6415 = vadd.f32 %v6254, %v6414
    %v6416 = vpop.f32.mrb[0].mxu0
    %v6417 = vpop.f32.mrb[0].mxu0
    %v6418 = vadd.f32 %v6257, %v6417
    %v6419 = vpop.f32.mrb[0].mxu0
    %6420 = vmatprep.mubr.bf16.mxu0 %v5424
    %6421 = vmatmul.mubr.bf16.gmra.mrb[0].mxu0 %v5423
    %v6422 = vpop.f32.mrb[0].mxu0
    %v6423 = vadd.f32 %v6262, %v6422
    %v6424 = vpop.f32.mrb[0].mxu0
    %v6425 = vpop.f32.mrb[0].mxu0
    %v6426 = vadd.f32 %v6265, %v6425
    %v6427 = vpop.f32.mrb[0].mxu0
    %6428 = vmatprep.mubr.bf16.mxu0 %v5432
    %6429 = vmatmul.mubr.bf16.gmra.mrb[0].mxu0 %v5431
    %v6430 = vpop.f32.mrb[0].mxu0
    %v6431 = vadd.f32 %v6270, %v6430
    %v6432 = vpop.f32.mrb[0].mxu0
    %v6433 = vpop.f32.mrb[0].mxu0
    %v6434 = vadd.f32 %v6273, %v6433
    %v6435 = vpop.f32.mrb[0].mxu0
    %6436 = vmatprep.mubr.bf16.mxu0 %v5440
    %6437 = vmatmul.mubr.bf16.gmra.mrb[0].mxu0 %v5439
    %v6438 = vpop.f32.mrb[0].mxu0
    %v6439 = vadd.f32 %v6278, %v6438
    %v6440 = vpop.f32.mrb[0].mxu0
    %v6441 = vpop.f32.mrb[0].mxu0
    %v6442 = vadd.f32 %v6281, %v6441
    %v6443 = vpop.f32.mrb[0].mxu0
    %6444 = vmatprep.mubr.bf16.mxu0 %v5448
    %6445 = vmatmul.mubr.bf16.gmra.mrb[0].mxu0 %v5447
    %v6446 = vpop.f32.mrb[0].mxu0
    %v6447 = vadd.f32 %v6286, %v6446
    %v6448 = vpop.f32.mrb[0].mxu0
    %v6449 = vpop.f32.mrb[0].mxu0
    %v6450 = vadd.f32 %v6289, %v6449
    %v6451 = vpop.f32.mrb[0].mxu0
    %6452 = vmatprep.mubr.bf16.mxu0 %v5456
    %6453 = vmatmul.mubr.bf16.gmra.mrb[0].mxu0 %v5455
    %v6454 = vpop.f32.mrb[0].mxu0
    %v6455 = vadd.f32 %v6294, %v6454
    %v6456 = vpop.f32.mrb[0].mxu0
    %v6457 = vpop.f32.mrb[0].mxu0
    %v6458 = vadd.f32 %v6297, %v6457
    %v6459 = vpop.f32.mrb[0].mxu0
    %6460 = vmatprep.mubr.bf16.mxu0 %v5464
    %6461 = vmatmul.mubr.bf16.gmra.mrb[0].mxu0 %v5463
    %v6462 = vpop.f32.mrb[0].mxu0
    %v6463 = vadd.f32 %v6302, %v6462
    %v6464 = vpop.f32.mrb[0].mxu0
    %v6465 = vpop.f32.mrb[0].mxu0
    %v6466 = vadd.f32 %v6305, %v6465
    %v6467 = vpop.f32.mrb[0].mxu0
    %6468 = vmatprep.mubr.bf16.mxu0 %v5472
    %6469 = vmatmul.mubr.bf16.gmra.mrb[0].mxu0 %v5471
    %v6470 = vpop.f32.mrb[0].mxu0
    %v6471 = vadd.f32 %v6310, %v6470
    %v6472 = vpop.f32.mrb[0].mxu0
    %v6473 = vpop.f32.mrb[0].mxu0
    %v6474 = vadd.f32 %v6313, %v6473
    %v6475 = vpop.f32.mrb[0].mxu0
    %6476 = vmatprep.mubr.bf16.mxu0 %v5480
    %6477 = vmatmul.mubr.bf16.gmra.mrb[0].mxu0 %v5479
    %v6478 = vpop.f32.mrb[0].mxu0
    %v6479 = vadd.f32 %v6318, %v6478
    %v6480 = vpop.f32.mrb[0].mxu0
    %v6481 = vpop.f32.mrb[0].mxu0
    %v6482 = vadd.f32 %v6321, %v6481
    %v6483 = vpop.f32.mrb[0].mxu0
    %6484 = vmatprep.mubr.bf16.mxu0 %v5488
    %6485 = vmatmul.mubr.bf16.gmra.mrb[0].mxu0 %v5487
    %v6486 = vpop.f32.mrb[0].mxu0
    %v6487 = vadd.f32 %v6326, %v6486
    %v6488 = vpop.f32.mrb[0].mxu0
    %v6489 = vpop.f32.mrb[0].mxu0
    %v6490 = vadd.f32 %v6329, %v6489
    %v6491 = vpop.f32.mrb[0].mxu0
    %6492 = vmatprep.mubr.bf16.mxu0 %v5496
    %6493 = vmatmul.mubr.bf16.gmra.mrb[0].mxu0 %v5495
    %v6494 = vpop.f32.mrb[0].mxu0
    %v6495 = vadd.f32 %v6334, %v6494
    %v6496 = vpop.f32.mrb[0].mxu0
    %v6497 = vpop.f32.mrb[0].mxu0
    %v6498 = vadd.f32 %v6337, %v6497
    %v6499 = vpop.f32.mrb[0].mxu0
    %6500 = vmatprep.mubr.bf16.mxu0 %v5504
    %6501 = vmatmul.mubr.bf16.gmra.mrb[0].mxu0 %v5503
    %v6502 = vpop.f32.mrb[0].mxu0
    %v6503 = vadd.f32 %v6342, %v6502
    %v6504 = vpop.f32.mrb[0].mxu0
    %v6505 = vpop.f32.mrb[0].mxu0
    %v6506 = vadd.f32 %v6345, %v6505
    %v6507 = vpop.f32.mrb[0].mxu0
    %6508 = vmatprep.mubr.bf16.mxu0 %v5512
    %6509 = vmatmul.mubr.bf16.gmra.mrb[0].mxu0 %v5511
    %v6510 = vpop.f32.mrb[0].mxu0
    %v6511 = vadd.f32 %v6350, %v6510
    %v6512 = vpop.f32.mrb[0].mxu0
    %v6513 = vpop.f32.mrb[0].mxu0
    %v6514 = vadd.f32 %v6353, %v6513
    %v6515 = vpop.f32.mrb[0].mxu0
    %6516 = vmatprep.mubr.bf16.mxu0 %v5520
    %6517 = vmatmul.mubr.bf16.gmra.mrb[0].mxu0 %v5519
    %v6518 = vpop.f32.mrb[0].mxu0
    %v6519 = vadd.f32 %v6358, %v6518
    %v6520 = vpop.f32.mrb[0].mxu0
    %v6521 = vpop.f32.mrb[0].mxu0
    %v6522 = vadd.f32 %v6361, %v6521
    %v6523 = vpop.f32.mrb[0].mxu0
    %6524 = vdwg.mxu0
    %6525 = vmatprep.subr.bf16.mxu0 0
    %6526 = vmatpush1.bf16.msra.mxu0 %v5962
    %6527 = vmatprep.subr.bf16.mxu0 0
    %6528 = vmatpush1.bf16.msra.mxu0 %v5963
    %6529 = vmatprep.subr.bf16.mxu0 0
    %6530 = vmatpush1.bf16.msra.mxu0 %v5964
    %6531 = vmatprep.subr.bf16.mxu0 0
    %6532 = vmatpush1.bf16.msra.mxu0 %v5965
    %6533 = vmatprep.subr.bf16.mxu0 0
    %6534 = vmatpush1.bf16.msra.mxu0 %v5966
    %6535 = vmatprep.subr.bf16.mxu0 0
    %6536 = vmatpush1.bf16.msra.mxu0 %v5967
    %6537 = vmatprep.subr.bf16.mxu0 0
    %6538 = vmatpush1.bf16.msra.mxu0 %v5968
    %6539 = vmatprep.subr.bf16.mxu0 0
    %6540 = vmatpush1.bf16.msra.mxu0 %v5969
    %6541 = vmatprep.subr.bf16.mxu0 0
    %6542 = vmatpush1.bf16.msra.mxu0 %v5970
    %6543 = vmatprep.subr.bf16.mxu0 0
    %6544 = vmatpush1.bf16.msra.mxu0 %v5971
    %6545 = vmatprep.subr.bf16.mxu0 0
    %6546 = vmatpush1.bf16.msra.mxu0 %v5972
    %6547 = vmatprep.subr.bf16.mxu0 0
    %6548 = vmatpush1.bf16.msra.mxu0 %v5973
    %6549 = vmatprep.subr.bf16.mxu0 0
    %6550 = vmatpush1.bf16.msra.mxu0 %v5974
    %6551 = vmatprep.subr.bf16.mxu0 0
    %6552 = vmatpush1.bf16.msra.mxu0 %v5975
    %6553 = vmatprep.subr.bf16.mxu0 0
    %6554 = vmatpush1.bf16.msra.mxu0 %v5976
    %6555 = vmatprep.subr.bf16.mxu0 0
    %6556 = vmatpush1.bf16.msra.mxu0 %v5977
    %6557 = vmatprep.mubr.bf16.mxu0 %v5402
    %6558 = vmatmul.mubr.bf16.gmra.mrb[0].mxu0 %v5401
    %v6559 = vpop.f32.mrb[0].mxu0
    %v6560 = vadd.f32 %v6399, %v6559
    %v6561 = vpop.f32.mrb[0].mxu0
    %v6562 = vpop.f32.mrb[0].mxu0
    %v6563 = vadd.f32 %v6402, %v6562
    %v6564 = vpop.f32.mrb[0].mxu0
    %6565 = vmatprep.mubr.bf16.mxu0 %v5410
    %6566 = vmatmul.mubr.bf16.gmra.mrb[0].mxu0 %v5409
    %v6567 = vpop.f32.mrb[0].mxu0
    %v6568 = vadd.f32 %v6407, %v6567
    %v6569 = vpop.f32.mrb[0].mxu0
    %v6570 = vpop.f32.mrb[0].mxu0
    %v6571 = vadd.f32 %v6410, %v6570
    %v6572 = vpop.f32.mrb[0].mxu0
    %6573 = vmatprep.mubr.bf16.mxu0 %v5418
    %6574 = vmatmul.mubr.bf16.gmra.mrb[0].mxu0 %v5417
    %v6575 = vpop.f32.mrb[0].mxu0
    %v6576 = vadd.f32 %v6415, %v6575
    %v6577 = vpop.f32.mrb[0].mxu0
    %v6578 = vpop.f32.mrb[0].mxu0
    %v6579 = vadd.f32 %v6418, %v6578
    %v6580 = vpop.f32.mrb[0].mxu0
    %6581 = vmatprep.mubr.bf16.mxu0 %v5426
    %6582 = vmatmul.mubr.bf16.gmra.mrb[0].mxu0 %v5425
    %v6583 = vpop.f32.mrb[0].mxu0
    %v6584 = vadd.f32 %v6423, %v6583
    %v6585 = vpop.f32.mrb[0].mxu0
    %v6586 = vpop.f32.mrb[0].mxu0
    %v6587 = vadd.f32 %v6426, %v6586
    %v6588 = vpop.f32.mrb[0].mxu0
    %6589 = vmatprep.mubr.bf16.mxu0 %v5434
    %6590 = vmatmul.mubr.bf16.gmra.mrb[0].mxu0 %v5433
    %v6591 = vpop.f32.mrb[0].mxu0
    %v6592 = vadd.f32 %v6431, %v6591
    %v6593 = vpop.f32.mrb[0].mxu0
    %v6594 = vpop.f32.mrb[0].mxu0
    %v6595 = vadd.f32 %v6434, %v6594
    %v6596 = vpop.f32.mrb[0].mxu0
    %6597 = vmatprep.mubr.bf16.mxu0 %v5442
    %6598 = vmatmul.mubr.bf16.gmra.mrb[0].mxu0 %v5441
    %v6599 = vpop.f32.mrb[0].mxu0
    %v6600 = vadd.f32 %v6439, %v6599
    %v6601 = vpop.f32.mrb[0].mxu0
    %v6602 = vpop.f32.mrb[0].mxu0
    %v6603 = vadd.f32 %v6442, %v6602
    %v6604 = vpop.f32.mrb[0].mxu0
    %6605 = vmatprep.mubr.bf16.mxu0 %v5450
    %6606 = vmatmul.mubr.bf16.gmra.mrb[0].mxu0 %v5449
    %v6607 = vpop.f32.mrb[0].mxu0
    %v6608 = vadd.f32 %v6447, %v6607
    %v6609 = vpop.f32.mrb[0].mxu0
    %v6610 = vpop.f32.mrb[0].mxu0
    %v6611 = vadd.f32 %v6450, %v6610
    %v6612 = vpop.f32.mrb[0].mxu0
    %6613 = vmatprep.mubr.bf16.mxu0 %v5458
    %6614 = vmatmul.mubr.bf16.gmra.mrb[0].mxu0 %v5457
    %v6615 = vpop.f32.mrb[0].mxu0
    %v6616 = vadd.f32 %v6455, %v6615
    %v6617 = vpop.f32.mrb[0].mxu0
    %v6618 = vpop.f32.mrb[0].mxu0
    %v6619 = vadd.f32 %v6458, %v6618
    %v6620 = vpop.f32.mrb[0].mxu0
    %6621 = vmatprep.mubr.bf16.mxu0 %v5466
    %6622 = vmatmul.mubr.bf16.gmra.mrb[0].mxu0 %v5465
    %v6623 = vpop.f32.mrb[0].mxu0
    %v6624 = vadd.f32 %v6463, %v6623
    %v6625 = vpop.f32.mrb[0].mxu0
    %v6626 = vpop.f32.mrb[0].mxu0
    %v6627 = vadd.f32 %v6466, %v6626
    %v6628 = vpop.f32.mrb[0].mxu0
    %6629 = vmatprep.mubr.bf16.mxu0 %v5474
    %6630 = vmatmul.mubr.bf16.gmra.mrb[0].mxu0 %v5473
    %v6631 = vpop.f32.mrb[0].mxu0
    %v6632 = vadd.f32 %v6471, %v6631
    %v6633 = vpop.f32.mrb[0].mxu0
    %v6634 = vpop.f32.mrb[0].mxu0
    %v6635 = vadd.f32 %v6474, %v6634
    %v6636 = vpop.f32.mrb[0].mxu0
    %6637 = vmatprep.mubr.bf16.mxu0 %v5482
    %6638 = vmatmul.mubr.bf16.gmra.mrb[0].mxu0 %v5481
    %v6639 = vpop.f32.mrb[0].mxu0
    %v6640 = vadd.f32 %v6479, %v6639
    %v6641 = vpop.f32.mrb[0].mxu0
    %v6642 = vpop.f32.mrb[0].mxu0
    %v6643 = vadd.f32 %v6482, %v6642
    %v6644 = vpop.f32.mrb[0].mxu0
    %6645 = vmatprep.mubr.bf16.mxu0 %v5490
    %6646 = vmatmul.mubr.bf16.gmra.mrb[0].mxu0 %v5489
    %v6647 = vpop.f32.mrb[0].mxu0
    %v6648 = vadd.f32 %v6487, %v6647
    %v6649 = vpop.f32.mrb[0].mxu0
    %v6650 = vpop.f32.mrb[0].mxu0
    %v6651 = vadd.f32 %v6490, %v6650
    %v6652 = vpop.f32.mrb[0].mxu0
    %6653 = vmatprep.mubr.bf16.mxu0 %v5498
    %6654 = vmatmul.mubr.bf16.gmra.mrb[0].mxu0 %v5497
    %v6655 = vpop.f32.mrb[0].mxu0
    %v6656 = vadd.f32 %v6495, %v6655
    %v6657 = vpop.f32.mrb[0].mxu0
    %v6658 = vpop.f32.mrb[0].mxu0
    %v6659 = vadd.f32 %v6498, %v6658
    %v6660 = vpop.f32.mrb[0].mxu0
    %6661 = vmatprep.mubr.bf16.mxu0 %v5506
    %6662 = vmatmul.mubr.bf16.gmra.mrb[0].mxu0 %v5505
    %v6663 = vpop.f32.mrb[0].mxu0
    %v6664 = vadd.f32 %v6503, %v6663
    %v6665 = vpop.f32.mrb[0].mxu0
    %v6666 = vpop.f32.mrb[0].mxu0
    %v6667 = vadd.f32 %v6506, %v6666
    %v6668 = vpop.f32.mrb[0].mxu0
    %6669 = vmatprep.mubr.bf16.mxu0 %v5514
    %6670 = vmatmul.mubr.bf16.gmra.mrb[0].mxu0 %v5513
    %v6671 = vpop.f32.mrb[0].mxu0
    %v6672 = vadd.f32 %v6511, %v6671
    %v6673 = vpop.f32.mrb[0].mxu0
    %v6674 = vpop.f32.mrb[0].mxu0
    %v6675 = vadd.f32 %v6514, %v6674
    %v6676 = vpop.f32.mrb[0].mxu0
    %6677 = vmatprep.mubr.bf16.mxu0 %v5522
    %6678 = vmatmul.mubr.bf16.gmra.mrb[0].mxu0 %v5521
    %v6679 = vpop.f32.mrb[0].mxu0
    %v6680 = vadd.f32 %v6519, %v6679
    %v6681 = vpop.f32.mrb[0].mxu0
    %v6682 = vpop.f32.mrb[0].mxu0
    %v6683 = vadd.f32 %v6522, %v6682
    %v6684 = vpop.f32.mrb[0].mxu0
    %6685 = vdwg.mxu0
    %v6686 = vtanh.pop %v6560
    %v6687 = vtanh.pop %v6563
    %v6688 = vtanh.pop %v6568
    %v6689 = vtanh.pop %v6571
    %v6690 = vtanh.pop %v6576
    %v6691 = vtanh.pop %v6579
    %v6692 = vtanh.pop %v6584
    %v6693 = vtanh.pop %v6587
    %v6694 = vtanh.pop %v6592
    %v6695 = vtanh.pop %v6595
    %v6696 = vtanh.pop %v6600
    %v6697 = vtanh.pop %v6603
    %v6698 = vtanh.pop %v6608
    %v6699 = vtanh.pop %v6611
    %v6700 = vtanh.pop %v6616
    %v6701 = vtanh.pop %v6619
    %v6702 = vtanh.pop %v6624
    %v6703 = vtanh.pop %v6627
    %v6704 = vtanh.pop %v6632
    %v6705 = vtanh.pop %v6635
    %v6706 = vtanh.pop %v6640
    %v6707 = vtanh.pop %v6643
    %v6708 = vtanh.pop %v6648
    %v6709 = vtanh.pop %v6651
    %v6710 = vtanh.pop %v6656
    %v6711 = vtanh.pop %v6659
    %v6712 = vtanh.pop %v6664
    %v6713 = vtanh.pop %v6667
    %v6714 = vtanh.pop %v6672
    %v6715 = vtanh.pop %v6675
    %v6716 = vtanh.pop %v6680
    %v6717 = vtanh.pop %v6683
    %6718 = vst [vmem:[#allocation8] sm:$0xff] %v6686
    %6719 = vst [vmem:[#allocation8 + $0x8] sm:$0xff] %v6687
    %6720 = vst [vmem:[#allocation8 + $0x10] sm:$0xff] %v6688
    %6721 = vst [vmem:[#allocation8 + $0x18] sm:$0xff] %v6689
    %6722 = vst [vmem:[#allocation8 + $0x20] sm:$0xff] %v6690
    %6723 = vst [vmem:[#allocation8 + $0x28] sm:$0xff] %v6691
    %6724 = vst [vmem:[#allocation8 + $0x30] sm:$0xff] %v6692
    %6725 = vst [vmem:[#allocation8 + $0x38] sm:$0xff] %v6693
    %6726 = vst [vmem:[#allocation8 + $0x40] sm:$0xff] %v6694
    %6727 = vst [vmem:[#allocation8 + $0x48] sm:$0xff] %v6695
    %6728 = vst [vmem:[#allocation8 + $0x50] sm:$0xff] %v6696
    %6729 = vst [vmem:[#allocation8 + $0x58] sm:$0xff] %v6697
    %6730 = vst [vmem:[#allocation8 + $0x60] sm:$0xff] %v6698
    %6731 = vst [vmem:[#allocation8 + $0x68] sm:$0xff] %v6699
    %6732 = vst [vmem:[#allocation8 + $0x70] sm:$0xff] %v6700
    %6733 = vst [vmem:[#allocation8 + $0x78] sm:$0xff] %v6701
    %6734 = vst [vmem:[#allocation8 + $0x80] sm:$0xff] %v6702
    %6735 = vst [vmem:[#allocation8 + $0x88] sm:$0xff] %v6703
    %6736 = vst [vmem:[#allocation8 + $0x90] sm:$0xff] %v6704
    %6737 = vst [vmem:[#allocation8 + $0x98] sm:$0xff] %v6705
    %6738 = vst [vmem:[#allocation8 + $0xa0] sm:$0xff] %v6706
    %6739 = vst [vmem:[#allocation8 + $0xa8] sm:$0xff] %v6707
    %6740 = vst [vmem:[#allocation8 + $0xb0] sm:$0xff] %v6708
    %6741 = vst [vmem:[#allocation8 + $0xb8] sm:$0xff] %v6709
    %6742 = vst [vmem:[#allocation8 + $0xc0] sm:$0xff] %v6710
    %6743 = vst [vmem:[#allocation8 + $0xc8] sm:$0xff] %v6711
    %6744 = vst [vmem:[#allocation8 + $0xd0] sm:$0xff] %v6712
    %6745 = vst [vmem:[#allocation8 + $0xd8] sm:$0xff] %v6713
    %6746 = vst [vmem:[#allocation8 + $0xe0] sm:$0xff] %v6714
    %6747 = vst [vmem:[#allocation8 + $0xe8] sm:$0xff] %v6715
    %6748 = vst [vmem:[#allocation8 + $0xf0] sm:$0xff] %v6716
    %6749 = vst [vmem:[#allocation8 + $0xf8] sm:$0xff] %v6717
    // Predicated region
    $region50: #{tpu_custom_call.1} parent=1 // pred_check
      _
    $region51: #{tpu_custom_call.1} parent=1 // pred_check_branch
      %6751 = sbr.rel (0) target = $region53
    $region52: #{tpu_custom_call.1} parent=1 // pred_region
      %s6753 = ssub.s32 4096, 4096
      %6754 = vsyncadd [#allocation4], %s6753
      %s6755 = sshll.u32 [#allocation8], 4
      %s6756 = int_to_ptr.vmem [resolvable:$true] %s6755
      %6761 = dma.vmem_to_hbm [thread:$0]  %s6756, 4096, %s9, [#allocation4], 128, 128, 8
    $region53: #{tpu_custom_call.1} parent=1 // pred_fallthru
      _
    // Predicated region
    $region54: #{tpu_custom_call.1} parent=1 // pred_check
      _
    $region55: #{tpu_custom_call.1} parent=1 // pred_check_branch
      %6763 = sbr.rel (0) target = $region57
    $region56: #{tpu_custom_call.1} parent=1 // pred_region
      %6764 = dma.done [#allocation4], 4096
    $region57: #{tpu_custom_call.1} parent=1 // pred_fallthru
      _
    %6765 = vsyncpa [#allocation3], 1
    %6766 = vsyncpa [#allocation6], 1
    %6767 = vsyncpa [#allocation4], 1

</llo_original>
